<compile_context>
chip_gen: v7x
topology: tpu7x:2x2x1
jax: 0.10.0
libtpu: 0.0.40
codegen_flags: <defaults>
</compile_context>

<pallas_src>
import jax
import jax.numpy as jnp
from jax import lax
from jax.experimental import pallas as pl
from jax.experimental.pallas import tpu as pltpu

# ----------------------------- model sizes ---------------------------------
VOCAB = 50
E = 32          # opt.embed_dim
H = 32          # opt.hidden_dim (per direction)
S = 8           # sequence length
B = 2           # batch
P_ASP = 3       # opt.aspect_polarity
P_EMO = 6       # opt.emotion_polarity

assert E == H, "weight_r is (3H,3H) applied to cat([2H ctx, E aspect]) -> E must equal H"

IN2 = 2 * E     # 64   LSTM input width
H2 = 2 * H      # 64
H3 = 3 * H      # 96
H4 = 4 * H      # 128  fused gate width (one vreg of lanes)
B2 = 2 * B      # 4    fwd+bwd stacked "virtual batch"

# ---- single weight slab layout (W_ROWS, 256); all row offsets 8-aligned ----
W_LANES = 2 * H4            # 256
R_WX = 0                    # rows   0: 64  [Wx_f | Wx_b]                 (2E, 2*4H)
R_WH = R_WX + IN2           # rows  64:128  [Wh_f ; Wh_b]                 (2H, 4H) cols 0:128
R_BX = R_WH + H2            # row  128      [b_f | b_b]                   (1, 256)
R_WHID = R_BX + 8           # rows 136:200  0:64 weight_W | 64:128 gc1_w | 128:192 wk^T | 192:256 wq^T
R_MISC = R_WHID + H2        # row  200      0:64 weight_proj^T | 64:128 gc1_b | 128:131 asp_b | 136:142 emo_b
R_WMASK = R_MISC + 8        # rows 208:272  0:64 weight_mask | 64:70 emotion_fc_w^T
R_WR = R_WMASK + H2         # rows 272:368  0:96 weight_r | 96:99 aspect_fc_w^T
W_ROWS = R_WR + H3          # 368

# ---- single data slab layout (16, 128) -------------------------------------
C_X = 0                     # cols  0: 64  x_ta, time-major rows (s*B + b)
C_ADJ = IN2                 # cols 64: 80  row-normalized block-diag adj, rows (b*S + s)
C_ASP = 96                  # cols 96:128  aspect embedding at rows 0:B
D_LANES = 128

# ---- packed output layout (B, 128) ------------------------------------------
OUT_W = 128
O_ASP = 0                   # 0:3    sigmoid(aspect logits)
O_EMO = 8                   # 8:14   log-softmax emotion logits
O_ALPHA = 16                # 16:24  alpha over sequence
O_EATT = 24                 # 24:32  emotion attention over sequence


# ----------------------------- kernel ---------------------------------------
def atlsgcn_kernel(data_ref, w_ref, out_ref, hid_scr):
    f32 = jnp.float32

    # ---- unpack the two slabs (static, lane-aligned slices) ----------------
    x_tm = data_ref[:, C_X:C_X + IN2]                       # (S*B, 2E) time-major
    adj_bd = data_ref[:, C_ADJ:C_ADJ + B * S]                # (B*S, B*S) normalized block-diag
    asp = data_ref[0:B, C_ASP:C_ASP + E]                     # (B, E)

    wx = w_ref[R_WX:R_WX + IN2, :]                           # (2E, 256)  [Wx_f | Wx_b]
    wh = w_ref[R_WH:R_WH + H2, 0:H4]                         # (2H, 4H)   [Wh_f ; Wh_b]
    b_xp = w_ref[R_BX:R_BX + 1, :]                           # (1, 256)   [b_f | b_b]
    whid = w_ref[R_WHID:R_WHID + H2, :]                      # (2H, 256)  W_W|gc1_w|wk^T|wq^T
    proj_row = w_ref[R_MISC:R_MISC + 1, 0:H2]                # weight_proj^T
    gc_bias = w_ref[R_MISC:R_MISC + 1, H2:2 * H2]            # gc1 bias
    asp_b = w_ref[R_MISC:R_MISC + 1, H4:H4 + P_ASP]
    emo_b = w_ref[R_MISC:R_MISC + 1, H4 + 8:H4 + 8 + P_EMO]
    wmask = w_ref[R_WMASK:R_WMASK + H2, 0:H2]                # weight_mask
    emo_w = w_ref[R_WMASK:R_WMASK + H2, H2:H2 + P_EMO]       # emotion_fc_w^T
    wr = w_ref[R_WR:R_WR + H3, 0:H3]                         # weight_r
    asp_w = w_ref[R_WR:R_WR + H3, H3:H3 + P_ASP]             # aspect_fc_w^T

    # ---- bi-LSTM -------------------------------------------------------------
    # fused input projection for both directions (bias folded in), hoisted out of
    # the recurrence: (16,64)@(64,256).
    xp = jnp.dot(x_tm, wx, preferred_element_type=f32) + b_xp          # (S*B, 2*4H)

    # masks hoisted out of the unrolled recurrence
    lane_g = lax.broadcasted_iota(jnp.int32, (B2, H4), 1)
    is_g = (lane_g >= 2 * H) & (lane_g < 3 * H)                         # tanh-gate lanes
    row_p = lax.broadcasted_iota(jnp.int32, (B2, H2), 0)
    lane_p = lax.broadcasted_iota(jnp.int32, (B2, H2), 1)
    blk = (row_p < B) == (lane_p < H)                 # [h_f | 0 ; 0 | h_b] placement

    h = jnp.zeros((B2, H), f32)
    c = jnp.zeros((B2, H), f32)
    # TODO(synk): DynamicLSTM variable-length masking (padded sequences) not implemented.
    for t in range(S):                                # unrolled; serial chain = 8 matmuls
        gx_f = xp[t * B:(t + 1) * B, 0:H4]                              # fwd preact @ t
        gx_b = xp[(S - 1 - t) * B:(S - t) * B, H4:2 * H4]               # bwd preact @ S-1-t
        h_pad = jnp.where(blk, jnp.concatenate([h, h], axis=1), 0.0)    # (2B, 2H)
        g = jnp.concatenate([gx_f, gx_b], axis=0) + jnp.dot(
            h_pad, wh, preferred_element_type=f32)                      # (2B, 4H)
        # one full-width tanh for all four gates: sigmoid(x) = 0.5*tanh(0.5x)+0.5
        tt = jnp.tanh(jnp.where(is_g, g, 0.5 * g))
        act = jnp.where(is_g, tt, 0.5 * tt + 0.5)
        c = act[:, H:2 * H] * c + act[:, 0:H] * act[:, 2 * H:3 * H]
        h = act[:, 3 * H:4 * H] * jnp.tanh(c)
        # write straight into the batch-major hidden scratch (no post-loop repack);
        # these stores are off the recurrent critical chain.
        for b in range(B):
            hid_scr[b * S + t:b * S + t + 1, 0:H] = h[b:b + 1, :]
            hid_scr[b * S + (S - 1 - t):b * S + (S - t), H:2 * H] = h[B + b:B + b + 1, :]

    hid_bm = hid_scr[...]                                               # (B*S, 2H)
    hid_b3 = hid_bm.reshape(B, S, H2)

    # ---- self-attention alpha + GCN layer 1 (fused [W_W | gc1_w] matmul) ------
    uw = jnp.dot(hid_bm, whid[:, 0:H4], preferred_element_type=f32)     # [h@W_W | h@gc1_w]
    u = jnp.tanh(uw[:, 0:H2])
    att = jnp.sum(u * proj_row, axis=-1, keepdims=True).reshape(B, S)   # (B, S) scores
    a_exp = jnp.exp(att - jnp.max(att, axis=-1, keepdims=True))
    alpha = a_exp / jnp.sum(a_exp, axis=-1, keepdims=True)              # exact softmax

    ctx = jnp.einsum('bqs,bsd->bqd', alpha[:, None, :], hid_b3,
                     preferred_element_type=f32)[:, 0, :]               # alpha @ hidden

    # GCN: adj already row-normalized & block-diagonal -> single matmul for the batch
    gch = jnp.maximum(
        jnp.dot(adj_bd, uw[:, H2:2 * H2], preferred_element_type=f32) + gc_bias, 0.0)
    gch_b3 = gch.reshape(B, S, H2)

    # aspect location = first argmax of alpha (torch.argmax first-occurrence behavior)
    lane_s = lax.broadcasted_iota(jnp.int32, (B, S), 1)
    loc = jnp.min(jnp.where(alpha == jnp.max(alpha, axis=-1, keepdims=True),
                            lane_s, S), axis=-1, keepdims=True)         # (B, 1) int32
    onehot = (lane_s == loc).astype(f32)

    # ---- emotion attention (fused [K^T | Q^T] matmul over all GCN rows) -------
    kq = jnp.dot(gch, whid[:, H4:2 * H4], preferred_element_type=f32)   # (B*S, 4H) [K | Q]
    kq_b3 = kq.reshape(B, S, 2 * H2)
    q = jnp.einsum('bqs,bsd->bqd', onehot[:, None, :], kq_b3[:, :, H2:2 * H2],
                   preferred_element_type=f32)[:, 0, :]                 # Q(aspect term)
    am = jnp.einsum('bqd,bkd->bqk', q[:, None, :], kq_b3[:, :, 0:H2],
                    preferred_element_type=f32)[:, 0, :]                # Q @ K^T  (B, S)
    am = jnp.where(lane_s == loc, 0.0, am)                              # zero @ aspect loc
    e_exp = jnp.exp(am - jnp.max(am, axis=-1, keepdims=True))
    eatt = e_exp / jnp.sum(e_exp, axis=-1, keepdims=True)               # exact softmax
    gattn = jnp.einsum('bqs,bsd->bqd', eatt[:, None, :], gch_b3,
                       preferred_element_type=f32)[:, 0, :]             # (B, 2H)

    # ---- classifier heads (whole batch on the sublane axis) -------------------
    ctx_cat = jnp.concatenate([ctx, asp], axis=-1)                      # (B, 3H)
    as_h = jnp.tanh(jnp.dot(ctx_cat, wr, preferred_element_type=f32))
    asp_logits = jnp.dot(as_h, asp_w, preferred_element_type=f32) + asp_b
    asp_out = 0.5 * (jnp.tanh(0.5 * asp_logits) + 1.0)                  # exact sigmoid via EUP

    p = jnp.tanh(jnp.dot(gattn, wmask, preferred_element_type=f32))
    e_logits = jnp.dot(p, emo_w, preferred_element_type=f32) + emo_b
    e_shift = e_logits - jnp.max(e_logits, axis=-1, keepdims=True)
    emo_out = e_shift - jnp.log(jnp.sum(jnp.exp(e_shift), axis=-1, keepdims=True))

    # ---- single lane-dense packed output store --------------------------------
    zero5 = jnp.zeros((B, O_EMO - P_ASP), f32)
    zero2 = jnp.zeros((B, O_ALPHA - O_EMO - P_EMO), f32)
    tail = jnp.zeros((B, OUT_W - (O_EATT + S)), f32)
    out_ref[...] = jnp.concatenate(
        [asp_out, zero5, emo_out, zero2, alpha, eatt, tail], axis=-1)   # (B, 128)


# ----------------------------- parameters -----------------------------------
def init_params(key):
    ks = jax.random.split(key, 19)

    def u(k, shape, lo=-0.1, hi=0.1):
        return jax.random.uniform(k, shape, jnp.float32, lo, hi)

    return {
        "embedding": u(ks[0], (VOCAB, E), -1.0, 1.0).at[0].set(0.0),
        # fused-gate LSTM weights, right-multiply form, gate order i|f|g|o on lanes
        "wxf": u(ks[1], (IN2, H4)), "whf": u(ks[2], (H, H4)), "bf": u(ks[3], (1, H4)),
        "wxb": u(ks[4], (IN2, H4)), "whb": u(ks[5], (H, H4)), "bb": u(ks[6], (1, H4)),
        "weight_W": u(ks[7], (H2, H2)),
        "weight_proj": u(ks[8], (H2, 1)),
        "weight_r": u(ks[9], (H3, H3)),
        "weight_mask": u(ks[10], (H2, H2)),
        "gc1_w": u(ks[11], (H2, H2)),
        "gc1_b": u(ks[12], (1, H2)),
        "wq": u(ks[13], (H2, H2)),            # torch Linear layout (out, in), no bias
        "wk": u(ks[14], (H2, H2)),
        "aspect_fc_w": u(ks[15], (P_ASP, H3)), "aspect_fc_b": u(ks[16], (1, P_ASP)),
        "emotion_fc_w": u(ks[17], (P_EMO, H2)), "emotion_fc_b": u(ks[18], (1, P_EMO)),
    }


def build_weight_slab(params):
    """Pack every weight into ONE lane-dense slab.  Call once at init, reuse forever."""
    w = jnp.zeros((W_ROWS, W_LANES), jnp.float32)
    w = w.at[R_WX:R_WX + IN2, 0:H4].set(params["wxf"])
    w = w.at[R_WX:R_WX + IN2, H4:2 * H4].set(params["wxb"])
    w = w.at[R_WH:R_WH + H, 0:H4].set(params["whf"])
    w = w.at[R_WH + H:R_WH + 2 * H, 0:H4].set(params["whb"])
    w = w.at[R_BX, 0:H4].set(params["bf"][0])
    w = w.at[R_BX, H4:2 * H4].set(params["bb"][0])
    w = w.at[R_WHID:R_WHID + H2, 0:H2].set(params["weight_W"])
    w = w.at[R_WHID:R_WHID + H2, H2:2 * H2].set(params["gc1_w"])
    w = w.at[R_WHID:R_WHID + H2, H4:H4 + H2].set(params["wk"].T)
    w = w.at[R_WHID:R_WHID + H2, H4 + H2:2 * H4].set(params["wq"].T)
    w = w.at[R_MISC, 0:H2].set(params["weight_proj"][:, 0])
    w = w.at[R_MISC, H2:2 * H2].set(params["gc1_b"][0])
    w = w.at[R_MISC, H4:H4 + P_ASP].set(params["aspect_fc_b"][0])
    w = w.at[R_MISC, H4 + 8:H4 + 8 + P_EMO].set(params["emotion_fc_b"][0])
    w = w.at[R_WMASK:R_WMASK + H2, 0:H2].set(params["weight_mask"])
    w = w.at[R_WMASK:R_WMASK + H2, H2:H2 + P_EMO].set(params["emotion_fc_w"].T)
    w = w.at[R_WR:R_WR + H3, 0:H3].set(params["weight_r"])
    w = w.at[R_WR:R_WR + H3, H3:H3 + P_ASP].set(params["aspect_fc_w"].T)
    return w


# ----------------------------- forward wrapper ------------------------------
@jax.jit
def atlsgcn_forward(embedding, w_slab, text_indices, aspect_indices, adj):
    # Embedding gathers stay in XLA (no good Pallas equivalent); dropout = identity (eval).
    text_e = embedding[text_indices]                                    # (B, S, E)
    aspect_e = embedding[aspect_indices[:, 0]]                          # (B, E)
    x_ta = jnp.concatenate(
        [text_e, jnp.broadcast_to(aspect_e[:, None, :], text_e.shape)], axis=-1)
    x_tm = jnp.transpose(x_ta, (1, 0, 2)).reshape(S * B, IN2)           # time-major

    adj = adj.astype(jnp.float32)
    adj_norm = adj / (jnp.sum(adj, axis=-1, keepdims=True) + 1.0)       # fold GCN denom
    eye_b = jnp.eye(B, dtype=jnp.float32)
    adj_bd = (eye_b[:, None, :, None] * adj_norm[:, :, None, :]).reshape(B * S, B * S)

    asp_pad = jnp.pad(aspect_e, ((0, S * B - B), (0, 0)))
    pad_mid = jnp.zeros((S * B, C_ASP - C_ADJ - B * S), jnp.float32)
    data = jnp.concatenate([x_tm, adj_bd, pad_mid, asp_pad], axis=-1)   # (16, 128)

    out = pl.pallas_call(
        atlsgcn_kernel,
        out_shape=jax.ShapeDtypeStruct((B, OUT_W), jnp.float32),
        in_specs=[pl.BlockSpec(memory_space=pltpu.MemorySpace.VMEM),
                  pl.BlockSpec(memory_space=pltpu.MemorySpace.VMEM)],
        out_specs=pl.BlockSpec(memory_space=pltpu.MemorySpace.VMEM),
        scratch_shapes=[pltpu.VMEM((B * S, H2), jnp.float32)],
        cost_estimate=pl.CostEstimate(flops=1_700_000, transcendentals=6_500,
                                      bytes_accessed=386_048),
    )(data, w_slab)

    aspect_output = out[:, O_ASP:O_ASP + P_ASP]                         # (B, P_ASP)
    emotion_output = out[:, O_EMO:O_EMO + P_EMO]                        # (B, P_EMO)
    alpha = out[:, O_ALPHA:O_ALPHA + S].reshape(B, 1, S)
    emotion_attention = out[:, O_EATT:O_EATT + S].reshape(B, 1, S)
    return aspect_output, emotion_output, alpha, emotion_attention


# ----------------------------- demo ------------------------------------------
if __name__ == "__main__":
    key = jax.random.PRNGKey(0)
    pkey, k1, k2, k3 = jax.random.split(key, 4)
    params = init_params(pkey)
    embedding = params["embedding"]
    w_slab = jax.device_put(build_weight_slab(params))   # built ONCE, reused every call

    # all indices nonzero -> text_len == S for every row (full-length sequences)
    text_indices = jax.random.randint(k1, (B, S), 1, VOCAB, dtype=jnp.int32)
    aspect_indices = jax.random.randint(k2, (B, 1), 1, VOCAB, dtype=jnp.int32)
    adj_bin = (jax.random.uniform(k3, (B, S, S)) < 0.4).astype(jnp.float32)
    adj = jnp.maximum(adj_bin, jnp.eye(S, dtype=jnp.float32)[None])

    outs = atlsgcn_forward(embedding, w_slab, text_indices, aspect_indices, adj)
    outs = jax.block_until_ready(outs)
    aspect_output, emotion_output, alpha, emotion_attention = outs

    assert aspect_output.shape == (B, P_ASP)
    assert emotion_output.shape == (B, P_EMO)
    assert alpha.shape == (B, 1, S)
    assert emotion_attention.shape == (B, 1, S)
    assert all(bool(jnp.all(jnp.isfinite(o))) for o in outs)
    # exact softmaxes -> attention rows sum to 1
    assert bool(jnp.allclose(jnp.sum(alpha, axis=-1), 1.0, atol=1e-5))
    assert bool(jnp.allclose(jnp.sum(emotion_attention, axis=-1), 1.0, atol=1e-5))
    print("KERNEL_OK")
</pallas_src>

<mosaic_0001>
module attributes {stable_mosaic.version = 11 : i64} {
  func.func @atlsgcn_kernel(%arg0: memref<16x128xf32, #tpu.memory_space<vmem>>, %arg1: memref<368x256xf32, #tpu.memory_space<vmem>>, %arg2: memref<2x128xf32, #tpu.memory_space<vmem>>, %arg3: memref<16x64xf32, #tpu.memory_space<vmem>>) attributes {dimension_semantics = [], scalar_prefetch = 0 : i64, scratch_operands = 1 : i64, tpu.core_type = #tpu.core_type<tc>} {
    %c0 = arith.constant 0 : index
    %c0_0 = arith.constant 0 : index
    %0 = vector.load %arg0[%c0, %c0_0] : memref<16x128xf32, #tpu.memory_space<vmem>>, vector<16x64xf32>
    %c0_1 = arith.constant 0 : index
    %c64 = arith.constant 64 : index
    %1 = vector.load %arg0[%c0_1, %c64] : memref<16x128xf32, #tpu.memory_space<vmem>>, vector<16x16xf32>
    %c0_2 = arith.constant 0 : index
    %c96 = arith.constant 96 : index
    %2 = vector.load %arg0[%c0_2, %c96] : memref<16x128xf32, #tpu.memory_space<vmem>>, vector<2x32xf32>
    %c0_3 = arith.constant 0 : index
    %c0_4 = arith.constant 0 : index
    %3 = vector.load %arg1[%c0_3, %c0_4] : memref<368x256xf32, #tpu.memory_space<vmem>>, vector<64x256xf32>
    %c64_5 = arith.constant 64 : index
    %c0_6 = arith.constant 0 : index
    %4 = vector.load %arg1[%c64_5, %c0_6] : memref<368x256xf32, #tpu.memory_space<vmem>>, vector<64x128xf32>
    %c128 = arith.constant 128 : index
    %c0_7 = arith.constant 0 : index
    %5 = vector.load %arg1[%c128, %c0_7] : memref<368x256xf32, #tpu.memory_space<vmem>>, vector<1x256xf32>
    %c136 = arith.constant 136 : index
    %c0_8 = arith.constant 0 : index
    %6 = vector.load %arg1[%c136, %c0_8] : memref<368x256xf32, #tpu.memory_space<vmem>>, vector<64x256xf32>
    %c200 = arith.constant 200 : index
    %c0_9 = arith.constant 0 : index
    %7 = vector.load %arg1[%c200, %c0_9] : memref<368x256xf32, #tpu.memory_space<vmem>>, vector<1x64xf32>
    %c200_10 = arith.constant 200 : index
    %c64_11 = arith.constant 64 : index
    %8 = vector.load %arg1[%c200_10, %c64_11] : memref<368x256xf32, #tpu.memory_space<vmem>>, vector<1x64xf32>
    %c200_12 = arith.constant 200 : index
    %c128_13 = arith.constant 128 : index
    %9 = vector.load %arg1[%c200_12, %c128_13] : memref<368x256xf32, #tpu.memory_space<vmem>>, vector<1x3xf32>
    %c200_14 = arith.constant 200 : index
    %c136_15 = arith.constant 136 : index
    %10 = vector.load %arg1[%c200_14, %c136_15] : memref<368x256xf32, #tpu.memory_space<vmem>>, vector<1x6xf32>
    %c208 = arith.constant 208 : index
    %c0_16 = arith.constant 0 : index
    %11 = vector.load %arg1[%c208, %c0_16] : memref<368x256xf32, #tpu.memory_space<vmem>>, vector<64x64xf32>
    %c208_17 = arith.constant 208 : index
    %c64_18 = arith.constant 64 : index
    %12 = vector.load %arg1[%c208_17, %c64_18] : memref<368x256xf32, #tpu.memory_space<vmem>>, vector<64x6xf32>
    %c272 = arith.constant 272 : index
    %c0_19 = arith.constant 0 : index
    %13 = vector.load %arg1[%c272, %c0_19] : memref<368x256xf32, #tpu.memory_space<vmem>>, vector<96x96xf32>
    %c272_20 = arith.constant 272 : index
    %c96_21 = arith.constant 96 : index
    %14 = vector.load %arg1[%c272_20, %c96_21] : memref<368x256xf32, #tpu.memory_space<vmem>>, vector<96x3xf32>
    %cst = arith.constant dense<0.000000e+00> : vector<16x256xf32>
    %15 = tpu.matmul %0, %3, %cst {dimension_numbers = #tpu.dot_dimension_numbers<[1], [0], [0], [1], [0, 0, 1, 1], [], []>} : vector<16x64xf32>, vector<64x256xf32>, vector<16x256xf32> -> vector<16x256xf32>
    %16 = vector.broadcast %5 : vector<1x256xf32> to vector<16x256xf32>
    %17 = arith.addf %15, %16 : vector<16x256xf32>
    %18 = tpu.iota {dimensions = array<i32: 1>} : vector<4x128xi32>
    %c64_i32 = arith.constant 64 : i32
    %19 = vector.broadcast %c64_i32 : i32 to vector<4x128xi32>
    %20 = arith.cmpi sge, %18, %19 : vector<4x128xi32>
    %c96_i32 = arith.constant 96 : i32
    %21 = vector.broadcast %c96_i32 : i32 to vector<4x128xi32>
    %22 = arith.cmpi slt, %18, %21 : vector<4x128xi32>
    %23 = arith.andi %20, %22 : vector<4x128xi1>
    %24 = tpu.iota {dimensions = array<i32: 0>} : vector<4x64xi32>
    %25 = tpu.iota {dimensions = array<i32: 1>} : vector<4x64xi32>
    %c2_i32 = arith.constant 2 : i32
    %26 = vector.broadcast %c2_i32 : i32 to vector<4x64xi32>
    %27 = arith.cmpi slt, %24, %26 : vector<4x64xi32>
    %c32_i32 = arith.constant 32 : i32
    %28 = vector.broadcast %c32_i32 : i32 to vector<4x64xi32>
    %29 = arith.cmpi slt, %25, %28 : vector<4x64xi32>
    %30 = arith.xori %27, %29 : vector<4x64xi1>
    %cst_22 = arith.constant dense<true> : vector<4x64xi1>
    %31 = arith.xori %30, %cst_22 : vector<4x64xi1>
    %cst_23 = arith.constant 0.000000e+00 : f32
    %32 = vector.broadcast %cst_23 : f32 to vector<4x32xf32>
    %cst_24 = arith.constant 0.000000e+00 : f32
    %33 = vector.broadcast %cst_24 : f32 to vector<4x32xf32>
    %34 = vector.extract_strided_slice %17 {offsets = [0, 0], sizes = [2, 128], strides = [1, 1]} : vector<16x256xf32> to vector<2x128xf32>
    %35 = vector.extract_strided_slice %17 {offsets = [14, 128], sizes = [2, 128], strides = [1, 1]} : vector<16x256xf32> to vector<2x128xf32>
    %36 = tpu.concatenate %32, %32 in 1 : vector<4x32xf32>, vector<4x32xf32> -> vector<4x64xf32>
    %cst_25 = arith.constant 0.000000e+00 : f32
    %37 = vector.broadcast %cst_25 : f32 to vector<4x64xf32>
    %38 = arith.select %31, %36, %37 : vector<4x64xi1>, vector<4x64xf32>
    %39 = tpu.concatenate %34, %35 in 0 : vector<2x128xf32>, vector<2x128xf32> -> vector<4x128xf32>
    %cst_26 = arith.constant dense<0.000000e+00> : vector<4x128xf32>
    %40 = tpu.matmul %38, %4, %cst_26 {dimension_numbers = #tpu.dot_dimension_numbers<[1], [0], [0], [1], [0, 0, 1, 1], [], []>} : vector<4x64xf32>, vector<64x128xf32>, vector<4x128xf32> -> vector<4x128xf32>
    %41 = arith.addf %39, %40 : vector<4x128xf32>
    %cst_27 = arith.constant 5.000000e-01 : f32
    %42 = vector.broadcast %cst_27 : f32 to vector<4x128xf32>
    %43 = arith.mulf %42, %41 : vector<4x128xf32>
    %44 = arith.select %23, %41, %43 : vector<4x128xi1>, vector<4x128xf32>
    %45 = math.tanh %44 : vector<4x128xf32>
    %cst_28 = arith.constant 5.000000e-01 : f32
    %46 = vector.broadcast %cst_28 : f32 to vector<4x128xf32>
    %47 = arith.mulf %46, %45 : vector<4x128xf32>
    %cst_29 = arith.constant 5.000000e-01 : f32
    %48 = vector.broadcast %cst_29 : f32 to vector<4x128xf32>
    %49 = arith.addf %47, %48 : vector<4x128xf32>
    %50 = arith.select %23, %45, %49 : vector<4x128xi1>, vector<4x128xf32>
    %51 = vector.extract_strided_slice %50 {offsets = [0, 32], sizes = [4, 32], strides = [1, 1]} : vector<4x128xf32> to vector<4x32xf32>
    %52 = arith.mulf %51, %33 : vector<4x32xf32>
    %53 = vector.extract_strided_slice %50 {offsets = [0, 0], sizes = [4, 32], strides = [1, 1]} : vector<4x128xf32> to vector<4x32xf32>
    %54 = vector.extract_strided_slice %50 {offsets = [0, 64], sizes = [4, 32], strides = [1, 1]} : vector<4x128xf32> to vector<4x32xf32>
    %55 = arith.mulf %53, %54 : vector<4x32xf32>
    %56 = arith.addf %52, %55 : vector<4x32xf32>
    %57 = vector.extract_strided_slice %50 {offsets = [0, 96], sizes = [4, 32], strides = [1, 1]} : vector<4x128xf32> to vector<4x32xf32>
    %58 = math.tanh %56 : vector<4x32xf32>
    %59 = arith.mulf %57, %58 : vector<4x32xf32>
    %60 = vector.extract_strided_slice %59 {offsets = [0, 0], sizes = [1, 32], strides = [1, 1]} : vector<4x32xf32> to vector<1x32xf32>
    %c0_30 = arith.constant 0 : index
    %c0_31 = arith.constant 0 : index
    %61 = vector.load %arg3[%c0_30, %c0_31] : memref<16x64xf32, #tpu.memory_space<vmem>>, vector<1x32xf32>
    tpu.vector_store %arg3[%c0_30, %c0_31], %60 {strides = array<i32>} : memref<16x64xf32, #tpu.memory_space<vmem>>, vector<1x32xf32>,
    %62 = vector.extract_strided_slice %59 {offsets = [2, 0], sizes = [1, 32], strides = [1, 1]} : vector<4x32xf32> to vector<1x32xf32>
    %c7 = arith.constant 7 : index
    %c32 = arith.constant 32 : index
    %63 = vector.load %arg3[%c7, %c32] : memref<16x64xf32, #tpu.memory_space<vmem>>, vector<1x32xf32>
    tpu.vector_store %arg3[%c7, %c32], %62 {strides = array<i32>} : memref<16x64xf32, #tpu.memory_space<vmem>>, vector<1x32xf32>,
    %64 = vector.extract_strided_slice %59 {offsets = [1, 0], sizes = [1, 32], strides = [1, 1]} : vector<4x32xf32> to vector<1x32xf32>
    %c8 = arith.constant 8 : index
    %c0_32 = arith.constant 0 : index
    %65 = vector.load %arg3[%c8, %c0_32] : memref<16x64xf32, #tpu.memory_space<vmem>>, vector<1x32xf32>
    tpu.vector_store %arg3[%c8, %c0_32], %64 {strides = array<i32>} : memref<16x64xf32, #tpu.memory_space<vmem>>, vector<1x32xf32>,
    %66 = vector.extract_strided_slice %59 {offsets = [3, 0], sizes = [1, 32], strides = [1, 1]} : vector<4x32xf32> to vector<1x32xf32>
    %c15 = arith.constant 15 : index
    %c32_33 = arith.constant 32 : index
    %67 = vector.load %arg3[%c15, %c32_33] : memref<16x64xf32, #tpu.memory_space<vmem>>, vector<1x32xf32>
    tpu.vector_store %arg3[%c15, %c32_33], %66 {strides = array<i32>} : memref<16x64xf32, #tpu.memory_space<vmem>>, vector<1x32xf32>,
    %68 = vector.extract_strided_slice %17 {offsets = [2, 0], sizes = [2, 128], strides = [1, 1]} : vector<16x256xf32> to vector<2x128xf32>
    %69 = vector.extract_strided_slice %17 {offsets = [12, 128], sizes = [2, 128], strides = [1, 1]} : vector<16x256xf32> to vector<2x128xf32>
    %70 = tpu.concatenate %59, %59 in 1 : vector<4x32xf32>, vector<4x32xf32> -> vector<4x64xf32>
    %cst_34 = arith.constant 0.000000e+00 : f32
    %71 = vector.broadcast %cst_34 : f32 to vector<4x64xf32>
    %72 = arith.select %31, %70, %71 : vector<4x64xi1>, vector<4x64xf32>
    %73 = tpu.concatenate %68, %69 in 0 : vector<2x128xf32>, vector<2x128xf32> -> vector<4x128xf32>
    %cst_35 = arith.constant dense<0.000000e+00> : vector<4x128xf32>
    %74 = tpu.matmul %72, %4, %cst_35 {dimension_numbers = #tpu.dot_dimension_numbers<[1], [0], [0], [1], [0, 0, 1, 1], [], []>} : vector<4x64xf32>, vector<64x128xf32>, vector<4x128xf32> -> vector<4x128xf32>
    %75 = arith.addf %73, %74 : vector<4x128xf32>
    %cst_36 = arith.constant 5.000000e-01 : f32
    %76 = vector.broadcast %cst_36 : f32 to vector<4x128xf32>
    %77 = arith.mulf %76, %75 : vector<4x128xf32>
    %78 = arith.select %23, %75, %77 : vector<4x128xi1>, vector<4x128xf32>
    %79 = math.tanh %78 : vector<4x128xf32>
    %cst_37 = arith.constant 5.000000e-01 : f32
    %80 = vector.broadcast %cst_37 : f32 to vector<4x128xf32>
    %81 = arith.mulf %80, %79 : vector<4x128xf32>
    %cst_38 = arith.constant 5.000000e-01 : f32
    %82 = vector.broadcast %cst_38 : f32 to vector<4x128xf32>
    %83 = arith.addf %81, %82 : vector<4x128xf32>
    %84 = arith.select %23, %79, %83 : vector<4x128xi1>, vector<4x128xf32>
    %85 = vector.extract_strided_slice %84 {offsets = [0, 32], sizes = [4, 32], strides = [1, 1]} : vector<4x128xf32> to vector<4x32xf32>
    %86 = arith.mulf %85, %56 : vector<4x32xf32>
    %87 = vector.extract_strided_slice %84 {offsets = [0, 0], sizes = [4, 32], strides = [1, 1]} : vector<4x128xf32> to vector<4x32xf32>
    %88 = vector.extract_strided_slice %84 {offsets = [0, 64], sizes = [4, 32], strides = [1, 1]} : vector<4x128xf32> to vector<4x32xf32>
    %89 = arith.mulf %87, %88 : vector<4x32xf32>
    %90 = arith.addf %86, %89 : vector<4x32xf32>
    %91 = vector.extract_strided_slice %84 {offsets = [0, 96], sizes = [4, 32], strides = [1, 1]} : vector<4x128xf32> to vector<4x32xf32>
    %92 = math.tanh %90 : vector<4x32xf32>
    %93 = arith.mulf %91, %92 : vector<4x32xf32>
    %94 = vector.extract_strided_slice %93 {offsets = [0, 0], sizes = [1, 32], strides = [1, 1]} : vector<4x32xf32> to vector<1x32xf32>
    %c1 = arith.constant 1 : index
    %c0_39 = arith.constant 0 : index
    %95 = vector.load %arg3[%c1, %c0_39] : memref<16x64xf32, #tpu.memory_space<vmem>>, vector<1x32xf32>
    tpu.vector_store %arg3[%c1, %c0_39], %94 {strides = array<i32>} : memref<16x64xf32, #tpu.memory_space<vmem>>, vector<1x32xf32>,
    %96 = vector.extract_strided_slice %93 {offsets = [2, 0], sizes = [1, 32], strides = [1, 1]} : vector<4x32xf32> to vector<1x32xf32>
    %c6 = arith.constant 6 : index
    %c32_40 = arith.constant 32 : index
    %97 = vector.load %arg3[%c6, %c32_40] : memref<16x64xf32, #tpu.memory_space<vmem>>, vector<1x32xf32>
    tpu.vector_store %arg3[%c6, %c32_40], %96 {strides = array<i32>} : memref<16x64xf32, #tpu.memory_space<vmem>>, vector<1x32xf32>,
    %98 = vector.extract_strided_slice %93 {offsets = [1, 0], sizes = [1, 32], strides = [1, 1]} : vector<4x32xf32> to vector<1x32xf32>
    %c9 = arith.constant 9 : index
    %c0_41 = arith.constant 0 : index
    %99 = vector.load %arg3[%c9, %c0_41] : memref<16x64xf32, #tpu.memory_space<vmem>>, vector<1x32xf32>
    tpu.vector_store %arg3[%c9, %c0_41], %98 {strides = array<i32>} : memref<16x64xf32, #tpu.memory_space<vmem>>, vector<1x32xf32>,
    %100 = vector.extract_strided_slice %93 {offsets = [3, 0], sizes = [1, 32], strides = [1, 1]} : vector<4x32xf32> to vector<1x32xf32>
    %c14 = arith.constant 14 : index
    %c32_42 = arith.constant 32 : index
    %101 = vector.load %arg3[%c14, %c32_42] : memref<16x64xf32, #tpu.memory_space<vmem>>, vector<1x32xf32>
    tpu.vector_store %arg3[%c14, %c32_42], %100 {strides = array<i32>} : memref<16x64xf32, #tpu.memory_space<vmem>>, vector<1x32xf32>,
    %102 = vector.extract_strided_slice %17 {offsets = [4, 0], sizes = [2, 128], strides = [1, 1]} : vector<16x256xf32> to vector<2x128xf32>
    %103 = vector.extract_strided_slice %17 {offsets = [10, 128], sizes = [2, 128], strides = [1, 1]} : vector<16x256xf32> to vector<2x128xf32>
    %104 = tpu.concatenate %93, %93 in 1 : vector<4x32xf32>, vector<4x32xf32> -> vector<4x64xf32>
    %cst_43 = arith.constant 0.000000e+00 : f32
    %105 = vector.broadcast %cst_43 : f32 to vector<4x64xf32>
    %106 = arith.select %31, %104, %105 : vector<4x64xi1>, vector<4x64xf32>
    %107 = tpu.concatenate %102, %103 in 0 : vector<2x128xf32>, vector<2x128xf32> -> vector<4x128xf32>
    %cst_44 = arith.constant dense<0.000000e+00> : vector<4x128xf32>
    %108 = tpu.matmul %106, %4, %cst_44 {dimension_numbers = #tpu.dot_dimension_numbers<[1], [0], [0], [1], [0, 0, 1, 1], [], []>} : vector<4x64xf32>, vector<64x128xf32>, vector<4x128xf32> -> vector<4x128xf32>
    %109 = arith.addf %107, %108 : vector<4x128xf32>
    %cst_45 = arith.constant 5.000000e-01 : f32
    %110 = vector.broadcast %cst_45 : f32 to vector<4x128xf32>
    %111 = arith.mulf %110, %109 : vector<4x128xf32>
    %112 = arith.select %23, %109, %111 : vector<4x128xi1>, vector<4x128xf32>
    %113 = math.tanh %112 : vector<4x128xf32>
    %cst_46 = arith.constant 5.000000e-01 : f32
    %114 = vector.broadcast %cst_46 : f32 to vector<4x128xf32>
    %115 = arith.mulf %114, %113 : vector<4x128xf32>
    %cst_47 = arith.constant 5.000000e-01 : f32
    %116 = vector.broadcast %cst_47 : f32 to vector<4x128xf32>
    %117 = arith.addf %115, %116 : vector<4x128xf32>
    %118 = arith.select %23, %113, %117 : vector<4x128xi1>, vector<4x128xf32>
    %119 = vector.extract_strided_slice %118 {offsets = [0, 32], sizes = [4, 32], strides = [1, 1]} : vector<4x128xf32> to vector<4x32xf32>
    %120 = arith.mulf %119, %90 : vector<4x32xf32>
    %121 = vector.extract_strided_slice %118 {offsets = [0, 0], sizes = [4, 32], strides = [1, 1]} : vector<4x128xf32> to vector<4x32xf32>
    %122 = vector.extract_strided_slice %118 {offsets = [0, 64], sizes = [4, 32], strides = [1, 1]} : vector<4x128xf32> to vector<4x32xf32>
    %123 = arith.mulf %121, %122 : vector<4x32xf32>
    %124 = arith.addf %120, %123 : vector<4x32xf32>
    %125 = vector.extract_strided_slice %118 {offsets = [0, 96], sizes = [4, 32], strides = [1, 1]} : vector<4x128xf32> to vector<4x32xf32>
    %126 = math.tanh %124 : vector<4x32xf32>
    %127 = arith.mulf %125, %126 : vector<4x32xf32>
    %128 = vector.extract_strided_slice %127 {offsets = [0, 0], sizes = [1, 32], strides = [1, 1]} : vector<4x32xf32> to vector<1x32xf32>
    %c2 = arith.constant 2 : index
    %c0_48 = arith.constant 0 : index
    %129 = vector.load %arg3[%c2, %c0_48] : memref<16x64xf32, #tpu.memory_space<vmem>>, vector<1x32xf32>
    tpu.vector_store %arg3[%c2, %c0_48], %128 {strides = array<i32>} : memref<16x64xf32, #tpu.memory_space<vmem>>, vector<1x32xf32>,
    %130 = vector.extract_strided_slice %127 {offsets = [2, 0], sizes = [1, 32], strides = [1, 1]} : vector<4x32xf32> to vector<1x32xf32>
    %c5 = arith.constant 5 : index
    %c32_49 = arith.constant 32 : index
    %131 = vector.load %arg3[%c5, %c32_49] : memref<16x64xf32, #tpu.memory_space<vmem>>, vector<1x32xf32>
    tpu.vector_store %arg3[%c5, %c32_49], %130 {strides = array<i32>} : memref<16x64xf32, #tpu.memory_space<vmem>>, vector<1x32xf32>,
    %132 = vector.extract_strided_slice %127 {offsets = [1, 0], sizes = [1, 32], strides = [1, 1]} : vector<4x32xf32> to vector<1x32xf32>
    %c10 = arith.constant 10 : index
    %c0_50 = arith.constant 0 : index
    %133 = vector.load %arg3[%c10, %c0_50] : memref<16x64xf32, #tpu.memory_space<vmem>>, vector<1x32xf32>
    tpu.vector_store %arg3[%c10, %c0_50], %132 {strides = array<i32>} : memref<16x64xf32, #tpu.memory_space<vmem>>, vector<1x32xf32>,
    %134 = vector.extract_strided_slice %127 {offsets = [3, 0], sizes = [1, 32], strides = [1, 1]} : vector<4x32xf32> to vector<1x32xf32>
    %c13 = arith.constant 13 : index
    %c32_51 = arith.constant 32 : index
    %135 = vector.load %arg3[%c13, %c32_51] : memref<16x64xf32, #tpu.memory_space<vmem>>, vector<1x32xf32>
    tpu.vector_store %arg3[%c13, %c32_51], %134 {strides = array<i32>} : memref<16x64xf32, #tpu.memory_space<vmem>>, vector<1x32xf32>,
    %136 = vector.extract_strided_slice %17 {offsets = [6, 0], sizes = [2, 128], strides = [1, 1]} : vector<16x256xf32> to vector<2x128xf32>
    %137 = vector.extract_strided_slice %17 {offsets = [8, 128], sizes = [2, 128], strides = [1, 1]} : vector<16x256xf32> to vector<2x128xf32>
    %138 = tpu.concatenate %127, %127 in 1 : vector<4x32xf32>, vector<4x32xf32> -> vector<4x64xf32>
    %cst_52 = arith.constant 0.000000e+00 : f32
    %139 = vector.broadcast %cst_52 : f32 to vector<4x64xf32>
    %140 = arith.select %31, %138, %139 : vector<4x64xi1>, vector<4x64xf32>
    %141 = tpu.concatenate %136, %137 in 0 : vector<2x128xf32>, vector<2x128xf32> -> vector<4x128xf32>
    %cst_53 = arith.constant dense<0.000000e+00> : vector<4x128xf32>
    %142 = tpu.matmul %140, %4, %cst_53 {dimension_numbers = #tpu.dot_dimension_numbers<[1], [0], [0], [1], [0, 0, 1, 1], [], []>} : vector<4x64xf32>, vector<64x128xf32>, vector<4x128xf32> -> vector<4x128xf32>
    %143 = arith.addf %141, %142 : vector<4x128xf32>
    %cst_54 = arith.constant 5.000000e-01 : f32
    %144 = vector.broadcast %cst_54 : f32 to vector<4x128xf32>
    %145 = arith.mulf %144, %143 : vector<4x128xf32>
    %146 = arith.select %23, %143, %145 : vector<4x128xi1>, vector<4x128xf32>
    %147 = math.tanh %146 : vector<4x128xf32>
    %cst_55 = arith.constant 5.000000e-01 : f32
    %148 = vector.broadcast %cst_55 : f32 to vector<4x128xf32>
    %149 = arith.mulf %148, %147 : vector<4x128xf32>
    %cst_56 = arith.constant 5.000000e-01 : f32
    %150 = vector.broadcast %cst_56 : f32 to vector<4x128xf32>
    %151 = arith.addf %149, %150 : vector<4x128xf32>
    %152 = arith.select %23, %147, %151 : vector<4x128xi1>, vector<4x128xf32>
    %153 = vector.extract_strided_slice %152 {offsets = [0, 32], sizes = [4, 32], strides = [1, 1]} : vector<4x128xf32> to vector<4x32xf32>
    %154 = arith.mulf %153, %124 : vector<4x32xf32>
    %155 = vector.extract_strided_slice %152 {offsets = [0, 0], sizes = [4, 32], strides = [1, 1]} : vector<4x128xf32> to vector<4x32xf32>
    %156 = vector.extract_strided_slice %152 {offsets = [0, 64], sizes = [4, 32], strides = [1, 1]} : vector<4x128xf32> to vector<4x32xf32>
    %157 = arith.mulf %155, %156 : vector<4x32xf32>
    %158 = arith.addf %154, %157 : vector<4x32xf32>
    %159 = vector.extract_strided_slice %152 {offsets = [0, 96], sizes = [4, 32], strides = [1, 1]} : vector<4x128xf32> to vector<4x32xf32>
    %160 = math.tanh %158 : vector<4x32xf32>
    %161 = arith.mulf %159, %160 : vector<4x32xf32>
    %162 = vector.extract_strided_slice %161 {offsets = [0, 0], sizes = [1, 32], strides = [1, 1]} : vector<4x32xf32> to vector<1x32xf32>
    %c3 = arith.constant 3 : index
    %c0_57 = arith.constant 0 : index
    %163 = vector.load %arg3[%c3, %c0_57] : memref<16x64xf32, #tpu.memory_space<vmem>>, vector<1x32xf32>
    tpu.vector_store %arg3[%c3, %c0_57], %162 {strides = array<i32>} : memref<16x64xf32, #tpu.memory_space<vmem>>, vector<1x32xf32>,
    %164 = vector.extract_strided_slice %161 {offsets = [2, 0], sizes = [1, 32], strides = [1, 1]} : vector<4x32xf32> to vector<1x32xf32>
    %c4 = arith.constant 4 : index
    %c32_58 = arith.constant 32 : index
    %165 = vector.load %arg3[%c4, %c32_58] : memref<16x64xf32, #tpu.memory_space<vmem>>, vector<1x32xf32>
    tpu.vector_store %arg3[%c4, %c32_58], %164 {strides = array<i32>} : memref<16x64xf32, #tpu.memory_space<vmem>>, vector<1x32xf32>,
    %166 = vector.extract_strided_slice %161 {offsets = [1, 0], sizes = [1, 32], strides = [1, 1]} : vector<4x32xf32> to vector<1x32xf32>
    %c11 = arith.constant 11 : index
    %c0_59 = arith.constant 0 : index
    %167 = vector.load %arg3[%c11, %c0_59] : memref<16x64xf32, #tpu.memory_space<vmem>>, vector<1x32xf32>
    tpu.vector_store %arg3[%c11, %c0_59], %166 {strides = array<i32>} : memref<16x64xf32, #tpu.memory_space<vmem>>, vector<1x32xf32>,
    %168 = vector.extract_strided_slice %161 {offsets = [3, 0], sizes = [1, 32], strides = [1, 1]} : vector<4x32xf32> to vector<1x32xf32>
    %c12 = arith.constant 12 : index
    %c32_60 = arith.constant 32 : index
    %169 = vector.load %arg3[%c12, %c32_60] : memref<16x64xf32, #tpu.memory_space<vmem>>, vector<1x32xf32>
    tpu.vector_store %arg3[%c12, %c32_60], %168 {strides = array<i32>} : memref<16x64xf32, #tpu.memory_space<vmem>>, vector<1x32xf32>,
    %170 = vector.extract_strided_slice %17 {offsets = [8, 0], sizes = [2, 128], strides = [1, 1]} : vector<16x256xf32> to vector<2x128xf32>
    %171 = vector.extract_strided_slice %17 {offsets = [6, 128], sizes = [2, 128], strides = [1, 1]} : vector<16x256xf32> to vector<2x128xf32>
    %172 = tpu.concatenate %161, %161 in 1 : vector<4x32xf32>, vector<4x32xf32> -> vector<4x64xf32>
    %cst_61 = arith.constant 0.000000e+00 : f32
    %173 = vector.broadcast %cst_61 : f32 to vector<4x64xf32>
    %174 = arith.select %31, %172, %173 : vector<4x64xi1>, vector<4x64xf32>
    %175 = tpu.concatenate %170, %171 in 0 : vector<2x128xf32>, vector<2x128xf32> -> vector<4x128xf32>
    %cst_62 = arith.constant dense<0.000000e+00> : vector<4x128xf32>
    %176 = tpu.matmul %174, %4, %cst_62 {dimension_numbers = #tpu.dot_dimension_numbers<[1], [0], [0], [1], [0, 0, 1, 1], [], []>} : vector<4x64xf32>, vector<64x128xf32>, vector<4x128xf32> -> vector<4x128xf32>
    %177 = arith.addf %175, %176 : vector<4x128xf32>
    %cst_63 = arith.constant 5.000000e-01 : f32
    %178 = vector.broadcast %cst_63 : f32 to vector<4x128xf32>
    %179 = arith.mulf %178, %177 : vector<4x128xf32>
    %180 = arith.select %23, %177, %179 : vector<4x128xi1>, vector<4x128xf32>
    %181 = math.tanh %180 : vector<4x128xf32>
    %cst_64 = arith.constant 5.000000e-01 : f32
    %182 = vector.broadcast %cst_64 : f32 to vector<4x128xf32>
    %183 = arith.mulf %182, %181 : vector<4x128xf32>
    %cst_65 = arith.constant 5.000000e-01 : f32
    %184 = vector.broadcast %cst_65 : f32 to vector<4x128xf32>
    %185 = arith.addf %183, %184 : vector<4x128xf32>
    %186 = arith.select %23, %181, %185 : vector<4x128xi1>, vector<4x128xf32>
    %187 = vector.extract_strided_slice %186 {offsets = [0, 32], sizes = [4, 32], strides = [1, 1]} : vector<4x128xf32> to vector<4x32xf32>
    %188 = arith.mulf %187, %158 : vector<4x32xf32>
    %189 = vector.extract_strided_slice %186 {offsets = [0, 0], sizes = [4, 32], strides = [1, 1]} : vector<4x128xf32> to vector<4x32xf32>
    %190 = vector.extract_strided_slice %186 {offsets = [0, 64], sizes = [4, 32], strides = [1, 1]} : vector<4x128xf32> to vector<4x32xf32>
    %191 = arith.mulf %189, %190 : vector<4x32xf32>
    %192 = arith.addf %188, %191 : vector<4x32xf32>
    %193 = vector.extract_strided_slice %186 {offsets = [0, 96], sizes = [4, 32], strides = [1, 1]} : vector<4x128xf32> to vector<4x32xf32>
    %194 = math.tanh %192 : vector<4x32xf32>
    %195 = arith.mulf %193, %194 : vector<4x32xf32>
    %196 = vector.extract_strided_slice %195 {offsets = [0, 0], sizes = [1, 32], strides = [1, 1]} : vector<4x32xf32> to vector<1x32xf32>
    %c4_66 = arith.constant 4 : index
    %c0_67 = arith.constant 0 : index
    %197 = vector.load %arg3[%c4_66, %c0_67] : memref<16x64xf32, #tpu.memory_space<vmem>>, vector<1x32xf32>
    tpu.vector_store %arg3[%c4_66, %c0_67], %196 {strides = array<i32>} : memref<16x64xf32, #tpu.memory_space<vmem>>, vector<1x32xf32>,
    %198 = vector.extract_strided_slice %195 {offsets = [2, 0], sizes = [1, 32], strides = [1, 1]} : vector<4x32xf32> to vector<1x32xf32>
    %c3_68 = arith.constant 3 : index
    %c32_69 = arith.constant 32 : index
    %199 = vector.load %arg3[%c3_68, %c32_69] : memref<16x64xf32, #tpu.memory_space<vmem>>, vector<1x32xf32>
    tpu.vector_store %arg3[%c3_68, %c32_69], %198 {strides = array<i32>} : memref<16x64xf32, #tpu.memory_space<vmem>>, vector<1x32xf32>,
    %200 = vector.extract_strided_slice %195 {offsets = [1, 0], sizes = [1, 32], strides = [1, 1]} : vector<4x32xf32> to vector<1x32xf32>
    %c12_70 = arith.constant 12 : index
    %c0_71 = arith.constant 0 : index
    %201 = vector.load %arg3[%c12_70, %c0_71] : memref<16x64xf32, #tpu.memory_space<vmem>>, vector<1x32xf32>
    tpu.vector_store %arg3[%c12_70, %c0_71], %200 {strides = array<i32>} : memref<16x64xf32, #tpu.memory_space<vmem>>, vector<1x32xf32>,
    %202 = vector.extract_strided_slice %195 {offsets = [3, 0], sizes = [1, 32], strides = [1, 1]} : vector<4x32xf32> to vector<1x32xf32>
    %c11_72 = arith.constant 11 : index
    %c32_73 = arith.constant 32 : index
    %203 = vector.load %arg3[%c11_72, %c32_73] : memref<16x64xf32, #tpu.memory_space<vmem>>, vector<1x32xf32>
    tpu.vector_store %arg3[%c11_72, %c32_73], %202 {strides = array<i32>} : memref<16x64xf32, #tpu.memory_space<vmem>>, vector<1x32xf32>,
    %204 = vector.extract_strided_slice %17 {offsets = [10, 0], sizes = [2, 128], strides = [1, 1]} : vector<16x256xf32> to vector<2x128xf32>
    %205 = vector.extract_strided_slice %17 {offsets = [4, 128], sizes = [2, 128], strides = [1, 1]} : vector<16x256xf32> to vector<2x128xf32>
    %206 = tpu.concatenate %195, %195 in 1 : vector<4x32xf32>, vector<4x32xf32> -> vector<4x64xf32>
    %cst_74 = arith.constant 0.000000e+00 : f32
    %207 = vector.broadcast %cst_74 : f32 to vector<4x64xf32>
    %208 = arith.select %31, %206, %207 : vector<4x64xi1>, vector<4x64xf32>
    %209 = tpu.concatenate %204, %205 in 0 : vector<2x128xf32>, vector<2x128xf32> -> vector<4x128xf32>
    %cst_75 = arith.constant dense<0.000000e+00> : vector<4x128xf32>
    %210 = tpu.matmul %208, %4, %cst_75 {dimension_numbers = #tpu.dot_dimension_numbers<[1], [0], [0], [1], [0, 0, 1, 1], [], []>} : vector<4x64xf32>, vector<64x128xf32>, vector<4x128xf32> -> vector<4x128xf32>
    %211 = arith.addf %209, %210 : vector<4x128xf32>
    %cst_76 = arith.constant 5.000000e-01 : f32
    %212 = vector.broadcast %cst_76 : f32 to vector<4x128xf32>
    %213 = arith.mulf %212, %211 : vector<4x128xf32>
    %214 = arith.select %23, %211, %213 : vector<4x128xi1>, vector<4x128xf32>
    %215 = math.tanh %214 : vector<4x128xf32>
    %cst_77 = arith.constant 5.000000e-01 : f32
    %216 = vector.broadcast %cst_77 : f32 to vector<4x128xf32>
    %217 = arith.mulf %216, %215 : vector<4x128xf32>
    %cst_78 = arith.constant 5.000000e-01 : f32
    %218 = vector.broadcast %cst_78 : f32 to vector<4x128xf32>
    %219 = arith.addf %217, %218 : vector<4x128xf32>
    %220 = arith.select %23, %215, %219 : vector<4x128xi1>, vector<4x128xf32>
    %221 = vector.extract_strided_slice %220 {offsets = [0, 32], sizes = [4, 32], strides = [1, 1]} : vector<4x128xf32> to vector<4x32xf32>
    %222 = arith.mulf %221, %192 : vector<4x32xf32>
    %223 = vector.extract_strided_slice %220 {offsets = [0, 0], sizes = [4, 32], strides = [1, 1]} : vector<4x128xf32> to vector<4x32xf32>
    %224 = vector.extract_strided_slice %220 {offsets = [0, 64], sizes = [4, 32], strides = [1, 1]} : vector<4x128xf32> to vector<4x32xf32>
    %225 = arith.mulf %223, %224 : vector<4x32xf32>
    %226 = arith.addf %222, %225 : vector<4x32xf32>
    %227 = vector.extract_strided_slice %220 {offsets = [0, 96], sizes = [4, 32], strides = [1, 1]} : vector<4x128xf32> to vector<4x32xf32>
    %228 = math.tanh %226 : vector<4x32xf32>
    %229 = arith.mulf %227, %228 : vector<4x32xf32>
    %230 = vector.extract_strided_slice %229 {offsets = [0, 0], sizes = [1, 32], strides = [1, 1]} : vector<4x32xf32> to vector<1x32xf32>
    %c5_79 = arith.constant 5 : index
    %c0_80 = arith.constant 0 : index
    %231 = vector.load %arg3[%c5_79, %c0_80] : memref<16x64xf32, #tpu.memory_space<vmem>>, vector<1x32xf32>
    tpu.vector_store %arg3[%c5_79, %c0_80], %230 {strides = array<i32>} : memref<16x64xf32, #tpu.memory_space<vmem>>, vector<1x32xf32>,
    %232 = vector.extract_strided_slice %229 {offsets = [2, 0], sizes = [1, 32], strides = [1, 1]} : vector<4x32xf32> to vector<1x32xf32>
    %c2_81 = arith.constant 2 : index
    %c32_82 = arith.constant 32 : index
    %233 = vector.load %arg3[%c2_81, %c32_82] : memref<16x64xf32, #tpu.memory_space<vmem>>, vector<1x32xf32>
    tpu.vector_store %arg3[%c2_81, %c32_82], %232 {strides = array<i32>} : memref<16x64xf32, #tpu.memory_space<vmem>>, vector<1x32xf32>,
    %234 = vector.extract_strided_slice %229 {offsets = [1, 0], sizes = [1, 32], strides = [1, 1]} : vector<4x32xf32> to vector<1x32xf32>
    %c13_83 = arith.constant 13 : index
    %c0_84 = arith.constant 0 : index
    %235 = vector.load %arg3[%c13_83, %c0_84] : memref<16x64xf32, #tpu.memory_space<vmem>>, vector<1x32xf32>
    tpu.vector_store %arg3[%c13_83, %c0_84], %234 {strides = array<i32>} : memref<16x64xf32, #tpu.memory_space<vmem>>, vector<1x32xf32>,
    %236 = vector.extract_strided_slice %229 {offsets = [3, 0], sizes = [1, 32], strides = [1, 1]} : vector<4x32xf32> to vector<1x32xf32>
    %c10_85 = arith.constant 10 : index
    %c32_86 = arith.constant 32 : index
    %237 = vector.load %arg3[%c10_85, %c32_86] : memref<16x64xf32, #tpu.memory_space<vmem>>, vector<1x32xf32>
    tpu.vector_store %arg3[%c10_85, %c32_86], %236 {strides = array<i32>} : memref<16x64xf32, #tpu.memory_space<vmem>>, vector<1x32xf32>,
    %238 = vector.extract_strided_slice %17 {offsets = [12, 0], sizes = [2, 128], strides = [1, 1]} : vector<16x256xf32> to vector<2x128xf32>
    %239 = vector.extract_strided_slice %17 {offsets = [2, 128], sizes = [2, 128], strides = [1, 1]} : vector<16x256xf32> to vector<2x128xf32>
    %240 = tpu.concatenate %229, %229 in 1 : vector<4x32xf32>, vector<4x32xf32> -> vector<4x64xf32>
    %cst_87 = arith.constant 0.000000e+00 : f32
    %241 = vector.broadcast %cst_87 : f32 to vector<4x64xf32>
    %242 = arith.select %31, %240, %241 : vector<4x64xi1>, vector<4x64xf32>
    %243 = tpu.concatenate %238, %239 in 0 : vector<2x128xf32>, vector<2x128xf32> -> vector<4x128xf32>
    %cst_88 = arith.constant dense<0.000000e+00> : vector<4x128xf32>
    %244 = tpu.matmul %242, %4, %cst_88 {dimension_numbers = #tpu.dot_dimension_numbers<[1], [0], [0], [1], [0, 0, 1, 1], [], []>} : vector<4x64xf32>, vector<64x128xf32>, vector<4x128xf32> -> vector<4x128xf32>
    %245 = arith.addf %243, %244 : vector<4x128xf32>
    %cst_89 = arith.constant 5.000000e-01 : f32
    %246 = vector.broadcast %cst_89 : f32 to vector<4x128xf32>
    %247 = arith.mulf %246, %245 : vector<4x128xf32>
    %248 = arith.select %23, %245, %247 : vector<4x128xi1>, vector<4x128xf32>
    %249 = math.tanh %248 : vector<4x128xf32>
    %cst_90 = arith.constant 5.000000e-01 : f32
    %250 = vector.broadcast %cst_90 : f32 to vector<4x128xf32>
    %251 = arith.mulf %250, %249 : vector<4x128xf32>
    %cst_91 = arith.constant 5.000000e-01 : f32
    %252 = vector.broadcast %cst_91 : f32 to vector<4x128xf32>
    %253 = arith.addf %251, %252 : vector<4x128xf32>
    %254 = arith.select %23, %249, %253 : vector<4x128xi1>, vector<4x128xf32>
    %255 = vector.extract_strided_slice %254 {offsets = [0, 32], sizes = [4, 32], strides = [1, 1]} : vector<4x128xf32> to vector<4x32xf32>
    %256 = arith.mulf %255, %226 : vector<4x32xf32>
    %257 = vector.extract_strided_slice %254 {offsets = [0, 0], sizes = [4, 32], strides = [1, 1]} : vector<4x128xf32> to vector<4x32xf32>
    %258 = vector.extract_strided_slice %254 {offsets = [0, 64], sizes = [4, 32], strides = [1, 1]} : vector<4x128xf32> to vector<4x32xf32>
    %259 = arith.mulf %257, %258 : vector<4x32xf32>
    %260 = arith.addf %256, %259 : vector<4x32xf32>
    %261 = vector.extract_strided_slice %254 {offsets = [0, 96], sizes = [4, 32], strides = [1, 1]} : vector<4x128xf32> to vector<4x32xf32>
    %262 = math.tanh %260 : vector<4x32xf32>
    %263 = arith.mulf %261, %262 : vector<4x32xf32>
    %264 = vector.extract_strided_slice %263 {offsets = [0, 0], sizes = [1, 32], strides = [1, 1]} : vector<4x32xf32> to vector<1x32xf32>
    %c6_92 = arith.constant 6 : index
    %c0_93 = arith.constant 0 : index
    %265 = vector.load %arg3[%c6_92, %c0_93] : memref<16x64xf32, #tpu.memory_space<vmem>>, vector<1x32xf32>
    tpu.vector_store %arg3[%c6_92, %c0_93], %264 {strides = array<i32>} : memref<16x64xf32, #tpu.memory_space<vmem>>, vector<1x32xf32>,
    %266 = vector.extract_strided_slice %263 {offsets = [2, 0], sizes = [1, 32], strides = [1, 1]} : vector<4x32xf32> to vector<1x32xf32>
    %c1_94 = arith.constant 1 : index
    %c32_95 = arith.constant 32 : index
    %267 = vector.load %arg3[%c1_94, %c32_95] : memref<16x64xf32, #tpu.memory_space<vmem>>, vector<1x32xf32>
    tpu.vector_store %arg3[%c1_94, %c32_95], %266 {strides = array<i32>} : memref<16x64xf32, #tpu.memory_space<vmem>>, vector<1x32xf32>,
    %268 = vector.extract_strided_slice %263 {offsets = [1, 0], sizes = [1, 32], strides = [1, 1]} : vector<4x32xf32> to vector<1x32xf32>
    %c14_96 = arith.constant 14 : index
    %c0_97 = arith.constant 0 : index
    %269 = vector.load %arg3[%c14_96, %c0_97] : memref<16x64xf32, #tpu.memory_space<vmem>>, vector<1x32xf32>
    tpu.vector_store %arg3[%c14_96, %c0_97], %268 {strides = array<i32>} : memref<16x64xf32, #tpu.memory_space<vmem>>, vector<1x32xf32>,
    %270 = vector.extract_strided_slice %263 {offsets = [3, 0], sizes = [1, 32], strides = [1, 1]} : vector<4x32xf32> to vector<1x32xf32>
    %c9_98 = arith.constant 9 : index
    %c32_99 = arith.constant 32 : index
    %271 = vector.load %arg3[%c9_98, %c32_99] : memref<16x64xf32, #tpu.memory_space<vmem>>, vector<1x32xf32>
    tpu.vector_store %arg3[%c9_98, %c32_99], %270 {strides = array<i32>} : memref<16x64xf32, #tpu.memory_space<vmem>>, vector<1x32xf32>,
    %272 = vector.extract_strided_slice %17 {offsets = [14, 0], sizes = [2, 128], strides = [1, 1]} : vector<16x256xf32> to vector<2x128xf32>
    %273 = vector.extract_strided_slice %17 {offsets = [0, 128], sizes = [2, 128], strides = [1, 1]} : vector<16x256xf32> to vector<2x128xf32>
    %274 = tpu.concatenate %263, %263 in 1 : vector<4x32xf32>, vector<4x32xf32> -> vector<4x64xf32>
    %cst_100 = arith.constant 0.000000e+00 : f32
    %275 = vector.broadcast %cst_100 : f32 to vector<4x64xf32>
    %276 = arith.select %31, %274, %275 : vector<4x64xi1>, vector<4x64xf32>
    %277 = tpu.concatenate %272, %273 in 0 : vector<2x128xf32>, vector<2x128xf32> -> vector<4x128xf32>
    %cst_101 = arith.constant dense<0.000000e+00> : vector<4x128xf32>
    %278 = tpu.matmul %276, %4, %cst_101 {dimension_numbers = #tpu.dot_dimension_numbers<[1], [0], [0], [1], [0, 0, 1, 1], [], []>} : vector<4x64xf32>, vector<64x128xf32>, vector<4x128xf32> -> vector<4x128xf32>
    %279 = arith.addf %277, %278 : vector<4x128xf32>
    %cst_102 = arith.constant 5.000000e-01 : f32
    %280 = vector.broadcast %cst_102 : f32 to vector<4x128xf32>
    %281 = arith.mulf %280, %279 : vector<4x128xf32>
    %282 = arith.select %23, %279, %281 : vector<4x128xi1>, vector<4x128xf32>
    %283 = math.tanh %282 : vector<4x128xf32>
    %cst_103 = arith.constant 5.000000e-01 : f32
    %284 = vector.broadcast %cst_103 : f32 to vector<4x128xf32>
    %285 = arith.mulf %284, %283 : vector<4x128xf32>
    %cst_104 = arith.constant 5.000000e-01 : f32
    %286 = vector.broadcast %cst_104 : f32 to vector<4x128xf32>
    %287 = arith.addf %285, %286 : vector<4x128xf32>
    %288 = arith.select %23, %283, %287 : vector<4x128xi1>, vector<4x128xf32>
    %289 = vector.extract_strided_slice %288 {offsets = [0, 32], sizes = [4, 32], strides = [1, 1]} : vector<4x128xf32> to vector<4x32xf32>
    %290 = arith.mulf %289, %260 : vector<4x32xf32>
    %291 = vector.extract_strided_slice %288 {offsets = [0, 0], sizes = [4, 32], strides = [1, 1]} : vector<4x128xf32> to vector<4x32xf32>
    %292 = vector.extract_strided_slice %288 {offsets = [0, 64], sizes = [4, 32], strides = [1, 1]} : vector<4x128xf32> to vector<4x32xf32>
    %293 = arith.mulf %291, %292 : vector<4x32xf32>
    %294 = arith.addf %290, %293 : vector<4x32xf32>
    %295 = vector.extract_strided_slice %288 {offsets = [0, 96], sizes = [4, 32], strides = [1, 1]} : vector<4x128xf32> to vector<4x32xf32>
    %296 = math.tanh %294 : vector<4x32xf32>
    %297 = arith.mulf %295, %296 : vector<4x32xf32>
    %298 = vector.extract_strided_slice %297 {offsets = [0, 0], sizes = [1, 32], strides = [1, 1]} : vector<4x32xf32> to vector<1x32xf32>
    %c7_105 = arith.constant 7 : index
    %c0_106 = arith.constant 0 : index
    %299 = vector.load %arg3[%c7_105, %c0_106] : memref<16x64xf32, #tpu.memory_space<vmem>>, vector<1x32xf32>
    tpu.vector_store %arg3[%c7_105, %c0_106], %298 {strides = array<i32>} : memref<16x64xf32, #tpu.memory_space<vmem>>, vector<1x32xf32>,
    %300 = vector.extract_strided_slice %297 {offsets = [2, 0], sizes = [1, 32], strides = [1, 1]} : vector<4x32xf32> to vector<1x32xf32>
    %c0_107 = arith.constant 0 : index
    %c32_108 = arith.constant 32 : index
    %301 = vector.load %arg3[%c0_107, %c32_108] : memref<16x64xf32, #tpu.memory_space<vmem>>, vector<1x32xf32>
    tpu.vector_store %arg3[%c0_107, %c32_108], %300 {strides = array<i32>} : memref<16x64xf32, #tpu.memory_space<vmem>>, vector<1x32xf32>,
    %302 = vector.extract_strided_slice %297 {offsets = [1, 0], sizes = [1, 32], strides = [1, 1]} : vector<4x32xf32> to vector<1x32xf32>
    %c15_109 = arith.constant 15 : index
    %c0_110 = arith.constant 0 : index
    %303 = vector.load %arg3[%c15_109, %c0_110] : memref<16x64xf32, #tpu.memory_space<vmem>>, vector<1x32xf32>
    tpu.vector_store %arg3[%c15_109, %c0_110], %302 {strides = array<i32>} : memref<16x64xf32, #tpu.memory_space<vmem>>, vector<1x32xf32>,
    %304 = vector.extract_strided_slice %297 {offsets = [3, 0], sizes = [1, 32], strides = [1, 1]} : vector<4x32xf32> to vector<1x32xf32>
    %c8_111 = arith.constant 8 : index
    %c32_112 = arith.constant 32 : index
    %305 = vector.load %arg3[%c8_111, %c32_112] : memref<16x64xf32, #tpu.memory_space<vmem>>, vector<1x32xf32>
    tpu.vector_store %arg3[%c8_111, %c32_112], %304 {strides = array<i32>} : memref<16x64xf32, #tpu.memory_space<vmem>>, vector<1x32xf32>,
    %c0_113 = arith.constant 0 : index
    %c0_114 = arith.constant 0 : index
    %306 = vector.load %arg3[%c0_113, %c0_114] : memref<16x64xf32, #tpu.memory_space<vmem>>, vector<16x64xf32>
    %307 = vector.shape_cast %306 : vector<16x64xf32> to vector<2x8x64xf32>
    %308 = vector.extract_strided_slice %6 {offsets = [0, 0], sizes = [64, 128], strides = [1, 1]} : vector<64x256xf32> to vector<64x128xf32>
    %cst_115 = arith.constant dense<0.000000e+00> : vector<16x128xf32>
    %309 = tpu.matmul %306, %308, %cst_115 {dimension_numbers = #tpu.dot_dimension_numbers<[1], [0], [0], [1], [0, 0, 1, 1], [], []>} : vector<16x64xf32>, vector<64x128xf32>, vector<16x128xf32> -> vector<16x128xf32>
    %310 = vector.extract_strided_slice %309 {offsets = [0, 0], sizes = [16, 64], strides = [1, 1]} : vector<16x128xf32> to vector<16x64xf32>
    %311 = math.tanh %310 : vector<16x64xf32>
    %312 = vector.broadcast %7 : vector<1x64xf32> to vector<16x64xf32>
    %313 = arith.mulf %311, %312 : vector<16x64xf32>
    %cst_116 = arith.constant dense<0.000000e+00> : vector<16xf32>
    %314 = vector.multi_reduction <add>, %313, %cst_116 [1] : vector<16x64xf32> to vector<16xf32>
    %315 = vector.shape_cast %314 : vector<16xf32> to vector<16x1xf32>
    %316 = vector.shape_cast %315 : vector<16x1xf32> to vector<2x8xf32>
    %cst_117 = arith.constant dense<0xFF800000> : vector<2xf32>
    %317 = vector.multi_reduction <maximumf>, %316, %cst_117 [1] : vector<2x8xf32> to vector<2xf32>
    %318 = vector.shape_cast %317 : vector<2xf32> to vector<2x1xf32>
    %319 = vector.broadcast %318 : vector<2x1xf32> to vector<2x8xf32>
    %320 = arith.subf %316, %319 : vector<2x8xf32>
    %321 = math.exp %320 : vector<2x8xf32>
    %cst_118 = arith.constant dense<0.000000e+00> : vector<2xf32>
    %322 = vector.multi_reduction <add>, %321, %cst_118 [1] : vector<2x8xf32> to vector<2xf32>
    %323 = vector.shape_cast %322 : vector<2xf32> to vector<2x1xf32>
    %324 = vector.broadcast %323 : vector<2x1xf32> to vector<2x8xf32>
    %325 = arith.divf %321, %324 : vector<2x8xf32>
    %326 = vector.shape_cast %325 : vector<2x8xf32> to vector<2x1x8xf32>
    "tpu.trace_start"() <{level = 10 : i32, message = "bqs,bsd->bqd"}> : () -> ()
    %cst_119 = arith.constant dense<0.000000e+00> : vector<2x1x64xf32>
    %327 = tpu.matmul %326, %307, %cst_119 {dimension_numbers = #tpu.dot_dimension_numbers<[2], [1], [1], [2], [0, 0, 0, 1, 1, 2], [0], [0]>} : vector<2x1x8xf32>, vector<2x8x64xf32>, vector<2x1x64xf32> -> vector<2x1x64xf32>
    "tpu.trace_stop"() : () -> ()
    %328 = vector.shape_cast %327 : vector<2x1x64xf32> to vector<2x64xf32>
    %329 = vector.extract_strided_slice %309 {offsets = [0, 64], sizes = [16, 64], strides = [1, 1]} : vector<16x128xf32> to vector<16x64xf32>
    %cst_120 = arith.constant dense<0.000000e+00> : vector<16x64xf32>
    %330 = tpu.matmul %1, %329, %cst_120 {dimension_numbers = #tpu.dot_dimension_numbers<[1], [0], [0], [1], [0, 0, 1, 1], [], []>} : vector<16x16xf32>, vector<16x64xf32>, vector<16x64xf32> -> vector<16x64xf32>
    %331 = vector.broadcast %8 : vector<1x64xf32> to vector<16x64xf32>
    %332 = arith.addf %330, %331 : vector<16x64xf32>
    %cst_121 = arith.constant 0.000000e+00 : f32
    %333 = vector.broadcast %cst_121 : f32 to vector<16x64xf32>
    %334 = arith.maximumf %332, %333 : vector<16x64xf32>
    %335 = vector.shape_cast %334 : vector<16x64xf32> to vector<2x8x64xf32>
    %336 = tpu.iota {dimensions = array<i32: 1>} : vector<2x8xi32>
    %cst_122 = arith.constant dense<0xFF800000> : vector<2xf32>
    %337 = vector.multi_reduction <maximumf>, %325, %cst_122 [1] : vector<2x8xf32> to vector<2xf32>
    %338 = vector.shape_cast %337 : vector<2xf32> to vector<2x1xf32>
    %339 = vector.broadcast %338 : vector<2x1xf32> to vector<2x8xf32>
    %340 = arith.cmpf oeq, %325, %339 : vector<2x8xf32>
    %c8_i32 = arith.constant 8 : i32
    %341 = vector.broadcast %c8_i32 : i32 to vector<2x8xi32>
    %342 = arith.select %340, %336, %341 : vector<2x8xi1>, vector<2x8xi32>
    %cst_123 = arith.constant dense<2147483647> : vector<2xi32>
    %343 = vector.multi_reduction <minsi>, %342, %cst_123 [1] : vector<2x8xi32> to vector<2xi32>
    %344 = vector.shape_cast %343 : vector<2xi32> to vector<2x1xi32>
    %345 = vector.broadcast %344 : vector<2x1xi32> to vector<2x8xi32>
    %346 = arith.cmpi eq, %336, %345 : vector<2x8xi32>
    %347 = arith.extui %346 : vector<2x8xi1> to vector<2x8xi32>
    %348 = arith.sitofp %347 : vector<2x8xi32> to vector<2x8xf32>
    %349 = vector.extract_strided_slice %6 {offsets = [0, 128], sizes = [64, 128], strides = [1, 1]} : vector<64x256xf32> to vector<64x128xf32>
    %cst_124 = arith.constant dense<0.000000e+00> : vector<16x128xf32>
    %350 = tpu.matmul %334, %349, %cst_124 {dimension_numbers = #tpu.dot_dimension_numbers<[1], [0], [0], [1], [0, 0, 1, 1], [], []>} : vector<16x64xf32>, vector<64x128xf32>, vector<16x128xf32> -> vector<16x128xf32>
    %351 = vector.shape_cast %350 : vector<16x128xf32> to vector<2x8x128xf32>
    %352 = vector.shape_cast %348 : vector<2x8xf32> to vector<2x1x8xf32>
    %353 = vector.extract_strided_slice %351 {offsets = [0, 0, 64], sizes = [2, 8, 64], strides = [1, 1, 1]} : vector<2x8x128xf32> to vector<2x8x64xf32>
    "tpu.trace_start"() <{level = 10 : i32, message = "bqs,bsd->bqd"}> : () -> ()
    %cst_125 = arith.constant dense<0.000000e+00> : vector<2x1x64xf32>
    %354 = tpu.matmul %352, %353, %cst_125 {dimension_numbers = #tpu.dot_dimension_numbers<[2], [1], [1], [2], [0, 0, 0, 1, 1, 2], [0], [0]>} : vector<2x1x8xf32>, vector<2x8x64xf32>, vector<2x1x64xf32> -> vector<2x1x64xf32>
    "tpu.trace_stop"() : () -> ()
    %355 = vector.shape_cast %354 : vector<2x1x64xf32> to vector<2x64xf32>
    %356 = vector.shape_cast %355 : vector<2x64xf32> to vector<2x1x64xf32>
    %357 = vector.extract_strided_slice %351 {offsets = [0, 0, 0], sizes = [2, 8, 64], strides = [1, 1, 1]} : vector<2x8x128xf32> to vector<2x8x64xf32>
    "tpu.trace_start"() <{level = 10 : i32, message = "bqd,bkd->bqk"}> : () -> ()
    %cst_126 = arith.constant dense<0.000000e+00> : vector<2x1x8xf32>
    %358 = tpu.matmul %356, %357, %cst_126 {dimension_numbers = #tpu.dot_dimension_numbers<[2], [2], [1], [1], [0, 0, 0, 1, 1, 1], [0], [0]>} : vector<2x1x64xf32>, vector<2x8x64xf32>, vector<2x1x8xf32> -> vector<2x1x8xf32>
    "tpu.trace_stop"() : () -> ()
    %359 = vector.shape_cast %358 : vector<2x1x8xf32> to vector<2x8xf32>
    %360 = vector.broadcast %344 : vector<2x1xi32> to vector<2x8xi32>
    %361 = arith.cmpi eq, %336, %360 : vector<2x8xi32>
    %cst_127 = arith.constant 0.000000e+00 : f32
    %362 = vector.broadcast %cst_127 : f32 to vector<2x8xf32>
    %363 = arith.select %361, %362, %359 : vector<2x8xi1>, vector<2x8xf32>
    %cst_128 = arith.constant dense<0xFF800000> : vector<2xf32>
    %364 = vector.multi_reduction <maximumf>, %363, %cst_128 [1] : vector<2x8xf32> to vector<2xf32>
    %365 = vector.shape_cast %364 : vector<2xf32> to vector<2x1xf32>
    %366 = vector.broadcast %365 : vector<2x1xf32> to vector<2x8xf32>
    %367 = arith.subf %363, %366 : vector<2x8xf32>
    %368 = math.exp %367 : vector<2x8xf32>
    %cst_129 = arith.constant dense<0.000000e+00> : vector<2xf32>
    %369 = vector.multi_reduction <add>, %368, %cst_129 [1] : vector<2x8xf32> to vector<2xf32>
    %370 = vector.shape_cast %369 : vector<2xf32> to vector<2x1xf32>
    %371 = vector.broadcast %370 : vector<2x1xf32> to vector<2x8xf32>
    %372 = arith.divf %368, %371 : vector<2x8xf32>
    %373 = vector.shape_cast %372 : vector<2x8xf32> to vector<2x1x8xf32>
    "tpu.trace_start"() <{level = 10 : i32, message = "bqs,bsd->bqd"}> : () -> ()
    %cst_130 = arith.constant dense<0.000000e+00> : vector<2x1x64xf32>
    %374 = tpu.matmul %373, %335, %cst_130 {dimension_numbers = #tpu.dot_dimension_numbers<[2], [1], [1], [2], [0, 0, 0, 1, 1, 2], [0], [0]>} : vector<2x1x8xf32>, vector<2x8x64xf32>, vector<2x1x64xf32> -> vector<2x1x64xf32>
    "tpu.trace_stop"() : () -> ()
    %375 = vector.shape_cast %374 : vector<2x1x64xf32> to vector<2x64xf32>
    %376 = tpu.concatenate %328, %2 in 1 : vector<2x64xf32>, vector<2x32xf32> -> vector<2x96xf32>
    %cst_131 = arith.constant dense<0.000000e+00> : vector<2x96xf32>
    %377 = tpu.matmul %376, %13, %cst_131 {dimension_numbers = #tpu.dot_dimension_numbers<[1], [0], [0], [1], [0, 0, 1, 1], [], []>} : vector<2x96xf32>, vector<96x96xf32>, vector<2x96xf32> -> vector<2x96xf32>
    %378 = math.tanh %377 : vector<2x96xf32>
    %cst_132 = arith.constant dense<0.000000e+00> : vector<2x3xf32>
    %379 = tpu.matmul %378, %14, %cst_132 {dimension_numbers = #tpu.dot_dimension_numbers<[1], [0], [0], [1], [0, 0, 1, 1], [], []>} : vector<2x96xf32>, vector<96x3xf32>, vector<2x3xf32> -> vector<2x3xf32>
    %380 = vector.broadcast %9 : vector<1x3xf32> to vector<2x3xf32>
    %381 = arith.addf %379, %380 : vector<2x3xf32>
    %cst_133 = arith.constant 5.000000e-01 : f32
    %382 = vector.broadcast %cst_133 : f32 to vector<2x3xf32>
    %383 = arith.mulf %382, %381 : vector<2x3xf32>
    %384 = math.tanh %383 : vector<2x3xf32>
    %cst_134 = arith.constant 1.000000e+00 : f32
    %385 = vector.broadcast %cst_134 : f32 to vector<2x3xf32>
    %386 = arith.addf %384, %385 : vector<2x3xf32>
    %cst_135 = arith.constant 5.000000e-01 : f32
    %387 = vector.broadcast %cst_135 : f32 to vector<2x3xf32>
    %388 = arith.mulf %387, %386 : vector<2x3xf32>
    %cst_136 = arith.constant dense<0.000000e+00> : vector<2x64xf32>
    %389 = tpu.matmul %375, %11, %cst_136 {dimension_numbers = #tpu.dot_dimension_numbers<[1], [0], [0], [1], [0, 0, 1, 1], [], []>} : vector<2x64xf32>, vector<64x64xf32>, vector<2x64xf32> -> vector<2x64xf32>
    %390 = math.tanh %389 : vector<2x64xf32>
    %cst_137 = arith.constant dense<0.000000e+00> : vector<2x6xf32>
    %391 = tpu.matmul %390, %12, %cst_137 {dimension_numbers = #tpu.dot_dimension_numbers<[1], [0], [0], [1], [0, 0, 1, 1], [], []>} : vector<2x64xf32>, vector<64x6xf32>, vector<2x6xf32> -> vector<2x6xf32>
    %392 = vector.broadcast %10 : vector<1x6xf32> to vector<2x6xf32>
    %393 = arith.addf %391, %392 : vector<2x6xf32>
    %cst_138 = arith.constant dense<0xFF800000> : vector<2xf32>
    %394 = vector.multi_reduction <maximumf>, %393, %cst_138 [1] : vector<2x6xf32> to vector<2xf32>
    %395 = vector.shape_cast %394 : vector<2xf32> to vector<2x1xf32>
    %396 = vector.broadcast %395 : vector<2x1xf32> to vector<2x6xf32>
    %397 = arith.subf %393, %396 : vector<2x6xf32>
    %398 = math.exp %397 : vector<2x6xf32>
    %cst_139 = arith.constant dense<0.000000e+00> : vector<2xf32>
    %399 = vector.multi_reduction <add>, %398, %cst_139 [1] : vector<2x6xf32> to vector<2xf32>
    %400 = vector.shape_cast %399 : vector<2xf32> to vector<2x1xf32>
    %401 = math.log %400 : vector<2x1xf32>
    %402 = vector.broadcast %401 : vector<2x1xf32> to vector<2x6xf32>
    %403 = arith.subf %397, %402 : vector<2x6xf32>
    %cst_140 = arith.constant 0.000000e+00 : f32
    %404 = vector.broadcast %cst_140 : f32 to vector<2x5xf32>
    %cst_141 = arith.constant 0.000000e+00 : f32
    %405 = vector.broadcast %cst_141 : f32 to vector<2x2xf32>
    %cst_142 = arith.constant 0.000000e+00 : f32
    %406 = vector.broadcast %cst_142 : f32 to vector<2x96xf32>
    %407 = tpu.concatenate %388, %404, %403, %405, %325, %372, %406 in 1 : vector<2x3xf32>, vector<2x5xf32>, vector<2x6xf32>, vector<2x2xf32>, vector<2x8xf32>, vector<2x8xf32>, vector<2x96xf32> -> vector<2x128xf32>
    %c0_143 = arith.constant 0 : index
    %c0_144 = arith.constant 0 : index
    %408 = vector.load %arg2[%c0_143, %c0_144] : memref<2x128xf32, #tpu.memory_space<vmem>>, vector<2x128xf32>
    tpu.vector_store %arg2[%c0_143, %c0_144], %407 {strides = array<i32>} : memref<2x128xf32, #tpu.memory_space<vmem>>, vector<2x128xf32>,
    return
  }
}

</mosaic_0001>

<llo_original>
// kernel: atlsgcn_forward.1
$region0: #{atlsgcn_forward.1}
  #allocation0 [shape = 'u32[]', space=smem, size = 0x4, offset = 0x4, fixed_abs, tag = 'smem constant byte address 0x4 - core index']
  #allocation1 [shape = 'u32[144,128]{1,0:T(1,128)}', space=vmem, size = 0x12000, scoped, tag = 'internal scratch']
  #allocation2 [shape = 'f32[16,64]{1,0:T(8,128)}', space=vmem, size = 0x2000, scoped, tag = 'scratch operand']
  %s0 = inlined_call_operand.vmem [shape: f32[16,128], index: 0, kind: input, shape index: {}]
  %s1 = inlined_call_operand.hbm [shape: f32[368,256], index: 1, kind: input, shape index: {}]
  %s2 = inlined_call_operand.vmem [shape: f32[2,128], index: 2, kind: output, shape index: {}]
  %s3 = sld [smem:[#allocation0]]
  $region22: #{atlsgcn_forward.1} parent=0
    _
  %s5 = ssub.s32 1, %s3
  %s6 = scalar_select 0, %s5, %s3
  $region1: #{atlsgcn_forward.1} parent=0
    #allocation3 [shape = 'u8[376832]{0}', space=vmem, size = 0x5c000, scoped, tag = 'input window, operand 1, single buffered']
    #allocation4 [shape = 's32[1]{0}', space=sflag, size = 0x4, scoped, tag = 'scoped memory for atlsgcn_forward.1']
    %7 = vsyncpa [#allocation4], 0
    // Predicated region
    $region2: #{atlsgcn_forward.1} parent=1 // pred_check
      _
    $region3: #{atlsgcn_forward.1} parent=1 // pred_check_branch
      %9 = sbr.rel (0) target = $region5
    $region4: #{atlsgcn_forward.1} parent=1 // pred_region
      _
    $region5: #{atlsgcn_forward.1} parent=1 // pred_fallthru
      _
    // Predicated region
    $region6: #{atlsgcn_forward.1} parent=1 // pred_check
      _
    $region7: #{atlsgcn_forward.1} parent=1 // pred_check_branch
      %11 = sbr.rel (0) target = $region9
    $region8: #{atlsgcn_forward.1} parent=1 // pred_region
      %s13 = ssub.s32 11776, 11776
      %14 = vsyncadd [#allocation4], %s13
      %s15 = sshll.u32 [#allocation3], 4
      %s16 = int_to_ptr.vmem [resolvable:$true] %s15
      %21 = dma.hbm_to_vmem [thread:$0]  %s1, 11776, %s16, [#allocation4], 256, 256, 16
    $region9: #{atlsgcn_forward.1} parent=1 // pred_fallthru
      _
    // Predicated region
    $region10: #{atlsgcn_forward.1} parent=1 // pred_check
      _
    $region11: #{atlsgcn_forward.1} parent=1 // pred_check_branch
      %23 = sbr.rel (0) target = $region13
    $region12: #{atlsgcn_forward.1} parent=1 // pred_region
      %24 = dma.done [#allocation4], 11776
    $region13: #{atlsgcn_forward.1} parent=1 // pred_fallthru
      _
    %v25 = vld [vmem:[%s0] sm:$0xff]
    %v26 = vld [vmem:[%s0 + $0x8] sm:$0xff]
    %v27 = vld [vmem:[%s0] sm:$0x3]
    %v28 = vld [vmem:[#allocation3] sm:$0xff]
    %v29 = vld [vmem:[#allocation3 + $0x8] sm:$0xff]
    %v30 = vld [vmem:[#allocation3 + $0x10] sm:$0xff]
    %v31 = vld [vmem:[#allocation3 + $0x18] sm:$0xff]
    %v32 = vld [vmem:[#allocation3 + $0x20] sm:$0xff]
    %v33 = vld [vmem:[#allocation3 + $0x28] sm:$0xff]
    %v34 = vld [vmem:[#allocation3 + $0x30] sm:$0xff]
    %v35 = vld [vmem:[#allocation3 + $0x38] sm:$0xff]
    %v36 = vld [vmem:[#allocation3 + $0x40] sm:$0xff]
    %v37 = vld [vmem:[#allocation3 + $0x48] sm:$0xff]
    %v38 = vld [vmem:[#allocation3 + $0x50] sm:$0xff]
    %v39 = vld [vmem:[#allocation3 + $0x58] sm:$0xff]
    %v40 = vld [vmem:[#allocation3 + $0x60] sm:$0xff]
    %v41 = vld [vmem:[#allocation3 + $0x68] sm:$0xff]
    %v42 = vld [vmem:[#allocation3 + $0x70] sm:$0xff]
    %v43 = vld [vmem:[#allocation3 + $0x78] sm:$0xff]
    %v44 = vld [vmem:[#allocation3 + $0x80] sm:$0xff]
    %v45 = vld [vmem:[#allocation3 + $0x90] sm:$0xff]
    %v46 = vld [vmem:[#allocation3 + $0xa0] sm:$0xff]
    %v47 = vld [vmem:[#allocation3 + $0xb0] sm:$0xff]
    %v48 = vld [vmem:[#allocation3 + $0xc0] sm:$0xff]
    %v49 = vld [vmem:[#allocation3 + $0xd0] sm:$0xff]
    %v50 = vld [vmem:[#allocation3 + $0xe0] sm:$0xff]
    %v51 = vld [vmem:[#allocation3 + $0xf0] sm:$0xff]
    %s52 = scalar_lea.vmem [#allocation3], 256
    %v53 = vld [vmem:[%s52] ss:$8 sm:$0x3]
    %v54 = vld [vmem:[#allocation3 + $0x110] sm:$0xff]
    %v55 = vld [vmem:[#allocation3 + $0x118] sm:$0xff]
    %v56 = vld [vmem:[#allocation3 + $0x120] sm:$0xff]
    %v57 = vld [vmem:[#allocation3 + $0x128] sm:$0xff]
    %v58 = vld [vmem:[#allocation3 + $0x130] sm:$0xff]
    %v59 = vld [vmem:[#allocation3 + $0x138] sm:$0xff]
    %v60 = vld [vmem:[#allocation3 + $0x140] sm:$0xff]
    %v61 = vld [vmem:[#allocation3 + $0x148] sm:$0xff]
    %v62 = vld [vmem:[#allocation3 + $0x150] sm:$0xff]
    %v63 = vld [vmem:[#allocation3 + $0x158] sm:$0xff]
    %v64 = vld [vmem:[#allocation3 + $0x160] sm:$0xff]
    %v65 = vld [vmem:[#allocation3 + $0x168] sm:$0xff]
    %v66 = vld [vmem:[#allocation3 + $0x170] sm:$0xff]
    %v67 = vld [vmem:[#allocation3 + $0x178] sm:$0xff]
    %v68 = vld [vmem:[#allocation3 + $0x180] sm:$0xff]
    %v69 = vld [vmem:[#allocation3 + $0x188] sm:$0xff]
    %v70 = vld [vmem:[#allocation3 + $0x190] ss:$0 sm:$0xff]
    %v71 = vld [vmem:[#allocation3 + $0x198] ss:$0 sm:$0xff]
    %v72 = vld [vmem:[#allocation3 + $0x1a0] sm:$0xff]
    %v73 = vld [vmem:[#allocation3 + $0x1b0] sm:$0xff]
    %v74 = vld [vmem:[#allocation3 + $0x1c0] sm:$0xff]
    %v75 = vld [vmem:[#allocation3 + $0x1d0] sm:$0xff]
    %v76 = vld [vmem:[#allocation3 + $0x1e0] sm:$0xff]
    %v77 = vld [vmem:[#allocation3 + $0x1f0] sm:$0xff]
    %v78 = vld [vmem:[#allocation3 + $0x200] sm:$0xff]
    %v79 = vld [vmem:[#allocation3 + $0x210] sm:$0xff]
    %v80 = vld [vmem:[#allocation3 + $0x220] sm:$0xff]
    %v81 = vld [vmem:[#allocation3 + $0x230] sm:$0xff]
    %v82 = vld [vmem:[#allocation3 + $0x240] sm:$0xff]
    %v83 = vld [vmem:[#allocation3 + $0x250] sm:$0xff]
    %v84 = vld [vmem:[#allocation3 + $0x260] sm:$0xff]
    %v85 = vld [vmem:[#allocation3 + $0x270] sm:$0xff]
    %v86 = vld [vmem:[#allocation3 + $0x280] sm:$0xff]
    %v87 = vld [vmem:[#allocation3 + $0x290] sm:$0xff]
    %v88 = vld [vmem:[#allocation3 + $0x2a0] sm:$0xff]
    %v89 = vld [vmem:[#allocation3 + $0x2b0] sm:$0xff]
    %v90 = vld [vmem:[#allocation3 + $0x2c0] sm:$0xff]
    %v91 = vld [vmem:[#allocation3 + $0x2d0] sm:$0xff]
    %v93 = vlaneseq
    %v94 = vshrl.u32 %v93, 7
    %v95 = vsub.s32 0, %v94
    %v96 = vrot.slane %v53, %v95
    %v97 = vlaneseq
    %v98 = vshrl.u32 %v97, 7
    %v99 = vsub.s32 1, %v98
    %v100 = vrot.slane %v53, %v99
    %vm103 = vcmask 523264
    %v105 = vsel %vm103, %v25, 0
    %v108 = vsel %vm103, %v26, 0
    %110 = vmatprep.subr.mxu0 %v29
    %111 = vmatpush1.msra.mxu0 %v28
    %112 = vmatprep.subr.mxu0 %v31
    %113 = vmatpush1.msra.mxu0 %v30
    %114 = vmatprep.subr.mxu0 %v33
    %115 = vmatpush1.msra.mxu0 %v32
    %116 = vmatprep.subr.mxu0 %v35
    %117 = vmatpush1.msra.mxu0 %v34
    %118 = vmatprep.subr.mxu0 %v37
    %119 = vmatpush1.msra.mxu0 %v36
    %120 = vmatprep.subr.mxu0 %v39
    %121 = vmatpush1.msra.mxu0 %v38
    %122 = vmatprep.subr.mxu0 %v41
    %123 = vmatpush1.msra.mxu0 %v40
    %124 = vmatprep.subr.mxu0 %v43
    %125 = vmatpush1.msra.mxu0 %v42
    %126 = vmatprep.subr.mxu0 0.0
    %127 = vmatpush1.msra.mxu0 0.0
    %128 = vmatprep.subr.mxu0 0.0
    %129 = vmatpush1.msra.mxu0 0.0
    %130 = vmatprep.subr.mxu0 0.0
    %131 = vmatpush1.msra.mxu0 0.0
    %132 = vmatprep.subr.mxu0 0.0
    %133 = vmatpush1.msra.mxu0 0.0
    %134 = vmatprep.subr.mxu0 0.0
    %135 = vmatpush1.msra.mxu0 0.0
    %136 = vmatprep.subr.mxu0 0.0
    %137 = vmatpush1.msra.mxu0 0.0
    %138 = vmatprep.subr.mxu0 0.0
    %139 = vmatpush1.msra.mxu0 0.0
    %140 = vmatprep.subr.mxu0 0.0
    %141 = vmatpush1.msra.mxu0 0.0
    %142 = vmatprep.subr.mxu0 0.0
    %143 = vmatpush1.msra.mxu0 0.0
    %144 = vmatprep.subr.mxu0 0.0
    %145 = vmatpush1.msra.mxu0 0.0
    %146 = vmatprep.subr.mxu0 0.0
    %147 = vmatpush1.msra.mxu0 0.0
    %148 = vmatprep.subr.mxu0 0.0
    %149 = vmatpush1.msra.mxu0 0.0
    %150 = vmatprep.subr.mxu0 0.0
    %151 = vmatpush1.msra.mxu0 0.0
    %152 = vmatprep.subr.mxu0 0.0
    %153 = vmatpush1.msra.mxu0 0.0
    %154 = vmatprep.subr.mxu0 0.0
    %155 = vmatpush1.msra.mxu0 0.0
    %156 = vmatprep.subr.mxu0 0.0
    %157 = vmatpush1.msra.mxu0 0.0
    %158 = vmatprep.subr.mxu0 0.0
    %159 = vmatpush1.msra.mxu0 0.0
    %160 = vmatprep.subr.mxu0 0.0
    %161 = vmatpush1.msra.mxu0 0.0
    %162 = vmatprep.subr.mxu0 0.0
    %163 = vmatpush1.msra.mxu0 0.0
    %164 = vmatprep.subr.mxu0 0.0
    %165 = vmatpush1.msra.mxu0 0.0
    %166 = vmatprep.subr.mxu0 0.0
    %167 = vmatpush1.msra.mxu0 0.0
    %168 = vmatprep.subr.mxu0 0.0
    %169 = vmatpush1.msra.mxu0 0.0
    %170 = vmatprep.subr.mxu0 0.0
    %171 = vmatpush1.msra.mxu0 0.0
    %172 = vmatprep.subr.mxu0 0.0
    %173 = vmatpush1.msra.mxu0 0.0
    %174 = vmatprep.mubr.f32.mxu0 0.0
    %175 = vmatmul.mubr.f32.gmra.mrb[0].mxu0 %v105
    %v176 = vpop.f32.mrb[0].mxu0
    %v177 = vadd.f32 %v96, %v176
    %v178 = vpop.f32.mrb[0].mxu0
    %v179 = vadd.f32 %v100, %v178
    %180 = vmatprep.mubr.f32.mxu0 0.0
    %181 = vmatmul.mubr.f32.gmra.mrb[0].mxu0 %v108
    %v182 = vpop.f32.mrb[0].mxu0
    %v183 = vadd.f32 %v96, %v182
    %v184 = vpop.f32.mrb[0].mxu0
    %v185 = vadd.f32 %v100, %v184
    %186 = vdwg.mxu0
    %v187 = vlaneseq
    %v188 = vand.u32 %v187, 127
    %vm189 = vcmp.ge.s32.totalorder %v188, 64
    %vm190 = vcmp.lt.s32.totalorder %v188, 96
    %vm191 = vmand %vm189, %vm190
    %v192 = vlaneseq
    %v193 = vshrl.u32 %v192, 7
    %vm194 = vcmp.lt.s32.totalorder %v193, 2
    %vm195 = vcmp.lt.s32.totalorder %v188, 32
    %vm196 = vmxor %vm194, %vm195
    %vm197 = vmxor %vm196, 1
    %v199 = vrot.slane %v185, 4
    %vm201 = vcmask 1041408
    %v202 = vsel %vm201, %v177, %v199
    %v204 = vsel %vm103, 0.0, 0
    %206 = vmatprep.subr.mxu0 0.0
    %207 = vmatpush1.msra.mxu0 %v44
    %208 = vmatprep.subr.mxu0 0.0
    %209 = vmatpush1.msra.mxu0 %v45
    %210 = vmatprep.subr.mxu0 0.0
    %211 = vmatpush1.msra.mxu0 %v46
    %212 = vmatprep.subr.mxu0 0.0
    %213 = vmatpush1.msra.mxu0 %v47
    %214 = vmatprep.subr.mxu0 0.0
    %215 = vmatpush1.msra.mxu0 %v48
    %216 = vmatprep.subr.mxu0 0.0
    %217 = vmatpush1.msra.mxu0 %v49
    %218 = vmatprep.subr.mxu0 0.0
    %219 = vmatpush1.msra.mxu0 %v50
    %220 = vmatprep.subr.mxu0 0.0
    %221 = vmatpush1.msra.mxu0 %v51
    %222 = vmatprep.subr.mxu0 0.0
    %223 = vmatpush1.msra.mxu0 0.0
    %224 = vmatprep.subr.mxu0 0.0
    %225 = vmatpush1.msra.mxu0 0.0
    %226 = vmatprep.subr.mxu0 0.0
    %227 = vmatpush1.msra.mxu0 0.0
    %228 = vmatprep.subr.mxu0 0.0
    %229 = vmatpush1.msra.mxu0 0.0
    %230 = vmatprep.subr.mxu0 0.0
    %231 = vmatpush1.msra.mxu0 0.0
    %232 = vmatprep.subr.mxu0 0.0
    %233 = vmatpush1.msra.mxu0 0.0
    %234 = vmatprep.subr.mxu0 0.0
    %235 = vmatpush1.msra.mxu0 0.0
    %236 = vmatprep.subr.mxu0 0.0
    %237 = vmatpush1.msra.mxu0 0.0
    %238 = vmatprep.subr.mxu0 0.0
    %239 = vmatpush1.msra.mxu0 0.0
    %240 = vmatprep.subr.mxu0 0.0
    %241 = vmatpush1.msra.mxu0 0.0
    %242 = vmatprep.subr.mxu0 0.0
    %243 = vmatpush1.msra.mxu0 0.0
    %244 = vmatprep.subr.mxu0 0.0
    %245 = vmatpush1.msra.mxu0 0.0
    %246 = vmatprep.subr.mxu0 0.0
    %247 = vmatpush1.msra.mxu0 0.0
    %248 = vmatprep.subr.mxu0 0.0
    %249 = vmatpush1.msra.mxu0 0.0
    %250 = vmatprep.subr.mxu0 0.0
    %251 = vmatpush1.msra.mxu0 0.0
    %252 = vmatprep.subr.mxu0 0.0
    %253 = vmatpush1.msra.mxu0 0.0
    %254 = vmatprep.subr.mxu0 0.0
    %255 = vmatpush1.msra.mxu0 0.0
    %256 = vmatprep.subr.mxu0 0.0
    %257 = vmatpush1.msra.mxu0 0.0
    %258 = vmatprep.subr.mxu0 0.0
    %259 = vmatpush1.msra.mxu0 0.0
    %260 = vmatprep.subr.mxu0 0.0
    %261 = vmatpush1.msra.mxu0 0.0
    %262 = vmatprep.subr.mxu0 0.0
    %263 = vmatpush1.msra.mxu0 0.0
    %264 = vmatprep.subr.mxu0 0.0
    %265 = vmatpush1.msra.mxu0 0.0
    %266 = vmatprep.subr.mxu0 0.0
    %267 = vmatpush1.msra.mxu0 0.0
    %268 = vmatprep.subr.mxu0 0.0
    %269 = vmatpush1.msra.mxu0 0.0
    %270 = vmatprep.mubr.f32.mxu0 0.0
    %271 = vmatmul.mubr.f32.gmra.mrb[0].mxu0 %v204
    %v272 = vpop.f32.mrb[0].mxu0
    %v273 = vadd.f32 0.0, %v272
    %v274 = vpop.f32.mrb[0].mxu0
    %275 = vdwg.mxu0
    %v276 = vadd.f32 %v202, %v273
    %v277 = vmul.f32 %v276, 0.5
    %v278 = vsel %vm191, %v276, %v277
    %v279 = vtanh.pop %v278
    %v280 = vmul.f32 %v279, 0.5
    %v281 = vadd.f32 %v280, 0.5
    %v282 = vsel %vm191, %v279, %v281
    %v283 = vmul.f32 %v282, 0.0
    %285 = vrot.lane.b32.xlu0 %v282, 64
    %v286 = vpop.permute.xlu0 %285
    %v288 = vmul.f32 %v282, %v286
    %290 = vrot.lane.b32.xlu0 %v288, 32
    %v291 = vpop.permute.xlu0 %290
    %v293 = vadd.f32 %v283, %v291
    %v294 = vtanh.pop %v293
    %296 = vrot.lane.b32.xlu0 %v294, 64
    %v297 = vpop.permute.xlu0 %296
    %v299 = vmul.f32 %v282, %v297
    %301 = vrot.lane.b32.xlu0 %v299, 32
    %v302 = vpop.permute.xlu0 %301
    %vm304 = vcmask 253952
    %305 = vst.msk [vmem:[#allocation2] sm:$0x1] %vm304, %v302
    %306 = vrot.lane.b32.xlu0 %v299, 64
    %v307 = vpop.permute.xlu0 %306
    %vm309 = vcmask 518402
    %310 = vst.msk [vmem:[#allocation2 + $0x5] sm:$0x4] %vm309, %v307
    %vm311 = vcmask 254977
    %312 = vst.msk [vmem:[#allocation2 + $0x7] sm:$0x2] %vm311, %v302
    %vm313 = vcmask 519427
    %314 = vst.msk [vmem:[#allocation2 + $0xc] sm:$0x8] %vm313, %v307
    %vm315 = vcmask 261120
    %v316 = vsel %vm315, %v302, %v307
    %v317 = vsel %vm197, %v316, 0.0
    %v319 = vrot.slane %v177, 2
    %v321 = vrot.slane %v185, 2
    %v323 = vsel %vm201, %v319, %v321
    %v325 = vsel %vm103, %v317, 0
    %327 = vmatprep.subr.mxu0 0.0
    %328 = vmatpush1.msra.mxu0 %v44
    %329 = vmatprep.subr.mxu0 0.0
    %330 = vmatpush1.msra.mxu0 %v45
    %331 = vmatprep.subr.mxu0 0.0
    %332 = vmatpush1.msra.mxu0 %v46
    %333 = vmatprep.subr.mxu0 0.0
    %334 = vmatpush1.msra.mxu0 %v47
    %335 = vmatprep.subr.mxu0 0.0
    %336 = vmatpush1.msra.mxu0 %v48
    %337 = vmatprep.subr.mxu0 0.0
    %338 = vmatpush1.msra.mxu0 %v49
    %339 = vmatprep.subr.mxu0 0.0
    %340 = vmatpush1.msra.mxu0 %v50
    %341 = vmatprep.subr.mxu0 0.0
    %342 = vmatpush1.msra.mxu0 %v51
    %343 = vmatprep.subr.mxu0 0.0
    %344 = vmatpush1.msra.mxu0 0.0
    %345 = vmatprep.subr.mxu0 0.0
    %346 = vmatpush1.msra.mxu0 0.0
    %347 = vmatprep.subr.mxu0 0.0
    %348 = vmatpush1.msra.mxu0 0.0
    %349 = vmatprep.subr.mxu0 0.0
    %350 = vmatpush1.msra.mxu0 0.0
    %351 = vmatprep.subr.mxu0 0.0
    %352 = vmatpush1.msra.mxu0 0.0
    %353 = vmatprep.subr.mxu0 0.0
    %354 = vmatpush1.msra.mxu0 0.0
    %355 = vmatprep.subr.mxu0 0.0
    %356 = vmatpush1.msra.mxu0 0.0
    %357 = vmatprep.subr.mxu0 0.0
    %358 = vmatpush1.msra.mxu0 0.0
    %359 = vmatprep.subr.mxu0 0.0
    %360 = vmatpush1.msra.mxu0 0.0
    %361 = vmatprep.subr.mxu0 0.0
    %362 = vmatpush1.msra.mxu0 0.0
    %363 = vmatprep.subr.mxu0 0.0
    %364 = vmatpush1.msra.mxu0 0.0
    %365 = vmatprep.subr.mxu0 0.0
    %366 = vmatpush1.msra.mxu0 0.0
    %367 = vmatprep.subr.mxu0 0.0
    %368 = vmatpush1.msra.mxu0 0.0
    %369 = vmatprep.subr.mxu0 0.0
    %370 = vmatpush1.msra.mxu0 0.0
    %371 = vmatprep.subr.mxu0 0.0
    %372 = vmatpush1.msra.mxu0 0.0
    %373 = vmatprep.subr.mxu0 0.0
    %374 = vmatpush1.msra.mxu0 0.0
    %375 = vmatprep.subr.mxu0 0.0
    %376 = vmatpush1.msra.mxu0 0.0
    %377 = vmatprep.subr.mxu0 0.0
    %378 = vmatpush1.msra.mxu0 0.0
    %379 = vmatprep.subr.mxu0 0.0
    %380 = vmatpush1.msra.mxu0 0.0
    %381 = vmatprep.subr.mxu0 0.0
    %382 = vmatpush1.msra.mxu0 0.0
    %383 = vmatprep.subr.mxu0 0.0
    %384 = vmatpush1.msra.mxu0 0.0
    %385 = vmatprep.subr.mxu0 0.0
    %386 = vmatpush1.msra.mxu0 0.0
    %387 = vmatprep.subr.mxu0 0.0
    %388 = vmatpush1.msra.mxu0 0.0
    %389 = vmatprep.subr.mxu0 0.0
    %390 = vmatpush1.msra.mxu0 0.0
    %391 = vmatprep.mubr.f32.mxu0 0.0
    %392 = vmatmul.mubr.f32.gmra.mrb[0].mxu0 %v325
    %v393 = vpop.f32.mrb[0].mxu0
    %v394 = vadd.f32 0.0, %v393
    %v395 = vpop.f32.mrb[0].mxu0
    %396 = vdwg.mxu0
    %v397 = vadd.f32 %v323, %v394
    %v398 = vmul.f32 %v397, 0.5
    %v399 = vsel %vm191, %v397, %v398
    %v400 = vtanh.pop %v399
    %v401 = vmul.f32 %v400, 0.5
    %v402 = vadd.f32 %v401, 0.5
    %v403 = vsel %vm191, %v400, %v402
    %v404 = vmul.f32 %v403, %v293
    %406 = vrot.lane.b32.xlu0 %v403, 64
    %v407 = vpop.permute.xlu0 %406
    %v409 = vmul.f32 %v403, %v407
    %411 = vrot.lane.b32.xlu0 %v409, 32
    %v412 = vpop.permute.xlu0 %411
    %v414 = vadd.f32 %v404, %v412
    %v415 = vtanh.pop %v414
    %417 = vrot.lane.b32.xlu0 %v415, 64
    %v418 = vpop.permute.xlu0 %417
    %v420 = vmul.f32 %v403, %v418
    %422 = vrot.lane.b32.xlu0 %v420, 32
    %v423 = vpop.permute.xlu0 %422
    %425 = vst.msk [vmem:[#allocation2 + $0x1] sm:$0x1] %vm304, %v423
    %426 = vrot.lane.b32.xlu0 %v420, 64
    %v427 = vpop.permute.xlu0 %426
    %429 = vst.msk [vmem:[#allocation2 + $0x4] sm:$0x4] %vm309, %v427
    %430 = vst.msk [vmem:[#allocation2 + $0x8] sm:$0x2] %vm311, %v423
    %431 = vst.msk [vmem:[#allocation2 + $0xb] sm:$0x8] %vm313, %v427
    %v432 = vsel %vm315, %v423, %v427
    %v433 = vsel %vm197, %v432, 0.0
    %v434 = vrot.slane %v177, 4
    %v436 = vsel %vm201, %v434, %v185
    %v438 = vsel %vm103, %v433, 0
    %440 = vmatprep.subr.mxu0 0.0
    %441 = vmatpush1.msra.mxu0 %v44
    %442 = vmatprep.subr.mxu0 0.0
    %443 = vmatpush1.msra.mxu0 %v45
    %444 = vmatprep.subr.mxu0 0.0
    %445 = vmatpush1.msra.mxu0 %v46
    %446 = vmatprep.subr.mxu0 0.0
    %447 = vmatpush1.msra.mxu0 %v47
    %448 = vmatprep.subr.mxu0 0.0
    %449 = vmatpush1.msra.mxu0 %v48
    %450 = vmatprep.subr.mxu0 0.0
    %451 = vmatpush1.msra.mxu0 %v49
    %452 = vmatprep.subr.mxu0 0.0
    %453 = vmatpush1.msra.mxu0 %v50
    %454 = vmatprep.subr.mxu0 0.0
    %455 = vmatpush1.msra.mxu0 %v51
    %456 = vmatprep.subr.mxu0 0.0
    %457 = vmatpush1.msra.mxu0 0.0
    %458 = vmatprep.subr.mxu0 0.0
    %459 = vmatpush1.msra.mxu0 0.0
    %460 = vmatprep.subr.mxu0 0.0
    %461 = vmatpush1.msra.mxu0 0.0
    %462 = vmatprep.subr.mxu0 0.0
    %463 = vmatpush1.msra.mxu0 0.0
    %464 = vmatprep.subr.mxu0 0.0
    %465 = vmatpush1.msra.mxu0 0.0
    %466 = vmatprep.subr.mxu0 0.0
    %467 = vmatpush1.msra.mxu0 0.0
    %468 = vmatprep.subr.mxu0 0.0
    %469 = vmatpush1.msra.mxu0 0.0
    %470 = vmatprep.subr.mxu0 0.0
    %471 = vmatpush1.msra.mxu0 0.0
    %472 = vmatprep.subr.mxu0 0.0
    %473 = vmatpush1.msra.mxu0 0.0
    %474 = vmatprep.subr.mxu0 0.0
    %475 = vmatpush1.msra.mxu0 0.0
    %476 = vmatprep.subr.mxu0 0.0
    %477 = vmatpush1.msra.mxu0 0.0
    %478 = vmatprep.subr.mxu0 0.0
    %479 = vmatpush1.msra.mxu0 0.0
    %480 = vmatprep.subr.mxu0 0.0
    %481 = vmatpush1.msra.mxu0 0.0
    %482 = vmatprep.subr.mxu0 0.0
    %483 = vmatpush1.msra.mxu0 0.0
    %484 = vmatprep.subr.mxu0 0.0
    %485 = vmatpush1.msra.mxu0 0.0
    %486 = vmatprep.subr.mxu0 0.0
    %487 = vmatpush1.msra.mxu0 0.0
    %488 = vmatprep.subr.mxu0 0.0
    %489 = vmatpush1.msra.mxu0 0.0
    %490 = vmatprep.subr.mxu0 0.0
    %491 = vmatpush1.msra.mxu0 0.0
    %492 = vmatprep.subr.mxu0 0.0
    %493 = vmatpush1.msra.mxu0 0.0
    %494 = vmatprep.subr.mxu0 0.0
    %495 = vmatpush1.msra.mxu0 0.0
    %496 = vmatprep.subr.mxu0 0.0
    %497 = vmatpush1.msra.mxu0 0.0
    %498 = vmatprep.subr.mxu0 0.0
    %499 = vmatpush1.msra.mxu0 0.0
    %500 = vmatprep.subr.mxu0 0.0
    %501 = vmatpush1.msra.mxu0 0.0
    %502 = vmatprep.subr.mxu0 0.0
    %503 = vmatpush1.msra.mxu0 0.0
    %504 = vmatprep.mubr.f32.mxu0 0.0
    %505 = vmatmul.mubr.f32.gmra.mrb[0].mxu0 %v438
    %v506 = vpop.f32.mrb[0].mxu0
    %v507 = vadd.f32 0.0, %v506
    %v508 = vpop.f32.mrb[0].mxu0
    %509 = vdwg.mxu0
    %v510 = vadd.f32 %v436, %v507
    %v511 = vmul.f32 %v510, 0.5
    %v512 = vsel %vm191, %v510, %v511
    %v513 = vtanh.pop %v512
    %v514 = vmul.f32 %v513, 0.5
    %v515 = vadd.f32 %v514, 0.5
    %v516 = vsel %vm191, %v513, %v515
    %v517 = vmul.f32 %v516, %v414
    %519 = vrot.lane.b32.xlu0 %v516, 64
    %v520 = vpop.permute.xlu0 %519
    %v522 = vmul.f32 %v516, %v520
    %524 = vrot.lane.b32.xlu0 %v522, 32
    %v525 = vpop.permute.xlu0 %524
    %v527 = vadd.f32 %v517, %v525
    %v528 = vtanh.pop %v527
    %530 = vrot.lane.b32.xlu0 %v528, 64
    %v531 = vpop.permute.xlu0 %530
    %v533 = vmul.f32 %v516, %v531
    %535 = vrot.lane.b32.xlu0 %v533, 32
    %v536 = vpop.permute.xlu0 %535
    %538 = vst.msk [vmem:[#allocation2 + $0x2] sm:$0x1] %vm304, %v536
    %539 = vrot.lane.b32.xlu0 %v533, 64
    %v540 = vpop.permute.xlu0 %539
    %542 = vst.msk [vmem:[#allocation2 + $0x3] sm:$0x4] %vm309, %v540
    %543 = vst.msk [vmem:[#allocation2 + $0x9] sm:$0x2] %vm311, %v536
    %544 = vst.msk [vmem:[#allocation2 + $0xa] sm:$0x8] %vm313, %v540
    %v545 = vsel %vm315, %v536, %v540
    %v546 = vsel %vm197, %v545, 0.0
    %v547 = vrot.slane %v177, 6
    %v549 = vrot.slane %v185, 6
    %v551 = vsel %vm201, %v547, %v549
    %v553 = vsel %vm103, %v546, 0
    %555 = vmatprep.subr.mxu0 0.0
    %556 = vmatpush1.msra.mxu0 %v44
    %557 = vmatprep.subr.mxu0 0.0
    %558 = vmatpush1.msra.mxu0 %v45
    %559 = vmatprep.subr.mxu0 0.0
    %560 = vmatpush1.msra.mxu0 %v46
    %561 = vmatprep.subr.mxu0 0.0
    %562 = vmatpush1.msra.mxu0 %v47
    %563 = vmatprep.subr.mxu0 0.0
    %564 = vmatpush1.msra.mxu0 %v48
    %565 = vmatprep.subr.mxu0 0.0
    %566 = vmatpush1.msra.mxu0 %v49
    %567 = vmatprep.subr.mxu0 0.0
    %568 = vmatpush1.msra.mxu0 %v50
    %569 = vmatprep.subr.mxu0 0.0
    %570 = vmatpush1.msra.mxu0 %v51
    %571 = vmatprep.subr.mxu0 0.0
    %572 = vmatpush1.msra.mxu0 0.0
    %573 = vmatprep.subr.mxu0 0.0
    %574 = vmatpush1.msra.mxu0 0.0
    %575 = vmatprep.subr.mxu0 0.0
    %576 = vmatpush1.msra.mxu0 0.0
    %577 = vmatprep.subr.mxu0 0.0
    %578 = vmatpush1.msra.mxu0 0.0
    %579 = vmatprep.subr.mxu0 0.0
    %580 = vmatpush1.msra.mxu0 0.0
    %581 = vmatprep.subr.mxu0 0.0
    %582 = vmatpush1.msra.mxu0 0.0
    %583 = vmatprep.subr.mxu0 0.0
    %584 = vmatpush1.msra.mxu0 0.0
    %585 = vmatprep.subr.mxu0 0.0
    %586 = vmatpush1.msra.mxu0 0.0
    %587 = vmatprep.subr.mxu0 0.0
    %588 = vmatpush1.msra.mxu0 0.0
    %589 = vmatprep.subr.mxu0 0.0
    %590 = vmatpush1.msra.mxu0 0.0
    %591 = vmatprep.subr.mxu0 0.0
    %592 = vmatpush1.msra.mxu0 0.0
    %593 = vmatprep.subr.mxu0 0.0
    %594 = vmatpush1.msra.mxu0 0.0
    %595 = vmatprep.subr.mxu0 0.0
    %596 = vmatpush1.msra.mxu0 0.0
    %597 = vmatprep.subr.mxu0 0.0
    %598 = vmatpush1.msra.mxu0 0.0
    %599 = vmatprep.subr.mxu0 0.0
    %600 = vmatpush1.msra.mxu0 0.0
    %601 = vmatprep.subr.mxu0 0.0
    %602 = vmatpush1.msra.mxu0 0.0
    %603 = vmatprep.subr.mxu0 0.0
    %604 = vmatpush1.msra.mxu0 0.0
    %605 = vmatprep.subr.mxu0 0.0
    %606 = vmatpush1.msra.mxu0 0.0
    %607 = vmatprep.subr.mxu0 0.0
    %608 = vmatpush1.msra.mxu0 0.0
    %609 = vmatprep.subr.mxu0 0.0
    %610 = vmatpush1.msra.mxu0 0.0
    %611 = vmatprep.subr.mxu0 0.0
    %612 = vmatpush1.msra.mxu0 0.0
    %613 = vmatprep.subr.mxu0 0.0
    %614 = vmatpush1.msra.mxu0 0.0
    %615 = vmatprep.subr.mxu0 0.0
    %616 = vmatpush1.msra.mxu0 0.0
    %617 = vmatprep.subr.mxu0 0.0
    %618 = vmatpush1.msra.mxu0 0.0
    %619 = vmatprep.mubr.f32.mxu0 0.0
    %620 = vmatmul.mubr.f32.gmra.mrb[0].mxu0 %v553
    %v621 = vpop.f32.mrb[0].mxu0
    %v622 = vadd.f32 0.0, %v621
    %v623 = vpop.f32.mrb[0].mxu0
    %624 = vdwg.mxu0
    %v625 = vadd.f32 %v551, %v622
    %v626 = vmul.f32 %v625, 0.5
    %v627 = vsel %vm191, %v625, %v626
    %v628 = vtanh.pop %v627
    %v629 = vmul.f32 %v628, 0.5
    %v630 = vadd.f32 %v629, 0.5
    %v631 = vsel %vm191, %v628, %v630
    %v632 = vmul.f32 %v631, %v527
    %634 = vrot.lane.b32.xlu0 %v631, 64
    %v635 = vpop.permute.xlu0 %634
    %v637 = vmul.f32 %v631, %v635
    %639 = vrot.lane.b32.xlu0 %v637, 32
    %v640 = vpop.permute.xlu0 %639
    %v642 = vadd.f32 %v632, %v640
    %v643 = vtanh.pop %v642
    %645 = vrot.lane.b32.xlu0 %v643, 64
    %v646 = vpop.permute.xlu0 %645
    %v648 = vmul.f32 %v631, %v646
    %650 = vrot.lane.b32.xlu0 %v648, 32
    %v651 = vpop.permute.xlu0 %650
    %653 = vst.msk [vmem:[#allocation2 + $0x3] sm:$0x1] %vm304, %v651
    %654 = vrot.lane.b32.xlu0 %v648, 64
    %v655 = vpop.permute.xlu0 %654
    %657 = vst.msk [vmem:[#allocation2 + $0x2] sm:$0x4] %vm309, %v655
    %658 = vst.msk [vmem:[#allocation2 + $0xa] sm:$0x2] %vm311, %v651
    %659 = vst.msk [vmem:[#allocation2 + $0x9] sm:$0x8] %vm313, %v655
    %v660 = vsel %vm315, %v651, %v655
    %v661 = vsel %vm197, %v660, 0.0
    %v663 = vrot.slane %v179, 4
    %v665 = vsel %vm201, %v183, %v663
    %v667 = vsel %vm103, %v661, 0
    %669 = vmatprep.subr.mxu0 0.0
    %670 = vmatpush1.msra.mxu0 %v44
    %671 = vmatprep.subr.mxu0 0.0
    %672 = vmatpush1.msra.mxu0 %v45
    %673 = vmatprep.subr.mxu0 0.0
    %674 = vmatpush1.msra.mxu0 %v46
    %675 = vmatprep.subr.mxu0 0.0
    %676 = vmatpush1.msra.mxu0 %v47
    %677 = vmatprep.subr.mxu0 0.0
    %678 = vmatpush1.msra.mxu0 %v48
    %679 = vmatprep.subr.mxu0 0.0
    %680 = vmatpush1.msra.mxu0 %v49
    %681 = vmatprep.subr.mxu0 0.0
    %682 = vmatpush1.msra.mxu0 %v50
    %683 = vmatprep.subr.mxu0 0.0
    %684 = vmatpush1.msra.mxu0 %v51
    %685 = vmatprep.subr.mxu0 0.0
    %686 = vmatpush1.msra.mxu0 0.0
    %687 = vmatprep.subr.mxu0 0.0
    %688 = vmatpush1.msra.mxu0 0.0
    %689 = vmatprep.subr.mxu0 0.0
    %690 = vmatpush1.msra.mxu0 0.0
    %691 = vmatprep.subr.mxu0 0.0
    %692 = vmatpush1.msra.mxu0 0.0
    %693 = vmatprep.subr.mxu0 0.0
    %694 = vmatpush1.msra.mxu0 0.0
    %695 = vmatprep.subr.mxu0 0.0
    %696 = vmatpush1.msra.mxu0 0.0
    %697 = vmatprep.subr.mxu0 0.0
    %698 = vmatpush1.msra.mxu0 0.0
    %699 = vmatprep.subr.mxu0 0.0
    %700 = vmatpush1.msra.mxu0 0.0
    %701 = vmatprep.subr.mxu0 0.0
    %702 = vmatpush1.msra.mxu0 0.0
    %703 = vmatprep.subr.mxu0 0.0
    %704 = vmatpush1.msra.mxu0 0.0
    %705 = vmatprep.subr.mxu0 0.0
    %706 = vmatpush1.msra.mxu0 0.0
    %707 = vmatprep.subr.mxu0 0.0
    %708 = vmatpush1.msra.mxu0 0.0
    %709 = vmatprep.subr.mxu0 0.0
    %710 = vmatpush1.msra.mxu0 0.0
    %711 = vmatprep.subr.mxu0 0.0
    %712 = vmatpush1.msra.mxu0 0.0
    %713 = vmatprep.subr.mxu0 0.0
    %714 = vmatpush1.msra.mxu0 0.0
    %715 = vmatprep.subr.mxu0 0.0
    %716 = vmatpush1.msra.mxu0 0.0
    %717 = vmatprep.subr.mxu0 0.0
    %718 = vmatpush1.msra.mxu0 0.0
    %719 = vmatprep.subr.mxu0 0.0
    %720 = vmatpush1.msra.mxu0 0.0
    %721 = vmatprep.subr.mxu0 0.0
    %722 = vmatpush1.msra.mxu0 0.0
    %723 = vmatprep.subr.mxu0 0.0
    %724 = vmatpush1.msra.mxu0 0.0
    %725 = vmatprep.subr.mxu0 0.0
    %726 = vmatpush1.msra.mxu0 0.0
    %727 = vmatprep.subr.mxu0 0.0
    %728 = vmatpush1.msra.mxu0 0.0
    %729 = vmatprep.subr.mxu0 0.0
    %730 = vmatpush1.msra.mxu0 0.0
    %731 = vmatprep.subr.mxu0 0.0
    %732 = vmatpush1.msra.mxu0 0.0
    %733 = vmatprep.mubr.f32.mxu0 0.0
    %734 = vmatmul.mubr.f32.gmra.mrb[0].mxu0 %v667
    %v735 = vpop.f32.mrb[0].mxu0
    %v736 = vadd.f32 0.0, %v735
    %v737 = vpop.f32.mrb[0].mxu0
    %738 = vdwg.mxu0
    %v739 = vadd.f32 %v665, %v736
    %v740 = vmul.f32 %v739, 0.5
    %v741 = vsel %vm191, %v739, %v740
    %v742 = vtanh.pop %v741
    %v743 = vmul.f32 %v742, 0.5
    %v744 = vadd.f32 %v743, 0.5
    %v745 = vsel %vm191, %v742, %v744
    %v746 = vmul.f32 %v745, %v642
    %748 = vrot.lane.b32.xlu0 %v745, 64
    %v749 = vpop.permute.xlu0 %748
    %v751 = vmul.f32 %v745, %v749
    %753 = vrot.lane.b32.xlu0 %v751, 32
    %v754 = vpop.permute.xlu0 %753
    %v756 = vadd.f32 %v746, %v754
    %v757 = vtanh.pop %v756
    %759 = vrot.lane.b32.xlu0 %v757, 64
    %v760 = vpop.permute.xlu0 %759
    %v762 = vmul.f32 %v745, %v760
    %764 = vrot.lane.b32.xlu0 %v762, 32
    %v765 = vpop.permute.xlu0 %764
    %767 = vst.msk [vmem:[#allocation2 + $0x4] sm:$0x1] %vm304, %v765
    %768 = vrot.lane.b32.xlu0 %v762, 64
    %v769 = vpop.permute.xlu0 %768
    %771 = vst.msk [vmem:[#allocation2 + $0x1] sm:$0x4] %vm309, %v769
    %772 = vst.msk [vmem:[#allocation2 + $0xb] sm:$0x2] %vm311, %v765
    %773 = vst.msk [vmem:[#allocation2 + $0x8] sm:$0x8] %vm313, %v769
    %v774 = vsel %vm315, %v765, %v769
    %v775 = vsel %vm197, %v774, 0.0
    %v777 = vrot.slane %v183, 2
    %v779 = vrot.slane %v179, 2
    %v781 = vsel %vm201, %v777, %v779
    %v783 = vsel %vm103, %v775, 0
    %785 = vmatprep.subr.mxu0 0.0
    %786 = vmatpush1.msra.mxu0 %v44
    %787 = vmatprep.subr.mxu0 0.0
    %788 = vmatpush1.msra.mxu0 %v45
    %789 = vmatprep.subr.mxu0 0.0
    %790 = vmatpush1.msra.mxu0 %v46
    %791 = vmatprep.subr.mxu0 0.0
    %792 = vmatpush1.msra.mxu0 %v47
    %793 = vmatprep.subr.mxu0 0.0
    %794 = vmatpush1.msra.mxu0 %v48
    %795 = vmatprep.subr.mxu0 0.0
    %796 = vmatpush1.msra.mxu0 %v49
    %797 = vmatprep.subr.mxu0 0.0
    %798 = vmatpush1.msra.mxu0 %v50
    %799 = vmatprep.subr.mxu0 0.0
    %800 = vmatpush1.msra.mxu0 %v51
    %801 = vmatprep.subr.mxu0 0.0
    %802 = vmatpush1.msra.mxu0 0.0
    %803 = vmatprep.subr.mxu0 0.0
    %804 = vmatpush1.msra.mxu0 0.0
    %805 = vmatprep.subr.mxu0 0.0
    %806 = vmatpush1.msra.mxu0 0.0
    %807 = vmatprep.subr.mxu0 0.0
    %808 = vmatpush1.msra.mxu0 0.0
    %809 = vmatprep.subr.mxu0 0.0
    %810 = vmatpush1.msra.mxu0 0.0
    %811 = vmatprep.subr.mxu0 0.0
    %812 = vmatpush1.msra.mxu0 0.0
    %813 = vmatprep.subr.mxu0 0.0
    %814 = vmatpush1.msra.mxu0 0.0
    %815 = vmatprep.subr.mxu0 0.0
    %816 = vmatpush1.msra.mxu0 0.0
    %817 = vmatprep.subr.mxu0 0.0
    %818 = vmatpush1.msra.mxu0 0.0
    %819 = vmatprep.subr.mxu0 0.0
    %820 = vmatpush1.msra.mxu0 0.0
    %821 = vmatprep.subr.mxu0 0.0
    %822 = vmatpush1.msra.mxu0 0.0
    %823 = vmatprep.subr.mxu0 0.0
    %824 = vmatpush1.msra.mxu0 0.0
    %825 = vmatprep.subr.mxu0 0.0
    %826 = vmatpush1.msra.mxu0 0.0
    %827 = vmatprep.subr.mxu0 0.0
    %828 = vmatpush1.msra.mxu0 0.0
    %829 = vmatprep.subr.mxu0 0.0
    %830 = vmatpush1.msra.mxu0 0.0
    %831 = vmatprep.subr.mxu0 0.0
    %832 = vmatpush1.msra.mxu0 0.0
    %833 = vmatprep.subr.mxu0 0.0
    %834 = vmatpush1.msra.mxu0 0.0
    %835 = vmatprep.subr.mxu0 0.0
    %836 = vmatpush1.msra.mxu0 0.0
    %837 = vmatprep.subr.mxu0 0.0
    %838 = vmatpush1.msra.mxu0 0.0
    %839 = vmatprep.subr.mxu0 0.0
    %840 = vmatpush1.msra.mxu0 0.0
    %841 = vmatprep.subr.mxu0 0.0
    %842 = vmatpush1.msra.mxu0 0.0
    %843 = vmatprep.subr.mxu0 0.0
    %844 = vmatpush1.msra.mxu0 0.0
    %845 = vmatprep.subr.mxu0 0.0
    %846 = vmatpush1.msra.mxu0 0.0
    %847 = vmatprep.subr.mxu0 0.0
    %848 = vmatpush1.msra.mxu0 0.0
    %849 = vmatprep.mubr.f32.mxu0 0.0
    %850 = vmatmul.mubr.f32.gmra.mrb[0].mxu0 %v783
    %v851 = vpop.f32.mrb[0].mxu0
    %v852 = vadd.f32 0.0, %v851
    %v853 = vpop.f32.mrb[0].mxu0
    %854 = vdwg.mxu0
    %v855 = vadd.f32 %v781, %v852
    %v856 = vmul.f32 %v855, 0.5
    %v857 = vsel %vm191, %v855, %v856
    %v858 = vtanh.pop %v857
    %v859 = vmul.f32 %v858, 0.5
    %v860 = vadd.f32 %v859, 0.5
    %v861 = vsel %vm191, %v858, %v860
    %v862 = vmul.f32 %v861, %v756
    %864 = vrot.lane.b32.xlu0 %v861, 64
    %v865 = vpop.permute.xlu0 %864
    %v867 = vmul.f32 %v861, %v865
    %869 = vrot.lane.b32.xlu0 %v867, 32
    %v870 = vpop.permute.xlu0 %869
    %v872 = vadd.f32 %v862, %v870
    %v873 = vtanh.pop %v872
    %875 = vrot.lane.b32.xlu0 %v873, 64
    %v876 = vpop.permute.xlu0 %875
    %v878 = vmul.f32 %v861, %v876
    %880 = vrot.lane.b32.xlu0 %v878, 32
    %v881 = vpop.permute.xlu0 %880
    %883 = vst.msk [vmem:[#allocation2 + $0x5] sm:$0x1] %vm304, %v881
    %884 = vrot.lane.b32.xlu0 %v878, 64
    %v885 = vpop.permute.xlu0 %884
    %887 = vst.msk [vmem:[#allocation2] sm:$0x4] %vm309, %v885
    %888 = vst.msk [vmem:[#allocation2 + $0xc] sm:$0x2] %vm311, %v881
    %889 = vst.msk [vmem:[#allocation2 + $0x7] sm:$0x8] %vm313, %v885
    %v890 = vsel %vm315, %v881, %v885
    %v891 = vsel %vm197, %v890, 0.0
    %v892 = vrot.slane %v183, 4
    %v894 = vsel %vm201, %v892, %v179
    %v896 = vsel %vm103, %v891, 0
    %898 = vmatprep.subr.mxu0 0.0
    %899 = vmatpush1.msra.mxu0 %v44
    %900 = vmatprep.subr.mxu0 0.0
    %901 = vmatpush1.msra.mxu0 %v45
    %902 = vmatprep.subr.mxu0 0.0
    %903 = vmatpush1.msra.mxu0 %v46
    %904 = vmatprep.subr.mxu0 0.0
    %905 = vmatpush1.msra.mxu0 %v47
    %906 = vmatprep.subr.mxu0 0.0
    %907 = vmatpush1.msra.mxu0 %v48
    %908 = vmatprep.subr.mxu0 0.0
    %909 = vmatpush1.msra.mxu0 %v49
    %910 = vmatprep.subr.mxu0 0.0
    %911 = vmatpush1.msra.mxu0 %v50
    %912 = vmatprep.subr.mxu0 0.0
    %913 = vmatpush1.msra.mxu0 %v51
    %914 = vmatprep.subr.mxu0 0.0
    %915 = vmatpush1.msra.mxu0 0.0
    %916 = vmatprep.subr.mxu0 0.0
    %917 = vmatpush1.msra.mxu0 0.0
    %918 = vmatprep.subr.mxu0 0.0
    %919 = vmatpush1.msra.mxu0 0.0
    %920 = vmatprep.subr.mxu0 0.0
    %921 = vmatpush1.msra.mxu0 0.0
    %922 = vmatprep.subr.mxu0 0.0
    %923 = vmatpush1.msra.mxu0 0.0
    %924 = vmatprep.subr.mxu0 0.0
    %925 = vmatpush1.msra.mxu0 0.0
    %926 = vmatprep.subr.mxu0 0.0
    %927 = vmatpush1.msra.mxu0 0.0
    %928 = vmatprep.subr.mxu0 0.0
    %929 = vmatpush1.msra.mxu0 0.0
    %930 = vmatprep.subr.mxu0 0.0
    %931 = vmatpush1.msra.mxu0 0.0
    %932 = vmatprep.subr.mxu0 0.0
    %933 = vmatpush1.msra.mxu0 0.0
    %934 = vmatprep.subr.mxu0 0.0
    %935 = vmatpush1.msra.mxu0 0.0
    %936 = vmatprep.subr.mxu0 0.0
    %937 = vmatpush1.msra.mxu0 0.0
    %938 = vmatprep.subr.mxu0 0.0
    %939 = vmatpush1.msra.mxu0 0.0
    %940 = vmatprep.subr.mxu0 0.0
    %941 = vmatpush1.msra.mxu0 0.0
    %942 = vmatprep.subr.mxu0 0.0
    %943 = vmatpush1.msra.mxu0 0.0
    %944 = vmatprep.subr.mxu0 0.0
    %945 = vmatpush1.msra.mxu0 0.0
    %946 = vmatprep.subr.mxu0 0.0
    %947 = vmatpush1.msra.mxu0 0.0
    %948 = vmatprep.subr.mxu0 0.0
    %949 = vmatpush1.msra.mxu0 0.0
    %950 = vmatprep.subr.mxu0 0.0
    %951 = vmatpush1.msra.mxu0 0.0
    %952 = vmatprep.subr.mxu0 0.0
    %953 = vmatpush1.msra.mxu0 0.0
    %954 = vmatprep.subr.mxu0 0.0
    %955 = vmatpush1.msra.mxu0 0.0
    %956 = vmatprep.subr.mxu0 0.0
    %957 = vmatpush1.msra.mxu0 0.0
    %958 = vmatprep.subr.mxu0 0.0
    %959 = vmatpush1.msra.mxu0 0.0
    %960 = vmatprep.subr.mxu0 0.0
    %961 = vmatpush1.msra.mxu0 0.0
    %962 = vmatprep.mubr.f32.mxu0 0.0
    %963 = vmatmul.mubr.f32.gmra.mrb[0].mxu0 %v896
    %v964 = vpop.f32.mrb[0].mxu0
    %v965 = vadd.f32 0.0, %v964
    %v966 = vpop.f32.mrb[0].mxu0
    %967 = vdwg.mxu0
    %v968 = vadd.f32 %v894, %v965
    %v969 = vmul.f32 %v968, 0.5
    %v970 = vsel %vm191, %v968, %v969
    %v971 = vtanh.pop %v970
    %v972 = vmul.f32 %v971, 0.5
    %v973 = vadd.f32 %v972, 0.5
    %v974 = vsel %vm191, %v971, %v973
    %v975 = vmul.f32 %v974, %v872
    %977 = vrot.lane.b32.xlu0 %v974, 64
    %v978 = vpop.permute.xlu0 %977
    %v980 = vmul.f32 %v974, %v978
    %982 = vrot.lane.b32.xlu0 %v980, 32
    %v983 = vpop.permute.xlu0 %982
    %v985 = vadd.f32 %v975, %v983
    %v986 = vtanh.pop %v985
    %988 = vrot.lane.b32.xlu0 %v986, 64
    %v989 = vpop.permute.xlu0 %988
    %v991 = vmul.f32 %v974, %v989
    %993 = vrot.lane.b32.xlu0 %v991, 32
    %v994 = vpop.permute.xlu0 %993
    %996 = vst.msk [vmem:[#allocation2 + $0x6] sm:$0x1] %vm304, %v994
    %997 = vrot.lane.b32.xlu0 %v991, 64
    %v998 = vpop.permute.xlu0 %997
    %1000 = vst.msk [vmem:[#allocation2 - $0x1] sm:$0x4] %vm309, %v998
    %1001 = vst.msk [vmem:[#allocation2 + $0xd] sm:$0x2] %vm311, %v994
    %1002 = vst.msk [vmem:[#allocation2 + $0x6] sm:$0x8] %vm313, %v998
    %v1003 = vsel %vm315, %v994, %v998
    %v1004 = vsel %vm197, %v1003, 0.0
    %v1005 = vrot.slane %v183, 6
    %v1007 = vrot.slane %v179, 6
    %v1009 = vsel %vm201, %v1005, %v1007
    %v1011 = vsel %vm103, %v1004, 0
    %1013 = vmatprep.subr.mxu0 0.0
    %1014 = vmatpush1.msra.mxu0 %v44
    %1015 = vmatprep.subr.mxu0 0.0
    %1016 = vmatpush1.msra.mxu0 %v45
    %1017 = vmatprep.subr.mxu0 0.0
    %1018 = vmatpush1.msra.mxu0 %v46
    %1019 = vmatprep.subr.mxu0 0.0
    %1020 = vmatpush1.msra.mxu0 %v47
    %1021 = vmatprep.subr.mxu0 0.0
    %1022 = vmatpush1.msra.mxu0 %v48
    %1023 = vmatprep.subr.mxu0 0.0
    %1024 = vmatpush1.msra.mxu0 %v49
    %1025 = vmatprep.subr.mxu0 0.0
    %1026 = vmatpush1.msra.mxu0 %v50
    %1027 = vmatprep.subr.mxu0 0.0
    %1028 = vmatpush1.msra.mxu0 %v51
    %1029 = vmatprep.subr.mxu0 0.0
    %1030 = vmatpush1.msra.mxu0 0.0
    %1031 = vmatprep.subr.mxu0 0.0
    %1032 = vmatpush1.msra.mxu0 0.0
    %1033 = vmatprep.subr.mxu0 0.0
    %1034 = vmatpush1.msra.mxu0 0.0
    %1035 = vmatprep.subr.mxu0 0.0
    %1036 = vmatpush1.msra.mxu0 0.0
    %1037 = vmatprep.subr.mxu0 0.0
    %1038 = vmatpush1.msra.mxu0 0.0
    %1039 = vmatprep.subr.mxu0 0.0
    %1040 = vmatpush1.msra.mxu0 0.0
    %1041 = vmatprep.subr.mxu0 0.0
    %1042 = vmatpush1.msra.mxu0 0.0
    %1043 = vmatprep.subr.mxu0 0.0
    %1044 = vmatpush1.msra.mxu0 0.0
    %1045 = vmatprep.subr.mxu0 0.0
    %1046 = vmatpush1.msra.mxu0 0.0
    %1047 = vmatprep.subr.mxu0 0.0
    %1048 = vmatpush1.msra.mxu0 0.0
    %1049 = vmatprep.subr.mxu0 0.0
    %1050 = vmatpush1.msra.mxu0 0.0
    %1051 = vmatprep.subr.mxu0 0.0
    %1052 = vmatpush1.msra.mxu0 0.0
    %1053 = vmatprep.subr.mxu0 0.0
    %1054 = vmatpush1.msra.mxu0 0.0
    %1055 = vmatprep.subr.mxu0 0.0
    %1056 = vmatpush1.msra.mxu0 0.0
    %1057 = vmatprep.subr.mxu0 0.0
    %1058 = vmatpush1.msra.mxu0 0.0
    %1059 = vmatprep.subr.mxu0 0.0
    %1060 = vmatpush1.msra.mxu0 0.0
    %1061 = vmatprep.subr.mxu0 0.0
    %1062 = vmatpush1.msra.mxu0 0.0
    %1063 = vmatprep.subr.mxu0 0.0
    %1064 = vmatpush1.msra.mxu0 0.0
    %1065 = vmatprep.subr.mxu0 0.0
    %1066 = vmatpush1.msra.mxu0 0.0
    %1067 = vmatprep.subr.mxu0 0.0
    %1068 = vmatpush1.msra.mxu0 0.0
    %1069 = vmatprep.subr.mxu0 0.0
    %1070 = vmatpush1.msra.mxu0 0.0
    %1071 = vmatprep.subr.mxu0 0.0
    %1072 = vmatpush1.msra.mxu0 0.0
    %1073 = vmatprep.subr.mxu0 0.0
    %1074 = vmatpush1.msra.mxu0 0.0
    %1075 = vmatprep.subr.mxu0 0.0
    %1076 = vmatpush1.msra.mxu0 0.0
    %1077 = vmatprep.mubr.f32.mxu0 0.0
    %1078 = vmatmul.mubr.f32.gmra.mrb[0].mxu0 %v1011
    %v1079 = vpop.f32.mrb[0].mxu0
    %v1080 = vadd.f32 0.0, %v1079
    %v1081 = vpop.f32.mrb[0].mxu0
    %1082 = vdwg.mxu0
    %v1083 = vadd.f32 %v1009, %v1080
    %v1084 = vmul.f32 %v1083, 0.5
    %v1085 = vsel %vm191, %v1083, %v1084
    %v1086 = vtanh.pop %v1085
    %v1087 = vmul.f32 %v1086, 0.5
    %v1088 = vadd.f32 %v1087, 0.5
    %v1089 = vsel %vm191, %v1086, %v1088
    %v1090 = vmul.f32 %v1089, %v985
    %1092 = vrot.lane.b32.xlu0 %v1089, 64
    %v1093 = vpop.permute.xlu0 %1092
    %v1095 = vmul.f32 %v1089, %v1093
    %1097 = vrot.lane.b32.xlu0 %v1095, 32
    %v1098 = vpop.permute.xlu0 %1097
    %v1100 = vadd.f32 %v1090, %v1098
    %v1101 = vtanh.pop %v1100
    %1103 = vrot.lane.b32.xlu0 %v1101, 64
    %v1104 = vpop.permute.xlu0 %1103
    %v1106 = vmul.f32 %v1089, %v1104
    %1108 = vrot.lane.b32.xlu0 %v1106, 32
    %v1109 = vpop.permute.xlu0 %1108
    %1111 = vst.msk [vmem:[#allocation2 + $0x7] sm:$0x1] %vm304, %v1109
    %1112 = vrot.lane.b32.xlu0 %v1106, 64
    %v1113 = vpop.permute.xlu0 %1112
    %1115 = vst.msk [vmem:[#allocation2 - $0x2] sm:$0x4] %vm309, %v1113
    %1116 = vst.msk [vmem:[#allocation2 + $0xe] sm:$0x2] %vm311, %v1109
    %1117 = vst.msk [vmem:[#allocation2 + $0x5] sm:$0x8] %vm313, %v1113
    %v1118 = vld [vmem:[#allocation2] sm:$0xff]
    %v1119 = vld [vmem:[#allocation2 + $0x8] sm:$0xff]
    %v1121 = vsel %vm103, %v1118, 0
    %v1124 = vsel %vm103, %v1119, 0
    %1126 = vmatprep.subr.mxu0 0.0
    %1127 = vmatpush1.msra.mxu0 %v54
    %1128 = vmatprep.subr.mxu0 0.0
    %1129 = vmatpush1.msra.mxu0 %v56
    %1130 = vmatprep.subr.mxu0 0.0
    %1131 = vmatpush1.msra.mxu0 %v58
    %1132 = vmatprep.subr.mxu0 0.0
    %1133 = vmatpush1.msra.mxu0 %v60
    %1134 = vmatprep.subr.mxu0 0.0
    %1135 = vmatpush1.msra.mxu0 %v62
    %1136 = vmatprep.subr.mxu0 0.0
    %1137 = vmatpush1.msra.mxu0 %v64
    %1138 = vmatprep.subr.mxu0 0.0
    %1139 = vmatpush1.msra.mxu0 %v66
    %1140 = vmatprep.subr.mxu0 0.0
    %1141 = vmatpush1.msra.mxu0 %v68
    %1142 = vmatprep.subr.mxu0 0.0
    %1143 = vmatpush1.msra.mxu0 0.0
    %1144 = vmatprep.subr.mxu0 0.0
    %1145 = vmatpush1.msra.mxu0 0.0
    %1146 = vmatprep.subr.mxu0 0.0
    %1147 = vmatpush1.msra.mxu0 0.0
    %1148 = vmatprep.subr.mxu0 0.0
    %1149 = vmatpush1.msra.mxu0 0.0
    %1150 = vmatprep.subr.mxu0 0.0
    %1151 = vmatpush1.msra.mxu0 0.0
    %1152 = vmatprep.subr.mxu0 0.0
    %1153 = vmatpush1.msra.mxu0 0.0
    %1154 = vmatprep.subr.mxu0 0.0
    %1155 = vmatpush1.msra.mxu0 0.0
    %1156 = vmatprep.subr.mxu0 0.0
    %1157 = vmatpush1.msra.mxu0 0.0
    %1158 = vmatprep.subr.mxu0 0.0
    %1159 = vmatpush1.msra.mxu0 0.0
    %1160 = vmatprep.subr.mxu0 0.0
    %1161 = vmatpush1.msra.mxu0 0.0
    %1162 = vmatprep.subr.mxu0 0.0
    %1163 = vmatpush1.msra.mxu0 0.0
    %1164 = vmatprep.subr.mxu0 0.0
    %1165 = vmatpush1.msra.mxu0 0.0
    %1166 = vmatprep.subr.mxu0 0.0
    %1167 = vmatpush1.msra.mxu0 0.0
    %1168 = vmatprep.subr.mxu0 0.0
    %1169 = vmatpush1.msra.mxu0 0.0
    %1170 = vmatprep.subr.mxu0 0.0
    %1171 = vmatpush1.msra.mxu0 0.0
    %1172 = vmatprep.subr.mxu0 0.0
    %1173 = vmatpush1.msra.mxu0 0.0
    %1174 = vmatprep.subr.mxu0 0.0
    %1175 = vmatpush1.msra.mxu0 0.0
    %1176 = vmatprep.subr.mxu0 0.0
    %1177 = vmatpush1.msra.mxu0 0.0
    %1178 = vmatprep.subr.mxu0 0.0
    %1179 = vmatpush1.msra.mxu0 0.0
    %1180 = vmatprep.subr.mxu0 0.0
    %1181 = vmatpush1.msra.mxu0 0.0
    %1182 = vmatprep.subr.mxu0 0.0
    %1183 = vmatpush1.msra.mxu0 0.0
    %1184 = vmatprep.subr.mxu0 0.0
    %1185 = vmatpush1.msra.mxu0 0.0
    %1186 = vmatprep.subr.mxu0 0.0
    %1187 = vmatpush1.msra.mxu0 0.0
    %1188 = vmatprep.subr.mxu0 0.0
    %1189 = vmatpush1.msra.mxu0 0.0
    %1190 = vmatprep.mubr.f32.mxu0 0.0
    %1191 = vmatmul.mubr.f32.gmra.mrb[0].mxu0 %v1121
    %v1192 = vpop.f32.mrb[0].mxu0
    %v1193 = vadd.f32 0.0, %v1192
    %v1194 = vpop.f32.mrb[0].mxu0
    %1195 = vmatprep.mubr.f32.mxu0 0.0
    %1196 = vmatmul.mubr.f32.gmra.mrb[0].mxu0 %v1124
    %v1197 = vpop.f32.mrb[0].mxu0
    %v1198 = vadd.f32 0.0, %v1197
    %v1199 = vpop.f32.mrb[0].mxu0
    %1200 = vdwg.mxu0
    %v1201 = vtanh.pop %v1193
    %v1202 = vtanh.pop %v1198
    %v1203 = vmul.f32 %v1201, %v70
    %v1204 = vmul.f32 %v1202, %v70
    %v1205 = vsel %vm103, %v1203, 0.0
    %1206 = vadd.xlane.f32.xlu0 %v1205
    %v1207 = vpop.xlane.xlu0 %1206
    %v1208 = vsel %vm103, %v1204, 0.0
    %1209 = vadd.xlane.f32.xlu0 %v1208
    %v1210 = vpop.xlane.xlu0 %1209
    %v1213 = vlaneseq
    %v1214 = vshrl.u32 %v1213, 7
    %v1215 = vsub.s32 %v188, %v1214
    %v1216 = vrot.slane %v1207, %v1215
    %v1217 = vlaneseq
    %v1218 = vshrl.u32 %v1217, 7
    %v1219 = vsub.s32 %v188, %v1218
    %v1220 = vrot.slane %v1210, %v1219
    %vm1221 = vcmask 1041409
    %v1222 = vsel %vm1221, %v1220, %v1216
    %vm1224 = vcmask 58368
    %v1225 = vsel %vm1224, %v1222, -inf
    %1226 = vmax.xlane.f32.xlu0 %v1225
    %v1227 = vpop.xlane.xlu0 %1226
    %v1229 = vlaneseq
    %v1230 = vshrl.u32 %v1229, 7
    %v1231 = vsub.s32 0, %v1230
    %v1232 = vrot.slane %v1227, %v1231
    %v1233 = vlaneseq
    %v1234 = vshrl.u32 %v1233, 7
    %v1235 = vsub.s32 1, %v1234
    %v1236 = vrot.slane %v1227, %v1235
    %v1239 = vsub.f32 %v1207, %v1232
    %v1240 = vsub.f32 %v1210, %v1236
    %v1241 = vmul.f32 %v1239, 1.442695
    %v1242 = vpow.pop %v1241
    %v1243 = vmul.f32 %v1240, 1.442695
    %v1244 = vpow.pop %v1243
    %1247 = vset.pattern.permute.xlu0 0
    %1248 = vperm.xlu0 %1247, %v1242
    %v1249 = vpop.permute.xlu0 %1248
    %1250 = vset.pattern.permute.xlu0 0
    %1251 = vperm.xlu0 %1250, %v1244
    %v1252 = vpop.permute.xlu0 %1251
    %v1253 = vlaneseq
    %v1254 = vshrl.u32 %v1253, 7
    %v1255 = vsub.s32 %v188, %v1254
    %v1256 = vrot.slane %v1249, %v1255
    %v1257 = vlaneseq
    %v1258 = vshrl.u32 %v1257, 7
    %v1259 = vsub.s32 %v188, %v1258
    %v1260 = vrot.slane %v1252, %v1259
    %v1261 = vsel %vm1221, %v1260, %v1256
    %v1263 = vsel %vm1224, %v1261, 0.0
    %1264 = vadd.xlane.f32.xlu0 %v1263
    %v1265 = vpop.xlane.xlu0 %1264
    %v1267 = vlaneseq
    %v1268 = vshrl.u32 %v1267, 7
    %v1269 = vsub.s32 0, %v1268
    %v1270 = vrot.slane %v1265, %v1269
    %v1271 = vlaneseq
    %v1272 = vshrl.u32 %v1271, 7
    %v1273 = vsub.s32 1, %v1272
    %v1274 = vrot.slane %v1265, %v1273
    %v1277 = vrcp.pop %v1270
    %v1278 = vmul.f32 %v1242, %v1277
    %v1279 = vrcp.pop %v1274
    %v1280 = vmul.f32 %v1244, %v1279
    %1282 = vset.pattern.permute.xlu0 0
    %1283 = vperm.xlu0 %1282, %v1278
    %v1284 = vpop.permute.xlu0 %1283
    %v1285 = vlaneseq
    %v1286 = vshrl.u32 %v1285, 7
    %v1287 = vsub.s32 %v188, %v1286
    %v1288 = vrot.slane %v1284, %v1287
    %vm1289 = vcmask 64512
    %v1290 = vsel %vm1289, %v1288, 0
    %1292 = vmatprep.subr.mxu0 0.0
    %1293 = vmatpush1.msra.mxu0 %v1118
    %1294 = vmatprep.subr.mxu0 0.0
    %1295 = vmatpush1.msra.mxu0 0.0
    %1296 = vmatprep.subr.mxu0 0.0
    %1297 = vmatpush1.msra.mxu0 0.0
    %1298 = vmatprep.subr.mxu0 0.0
    %1299 = vmatpush1.msra.mxu0 0.0
    %1300 = vmatprep.subr.mxu0 0.0
    %1301 = vmatpush1.msra.mxu0 0.0
    %1302 = vmatprep.subr.mxu0 0.0
    %1303 = vmatpush1.msra.mxu0 0.0
    %1304 = vmatprep.subr.mxu0 0.0
    %1305 = vmatpush1.msra.mxu0 0.0
    %1306 = vmatprep.subr.mxu0 0.0
    %1307 = vmatpush1.msra.mxu0 0.0
    %1308 = vmatprep.subr.mxu0 0.0
    %1309 = vmatpush1.msra.mxu0 0.0
    %1310 = vmatprep.subr.mxu0 0.0
    %1311 = vmatpush1.msra.mxu0 0.0
    %1312 = vmatprep.subr.mxu0 0.0
    %1313 = vmatpush1.msra.mxu0 0.0
    %1314 = vmatprep.subr.mxu0 0.0
    %1315 = vmatpush1.msra.mxu0 0.0
    %1316 = vmatprep.subr.mxu0 0.0
    %1317 = vmatpush1.msra.mxu0 0.0
    %1318 = vmatprep.subr.mxu0 0.0
    %1319 = vmatpush1.msra.mxu0 0.0
    %1320 = vmatprep.subr.mxu0 0.0
    %1321 = vmatpush1.msra.mxu0 0.0
    %1322 = vmatprep.subr.mxu0 0.0
    %1323 = vmatpush1.msra.mxu0 0.0
    %1324 = vmatprep.subr.mxu0 0.0
    %1325 = vmatpush1.msra.mxu0 0.0
    %1326 = vmatprep.subr.mxu0 0.0
    %1327 = vmatpush1.msra.mxu0 0.0
    %1328 = vmatprep.subr.mxu0 0.0
    %1329 = vmatpush1.msra.mxu0 0.0
    %1330 = vmatprep.subr.mxu0 0.0
    %1331 = vmatpush1.msra.mxu0 0.0
    %1332 = vmatprep.subr.mxu0 0.0
    %1333 = vmatpush1.msra.mxu0 0.0
    %1334 = vmatprep.subr.mxu0 0.0
    %1335 = vmatpush1.msra.mxu0 0.0
    %1336 = vmatprep.subr.mxu0 0.0
    %1337 = vmatpush1.msra.mxu0 0.0
    %1338 = vmatprep.subr.mxu0 0.0
    %1339 = vmatpush1.msra.mxu0 0.0
    %1340 = vmatprep.subr.mxu0 0.0
    %1341 = vmatpush1.msra.mxu0 0.0
    %1342 = vmatprep.subr.mxu0 0.0
    %1343 = vmatpush1.msra.mxu0 0.0
    %1344 = vmatprep.subr.mxu0 0.0
    %1345 = vmatpush1.msra.mxu0 0.0
    %1346 = vmatprep.subr.mxu0 0.0
    %1347 = vmatpush1.msra.mxu0 0.0
    %1348 = vmatprep.subr.mxu0 0.0
    %1349 = vmatpush1.msra.mxu0 0.0
    %1350 = vmatprep.subr.mxu0 0.0
    %1351 = vmatpush1.msra.mxu0 0.0
    %1352 = vmatprep.subr.mxu0 0.0
    %1353 = vmatpush1.msra.mxu0 0.0
    %1354 = vmatprep.subr.mxu0 0.0
    %1355 = vmatpush1.msra.mxu0 0.0
    %1356 = vmatprep.mubr.f32.mxu0 0.0
    %1357 = vmatmul.mubr.f32.gmra.mrb[0].mxu0 %v1290
    %v1358 = vpop.f32.mrb[0].mxu0
    %v1359 = vadd.f32 0.0, %v1358
    %v1360 = vpop.f32.mrb[0].mxu0
    %1361 = vdwg.mxu0
    %1363 = vset.pattern.permute.xlu0 0
    %1364 = vperm.xlu0 %1363, %v1280
    %v1365 = vpop.permute.xlu0 %1364
    %v1366 = vlaneseq
    %v1367 = vshrl.u32 %v1366, 7
    %v1368 = vsub.s32 %v188, %v1367
    %v1369 = vrot.slane %v1365, %v1368
    %v1370 = vsel %vm1289, %v1369, 0
    %1372 = vmatprep.subr.mxu0 0.0
    %1373 = vmatpush1.msra.mxu0 %v1119
    %1374 = vmatprep.subr.mxu0 0.0
    %1375 = vmatpush1.msra.mxu0 0.0
    %1376 = vmatprep.subr.mxu0 0.0
    %1377 = vmatpush1.msra.mxu0 0.0
    %1378 = vmatprep.subr.mxu0 0.0
    %1379 = vmatpush1.msra.mxu0 0.0
    %1380 = vmatprep.subr.mxu0 0.0
    %1381 = vmatpush1.msra.mxu0 0.0
    %1382 = vmatprep.subr.mxu0 0.0
    %1383 = vmatpush1.msra.mxu0 0.0
    %1384 = vmatprep.subr.mxu0 0.0
    %1385 = vmatpush1.msra.mxu0 0.0
    %1386 = vmatprep.subr.mxu0 0.0
    %1387 = vmatpush1.msra.mxu0 0.0
    %1388 = vmatprep.subr.mxu0 0.0
    %1389 = vmatpush1.msra.mxu0 0.0
    %1390 = vmatprep.subr.mxu0 0.0
    %1391 = vmatpush1.msra.mxu0 0.0
    %1392 = vmatprep.subr.mxu0 0.0
    %1393 = vmatpush1.msra.mxu0 0.0
    %1394 = vmatprep.subr.mxu0 0.0
    %1395 = vmatpush1.msra.mxu0 0.0
    %1396 = vmatprep.subr.mxu0 0.0
    %1397 = vmatpush1.msra.mxu0 0.0
    %1398 = vmatprep.subr.mxu0 0.0
    %1399 = vmatpush1.msra.mxu0 0.0
    %1400 = vmatprep.subr.mxu0 0.0
    %1401 = vmatpush1.msra.mxu0 0.0
    %1402 = vmatprep.subr.mxu0 0.0
    %1403 = vmatpush1.msra.mxu0 0.0
    %1404 = vmatprep.subr.mxu0 0.0
    %1405 = vmatpush1.msra.mxu0 0.0
    %1406 = vmatprep.subr.mxu0 0.0
    %1407 = vmatpush1.msra.mxu0 0.0
    %1408 = vmatprep.subr.mxu0 0.0
    %1409 = vmatpush1.msra.mxu0 0.0
    %1410 = vmatprep.subr.mxu0 0.0
    %1411 = vmatpush1.msra.mxu0 0.0
    %1412 = vmatprep.subr.mxu0 0.0
    %1413 = vmatpush1.msra.mxu0 0.0
    %1414 = vmatprep.subr.mxu0 0.0
    %1415 = vmatpush1.msra.mxu0 0.0
    %1416 = vmatprep.subr.mxu0 0.0
    %1417 = vmatpush1.msra.mxu0 0.0
    %1418 = vmatprep.subr.mxu0 0.0
    %1419 = vmatpush1.msra.mxu0 0.0
    %1420 = vmatprep.subr.mxu0 0.0
    %1421 = vmatpush1.msra.mxu0 0.0
    %1422 = vmatprep.subr.mxu0 0.0
    %1423 = vmatpush1.msra.mxu0 0.0
    %1424 = vmatprep.subr.mxu0 0.0
    %1425 = vmatpush1.msra.mxu0 0.0
    %1426 = vmatprep.subr.mxu0 0.0
    %1427 = vmatpush1.msra.mxu0 0.0
    %1428 = vmatprep.subr.mxu0 0.0
    %1429 = vmatpush1.msra.mxu0 0.0
    %1430 = vmatprep.subr.mxu0 0.0
    %1431 = vmatpush1.msra.mxu0 0.0
    %1432 = vmatprep.subr.mxu0 0.0
    %1433 = vmatpush1.msra.mxu0 0.0
    %1434 = vmatprep.subr.mxu0 0.0
    %1435 = vmatpush1.msra.mxu0 0.0
    %1436 = vmatprep.mubr.f32.mxu0 0.0
    %1437 = vmatmul.mubr.f32.gmra.mrb[0].mxu0 %v1370
    %v1438 = vpop.f32.mrb[0].mxu0
    %v1439 = vadd.f32 0.0, %v1438
    %v1440 = vpop.f32.mrb[0].mxu0
    %1441 = vdwg.mxu0
    %1442 = vrot.lane.b32.xlu0 %v25, 64
    %v1443 = vpop.permute.xlu0 %1442
    %1444 = vrot.lane.b32.xlu0 %v26, 64
    %v1445 = vpop.permute.xlu0 %1444
    %1448 = vrot.lane.b32.xlu0 %v1193, 64
    %v1449 = vpop.permute.xlu0 %1448
    %1450 = vrot.lane.b32.xlu0 %v1198, 64
    %v1451 = vpop.permute.xlu0 %1450
    %1455 = vrot.lane.b32.xlu0 %v70, 64
    %v1456 = vpop.permute.xlu0 %1455
    %vm1458 = vcmask 130048
    %v1459 = vsel %vm1458, %v1443, 0
    %v1461 = vsel %vm1458, %v1445, 0
    %1463 = vmatprep.subr.mxu0 0.0
    %1464 = vmatpush1.msra.mxu0 %v1449
    %1465 = vmatprep.subr.mxu0 0.0
    %1466 = vmatpush1.msra.mxu0 %v1451
    %1467 = vmatprep.subr.mxu0 0.0
    %1468 = vmatpush1.msra.mxu0 0.0
    %1469 = vmatprep.subr.mxu0 0.0
    %1470 = vmatpush1.msra.mxu0 0.0
    %1471 = vmatprep.subr.mxu0 0.0
    %1472 = vmatpush1.msra.mxu0 0.0
    %1473 = vmatprep.subr.mxu0 0.0
    %1474 = vmatpush1.msra.mxu0 0.0
    %1475 = vmatprep.subr.mxu0 0.0
    %1476 = vmatpush1.msra.mxu0 0.0
    %1477 = vmatprep.subr.mxu0 0.0
    %1478 = vmatpush1.msra.mxu0 0.0
    %1479 = vmatprep.subr.mxu0 0.0
    %1480 = vmatpush1.msra.mxu0 0.0
    %1481 = vmatprep.subr.mxu0 0.0
    %1482 = vmatpush1.msra.mxu0 0.0
    %1483 = vmatprep.subr.mxu0 0.0
    %1484 = vmatpush1.msra.mxu0 0.0
    %1485 = vmatprep.subr.mxu0 0.0
    %1486 = vmatpush1.msra.mxu0 0.0
    %1487 = vmatprep.subr.mxu0 0.0
    %1488 = vmatpush1.msra.mxu0 0.0
    %1489 = vmatprep.subr.mxu0 0.0
    %1490 = vmatpush1.msra.mxu0 0.0
    %1491 = vmatprep.subr.mxu0 0.0
    %1492 = vmatpush1.msra.mxu0 0.0
    %1493 = vmatprep.subr.mxu0 0.0
    %1494 = vmatpush1.msra.mxu0 0.0
    %1495 = vmatprep.subr.mxu0 0.0
    %1496 = vmatpush1.msra.mxu0 0.0
    %1497 = vmatprep.subr.mxu0 0.0
    %1498 = vmatpush1.msra.mxu0 0.0
    %1499 = vmatprep.subr.mxu0 0.0
    %1500 = vmatpush1.msra.mxu0 0.0
    %1501 = vmatprep.subr.mxu0 0.0
    %1502 = vmatpush1.msra.mxu0 0.0
    %1503 = vmatprep.subr.mxu0 0.0
    %1504 = vmatpush1.msra.mxu0 0.0
    %1505 = vmatprep.subr.mxu0 0.0
    %1506 = vmatpush1.msra.mxu0 0.0
    %1507 = vmatprep.subr.mxu0 0.0
    %1508 = vmatpush1.msra.mxu0 0.0
    %1509 = vmatprep.subr.mxu0 0.0
    %1510 = vmatpush1.msra.mxu0 0.0
    %1511 = vmatprep.subr.mxu0 0.0
    %1512 = vmatpush1.msra.mxu0 0.0
    %1513 = vmatprep.subr.mxu0 0.0
    %1514 = vmatpush1.msra.mxu0 0.0
    %1515 = vmatprep.subr.mxu0 0.0
    %1516 = vmatpush1.msra.mxu0 0.0
    %1517 = vmatprep.subr.mxu0 0.0
    %1518 = vmatpush1.msra.mxu0 0.0
    %1519 = vmatprep.subr.mxu0 0.0
    %1520 = vmatpush1.msra.mxu0 0.0
    %1521 = vmatprep.subr.mxu0 0.0
    %1522 = vmatpush1.msra.mxu0 0.0
    %1523 = vmatprep.subr.mxu0 0.0
    %1524 = vmatpush1.msra.mxu0 0.0
    %1525 = vmatprep.subr.mxu0 0.0
    %1526 = vmatpush1.msra.mxu0 0.0
    %1527 = vmatprep.mubr.f32.mxu0 0.0
    %1528 = vmatmul.mubr.f32.gmra.mrb[0].mxu0 %v1459
    %v1529 = vpop.f32.mrb[0].mxu0
    %v1530 = vadd.f32 %v1456, %v1529
    %v1531 = vpop.f32.mrb[0].mxu0
    %1532 = vmatprep.mubr.f32.mxu0 0.0
    %1533 = vmatmul.mubr.f32.gmra.mrb[0].mxu0 %v1461
    %v1534 = vpop.f32.mrb[0].mxu0
    %v1535 = vadd.f32 %v1456, %v1534
    %v1536 = vpop.f32.mrb[0].mxu0
    %1537 = vdwg.mxu0
    %v1538 = vmax.f32 %v1530, 0.0
    %v1539 = vmax.f32 %v1535, 0.0
    %v1540 = vsel %vm1221, %v1369, %v1288
    %v1542 = vsel %vm1224, %v1540, -inf
    %1543 = vmax.xlane.f32.xlu0 %v1542
    %v1544 = vpop.xlane.xlu0 %1543
    %v1546 = vlaneseq
    %v1547 = vshrl.u32 %v1546, 7
    %v1548 = vsub.s32 0, %v1547
    %v1549 = vrot.slane %v1544, %v1548
    %v1550 = vlaneseq
    %v1551 = vshrl.u32 %v1550, 7
    %v1552 = vsub.s32 1, %v1551
    %v1553 = vrot.slane %v1544, %v1552
    %vm1556 = vcmp.eq.f32.partialorder %v1278, %v1549
    %vm1557 = vcmp.eq.f32.partialorder %v1280, %v1553
    %1559 = vbcast.lane.b32.xlu0 %v188, 256
    %v1560 = vpop.permute.xlu0 %1559
    %v1561 = vsel %vm1556, %v1560, 8
    %v1562 = vsel %vm1557, %v1560, 8
    %1563 = vset.pattern.permute.xlu0 0
    %1564 = vperm.xlu0 %1563, %v1561
    %v1565 = vpop.permute.xlu0 %1564
    %1566 = vset.pattern.permute.xlu0 0
    %1567 = vperm.xlu0 %1566, %v1562
    %v1568 = vpop.permute.xlu0 %1567
    %v1569 = vlaneseq
    %v1570 = vshrl.u32 %v1569, 7
    %v1571 = vsub.s32 %v188, %v1570
    %v1572 = vrot.slane %v1565, %v1571
    %v1573 = vlaneseq
    %v1574 = vshrl.u32 %v1573, 7
    %v1575 = vsub.s32 %v188, %v1574
    %v1576 = vrot.slane %v1568, %v1575
    %v1577 = vsel %vm1221, %v1576, %v1572
    %v1578 = vsel %vm1224, %v1577, 2147483647
    %v1579 = vand.u32 %v1578, 65535
    %v1580 = vshra.s32 %v1578, 16
    %v1581 = vcvt.s32.f32 %v1579
    %v1582 = vcvt.s32.f32 %v1580
    %1583 = vmin.xlane.f32.xlu0 %v1582
    %v1584 = vpop.xlane.xlu0 %1583
    %vm1585 = vcmp.eq.f32.partialorder %v1582, %v1584
    %v1586 = vsel %vm1585, %v1581, inf
    %1587 = vmin.xlane.f32.xlu0 %v1586
    %v1588 = vpop.xlane.xlu0 %1587
    %v1589 = vcvt.f32.s32 %v1588
    %v1590 = vcvt.f32.s32 %v1584
    %v1591 = vshll.u32 %v1590, 16
    %v1592 = vadd.s32 %v1591, %v1589
    %vm1593 = vcmp.eq.s32.totalorder %v188, %v1592
    %v1594 = vsel %vm1593, 1, 0
    %v1595 = vcvt.s32.f32 %v1594
    %v1597 = vsel %vm103, %v1538, 0
    %v1600 = vsel %vm103, %v1539, 0
    %1602 = vmatprep.subr.mxu0 0.0
    %1603 = vmatpush1.msra.mxu0 %v55
    %1604 = vmatprep.subr.mxu0 0.0
    %1605 = vmatpush1.msra.mxu0 %v57
    %1606 = vmatprep.subr.mxu0 0.0
    %1607 = vmatpush1.msra.mxu0 %v59
    %1608 = vmatprep.subr.mxu0 0.0
    %1609 = vmatpush1.msra.mxu0 %v61
    %1610 = vmatprep.subr.mxu0 0.0
    %1611 = vmatpush1.msra.mxu0 %v63
    %1612 = vmatprep.subr.mxu0 0.0
    %1613 = vmatpush1.msra.mxu0 %v65
    %1614 = vmatprep.subr.mxu0 0.0
    %1615 = vmatpush1.msra.mxu0 %v67
    %1616 = vmatprep.subr.mxu0 0.0
    %1617 = vmatpush1.msra.mxu0 %v69
    %1618 = vmatprep.subr.mxu0 0.0
    %1619 = vmatpush1.msra.mxu0 0.0
    %1620 = vmatprep.subr.mxu0 0.0
    %1621 = vmatpush1.msra.mxu0 0.0
    %1622 = vmatprep.subr.mxu0 0.0
    %1623 = vmatpush1.msra.mxu0 0.0
    %1624 = vmatprep.subr.mxu0 0.0
    %1625 = vmatpush1.msra.mxu0 0.0
    %1626 = vmatprep.subr.mxu0 0.0
    %1627 = vmatpush1.msra.mxu0 0.0
    %1628 = vmatprep.subr.mxu0 0.0
    %1629 = vmatpush1.msra.mxu0 0.0
    %1630 = vmatprep.subr.mxu0 0.0
    %1631 = vmatpush1.msra.mxu0 0.0
    %1632 = vmatprep.subr.mxu0 0.0
    %1633 = vmatpush1.msra.mxu0 0.0
    %1634 = vmatprep.subr.mxu0 0.0
    %1635 = vmatpush1.msra.mxu0 0.0
    %1636 = vmatprep.subr.mxu0 0.0
    %1637 = vmatpush1.msra.mxu0 0.0
    %1638 = vmatprep.subr.mxu0 0.0
    %1639 = vmatpush1.msra.mxu0 0.0
    %1640 = vmatprep.subr.mxu0 0.0
    %1641 = vmatpush1.msra.mxu0 0.0
    %1642 = vmatprep.subr.mxu0 0.0
    %1643 = vmatpush1.msra.mxu0 0.0
    %1644 = vmatprep.subr.mxu0 0.0
    %1645 = vmatpush1.msra.mxu0 0.0
    %1646 = vmatprep.subr.mxu0 0.0
    %1647 = vmatpush1.msra.mxu0 0.0
    %1648 = vmatprep.subr.mxu0 0.0
    %1649 = vmatpush1.msra.mxu0 0.0
    %1650 = vmatprep.subr.mxu0 0.0
    %1651 = vmatpush1.msra.mxu0 0.0
    %1652 = vmatprep.subr.mxu0 0.0
    %1653 = vmatpush1.msra.mxu0 0.0
    %1654 = vmatprep.subr.mxu0 0.0
    %1655 = vmatpush1.msra.mxu0 0.0
    %1656 = vmatprep.subr.mxu0 0.0
    %1657 = vmatpush1.msra.mxu0 0.0
    %1658 = vmatprep.subr.mxu0 0.0
    %1659 = vmatpush1.msra.mxu0 0.0
    %1660 = vmatprep.subr.mxu0 0.0
    %1661 = vmatpush1.msra.mxu0 0.0
    %1662 = vmatprep.subr.mxu0 0.0
    %1663 = vmatpush1.msra.mxu0 0.0
    %1664 = vmatprep.subr.mxu0 0.0
    %1665 = vmatpush1.msra.mxu0 0.0
    %1666 = vmatprep.mubr.f32.mxu0 0.0
    %1667 = vmatmul.mubr.f32.gmra.mrb[0].mxu0 %v1597
    %v1668 = vpop.f32.mrb[0].mxu0
    %v1669 = vadd.f32 0.0, %v1668
    %v1670 = vpop.f32.mrb[0].mxu0
    %1671 = vmatprep.mubr.f32.mxu0 0.0
    %1672 = vmatmul.mubr.f32.gmra.mrb[0].mxu0 %v1600
    %v1673 = vpop.f32.mrb[0].mxu0
    %v1674 = vadd.f32 0.0, %v1673
    %v1675 = vpop.f32.mrb[0].mxu0
    %1676 = vdwg.mxu0
    %v1679 = vunpack.c.l.s4 1966171168
    %v1680 = vunpack.c.0.s8 %v1679
    %v1681 = vlaneseq
    %v1682 = vshrl.u32 %v1681, 7
    %v1683 = vsub.s32 %v1680, %v1682
    %v1684 = vrot.slane %v1595, %v1683
    %v1685 = vcombine.high %v1684, %v1684
    %v1687 = vunpack.c.l.s4 1966171168
    %v1688 = vunpack.c.0.s8 %v1687
    %v1689 = vlaneseq
    %v1690 = vshrl.u32 %v1689, 7
    %v1691 = vsub.s32 %v1688, %v1690
    %v1692 = vrot.slane %v1684, %v1691
    %v1694 = vunpack.c.l.s4 1966171168
    %v1695 = vunpack.c.0.s8 %v1694
    %v1696 = vlaneseq
    %v1697 = vshrl.u32 %v1696, 7
    %v1698 = vsub.s32 %v1695, %v1697
    %v1699 = vrot.slane %v1685, %v1698
    %1701 = vrot.lane.b32.xlu0 %v1669, 64
    %v1702 = vpop.permute.xlu0 %1701
    %v1704 = vsel %vm1289, %v1692, 0
    %1706 = vmatprep.subr.mxu0 0.0
    %1707 = vmatpush1.msra.mxu0 %v1702
    %1708 = vmatprep.subr.mxu0 0.0
    %1709 = vmatpush1.msra.mxu0 0.0
    %1710 = vmatprep.subr.mxu0 0.0
    %1711 = vmatpush1.msra.mxu0 0.0
    %1712 = vmatprep.subr.mxu0 0.0
    %1713 = vmatpush1.msra.mxu0 0.0
    %1714 = vmatprep.subr.mxu0 0.0
    %1715 = vmatpush1.msra.mxu0 0.0
    %1716 = vmatprep.subr.mxu0 0.0
    %1717 = vmatpush1.msra.mxu0 0.0
    %1718 = vmatprep.subr.mxu0 0.0
    %1719 = vmatpush1.msra.mxu0 0.0
    %1720 = vmatprep.subr.mxu0 0.0
    %1721 = vmatpush1.msra.mxu0 0.0
    %1722 = vmatprep.subr.mxu0 0.0
    %1723 = vmatpush1.msra.mxu0 0.0
    %1724 = vmatprep.subr.mxu0 0.0
    %1725 = vmatpush1.msra.mxu0 0.0
    %1726 = vmatprep.subr.mxu0 0.0
    %1727 = vmatpush1.msra.mxu0 0.0
    %1728 = vmatprep.subr.mxu0 0.0
    %1729 = vmatpush1.msra.mxu0 0.0
    %1730 = vmatprep.subr.mxu0 0.0
    %1731 = vmatpush1.msra.mxu0 0.0
    %1732 = vmatprep.subr.mxu0 0.0
    %1733 = vmatpush1.msra.mxu0 0.0
    %1734 = vmatprep.subr.mxu0 0.0
    %1735 = vmatpush1.msra.mxu0 0.0
    %1736 = vmatprep.subr.mxu0 0.0
    %1737 = vmatpush1.msra.mxu0 0.0
    %1738 = vmatprep.subr.mxu0 0.0
    %1739 = vmatpush1.msra.mxu0 0.0
    %1740 = vmatprep.subr.mxu0 0.0
    %1741 = vmatpush1.msra.mxu0 0.0
    %1742 = vmatprep.subr.mxu0 0.0
    %1743 = vmatpush1.msra.mxu0 0.0
    %1744 = vmatprep.subr.mxu0 0.0
    %1745 = vmatpush1.msra.mxu0 0.0
    %1746 = vmatprep.subr.mxu0 0.0
    %1747 = vmatpush1.msra.mxu0 0.0
    %1748 = vmatprep.subr.mxu0 0.0
    %1749 = vmatpush1.msra.mxu0 0.0
    %1750 = vmatprep.subr.mxu0 0.0
    %1751 = vmatpush1.msra.mxu0 0.0
    %1752 = vmatprep.subr.mxu0 0.0
    %1753 = vmatpush1.msra.mxu0 0.0
    %1754 = vmatprep.subr.mxu0 0.0
    %1755 = vmatpush1.msra.mxu0 0.0
    %1756 = vmatprep.subr.mxu0 0.0
    %1757 = vmatpush1.msra.mxu0 0.0
    %1758 = vmatprep.subr.mxu0 0.0
    %1759 = vmatpush1.msra.mxu0 0.0
    %1760 = vmatprep.subr.mxu0 0.0
    %1761 = vmatpush1.msra.mxu0 0.0
    %1762 = vmatprep.subr.mxu0 0.0
    %1763 = vmatpush1.msra.mxu0 0.0
    %1764 = vmatprep.subr.mxu0 0.0
    %1765 = vmatpush1.msra.mxu0 0.0
    %1766 = vmatprep.subr.mxu0 0.0
    %1767 = vmatpush1.msra.mxu0 0.0
    %1768 = vmatprep.subr.mxu0 0.0
    %1769 = vmatpush1.msra.mxu0 0.0
    %1770 = vmatprep.mubr.f32.mxu0 0.0
    %1771 = vmatmul.mubr.f32.gmra.mrb[0].mxu0 %v1704
    %v1772 = vpop.f32.mrb[0].mxu0
    %v1773 = vadd.f32 0.0, %v1772
    %v1774 = vpop.f32.mrb[0].mxu0
    %1775 = vdwg.mxu0
    %1777 = vrot.lane.b32.xlu0 %v1674, 64
    %v1778 = vpop.permute.xlu0 %1777
    %v1780 = vsel %vm1289, %v1699, 0
    %1782 = vmatprep.subr.mxu0 0.0
    %1783 = vmatpush1.msra.mxu0 %v1778
    %1784 = vmatprep.subr.mxu0 0.0
    %1785 = vmatpush1.msra.mxu0 0.0
    %1786 = vmatprep.subr.mxu0 0.0
    %1787 = vmatpush1.msra.mxu0 0.0
    %1788 = vmatprep.subr.mxu0 0.0
    %1789 = vmatpush1.msra.mxu0 0.0
    %1790 = vmatprep.subr.mxu0 0.0
    %1791 = vmatpush1.msra.mxu0 0.0
    %1792 = vmatprep.subr.mxu0 0.0
    %1793 = vmatpush1.msra.mxu0 0.0
    %1794 = vmatprep.subr.mxu0 0.0
    %1795 = vmatpush1.msra.mxu0 0.0
    %1796 = vmatprep.subr.mxu0 0.0
    %1797 = vmatpush1.msra.mxu0 0.0
    %1798 = vmatprep.subr.mxu0 0.0
    %1799 = vmatpush1.msra.mxu0 0.0
    %1800 = vmatprep.subr.mxu0 0.0
    %1801 = vmatpush1.msra.mxu0 0.0
    %1802 = vmatprep.subr.mxu0 0.0
    %1803 = vmatpush1.msra.mxu0 0.0
    %1804 = vmatprep.subr.mxu0 0.0
    %1805 = vmatpush1.msra.mxu0 0.0
    %1806 = vmatprep.subr.mxu0 0.0
    %1807 = vmatpush1.msra.mxu0 0.0
    %1808 = vmatprep.subr.mxu0 0.0
    %1809 = vmatpush1.msra.mxu0 0.0
    %1810 = vmatprep.subr.mxu0 0.0
    %1811 = vmatpush1.msra.mxu0 0.0
    %1812 = vmatprep.subr.mxu0 0.0
    %1813 = vmatpush1.msra.mxu0 0.0
    %1814 = vmatprep.subr.mxu0 0.0
    %1815 = vmatpush1.msra.mxu0 0.0
    %1816 = vmatprep.subr.mxu0 0.0
    %1817 = vmatpush1.msra.mxu0 0.0
    %1818 = vmatprep.subr.mxu0 0.0
    %1819 = vmatpush1.msra.mxu0 0.0
    %1820 = vmatprep.subr.mxu0 0.0
    %1821 = vmatpush1.msra.mxu0 0.0
    %1822 = vmatprep.subr.mxu0 0.0
    %1823 = vmatpush1.msra.mxu0 0.0
    %1824 = vmatprep.subr.mxu0 0.0
    %1825 = vmatpush1.msra.mxu0 0.0
    %1826 = vmatprep.subr.mxu0 0.0
    %1827 = vmatpush1.msra.mxu0 0.0
    %1828 = vmatprep.subr.mxu0 0.0
    %1829 = vmatpush1.msra.mxu0 0.0
    %1830 = vmatprep.subr.mxu0 0.0
    %1831 = vmatpush1.msra.mxu0 0.0
    %1832 = vmatprep.subr.mxu0 0.0
    %1833 = vmatpush1.msra.mxu0 0.0
    %1834 = vmatprep.subr.mxu0 0.0
    %1835 = vmatpush1.msra.mxu0 0.0
    %1836 = vmatprep.subr.mxu0 0.0
    %1837 = vmatpush1.msra.mxu0 0.0
    %1838 = vmatprep.subr.mxu0 0.0
    %1839 = vmatpush1.msra.mxu0 0.0
    %1840 = vmatprep.subr.mxu0 0.0
    %1841 = vmatpush1.msra.mxu0 0.0
    %1842 = vmatprep.subr.mxu0 0.0
    %1843 = vmatpush1.msra.mxu0 0.0
    %1844 = vmatprep.subr.mxu0 0.0
    %1845 = vmatpush1.msra.mxu0 0.0
    %1846 = vmatprep.mubr.f32.mxu0 0.0
    %1847 = vmatmul.mubr.f32.gmra.mrb[0].mxu0 %v1780
    %v1848 = vpop.f32.mrb[0].mxu0
    %v1849 = vadd.f32 0.0, %v1848
    %v1850 = vpop.f32.mrb[0].mxu0
    %1851 = vdwg.mxu0
    %v1853 = vsel %vm103, %v1773, 0
    %v1855 = vsel %vm103, %v1669, 0
    %1857 = vmatprep.subr.mxu0 0.0
    %1858 = vmatpush1.xpose.msra.mxu0 %v1855
    %1859 = vmatprep.subr.mxu0 0.0
    %1860 = vmatpush1.xpose.msra.mxu0 0.0
    %1861 = vmatprep.subr.mxu0 0.0
    %1862 = vmatpush1.xpose.msra.mxu0 0.0
    %1863 = vmatprep.subr.mxu0 0.0
    %1864 = vmatpush1.xpose.msra.mxu0 0.0
    %1865 = vmatprep.subr.mxu0 0.0
    %1866 = vmatpush1.xpose.msra.mxu0 0.0
    %1867 = vmatprep.subr.mxu0 0.0
    %1868 = vmatpush1.xpose.msra.mxu0 0.0
    %1869 = vmatprep.subr.mxu0 0.0
    %1870 = vmatpush1.xpose.msra.mxu0 0.0
    %1871 = vmatprep.subr.mxu0 0.0
    %1872 = vmatpush1.xpose.msra.mxu0 0.0
    %1873 = vmatprep.subr.mxu0 0.0
    %1874 = vmatpush1.xpose.msra.mxu0 0.0
    %1875 = vmatprep.subr.mxu0 0.0
    %1876 = vmatpush1.xpose.msra.mxu0 0.0
    %1877 = vmatprep.subr.mxu0 0.0
    %1878 = vmatpush1.xpose.msra.mxu0 0.0
    %1879 = vmatprep.subr.mxu0 0.0
    %1880 = vmatpush1.xpose.msra.mxu0 0.0
    %1881 = vmatprep.subr.mxu0 0.0
    %1882 = vmatpush1.xpose.msra.mxu0 0.0
    %1883 = vmatprep.subr.mxu0 0.0
    %1884 = vmatpush1.xpose.msra.mxu0 0.0
    %1885 = vmatprep.subr.mxu0 0.0
    %1886 = vmatpush1.xpose.msra.mxu0 0.0
    %1887 = vmatprep.subr.mxu0 0.0
    %1888 = vmatpush1.xpose.msra.mxu0 0.0
    %1889 = vmatprep.subr.mxu0 0.0
    %1890 = vmatpush1.xpose.msra.mxu0 0.0
    %1891 = vmatprep.subr.mxu0 0.0
    %1892 = vmatpush1.xpose.msra.mxu0 0.0
    %1893 = vmatprep.subr.mxu0 0.0
    %1894 = vmatpush1.xpose.msra.mxu0 0.0
    %1895 = vmatprep.subr.mxu0 0.0
    %1896 = vmatpush1.xpose.msra.mxu0 0.0
    %1897 = vmatprep.subr.mxu0 0.0
    %1898 = vmatpush1.xpose.msra.mxu0 0.0
    %1899 = vmatprep.subr.mxu0 0.0
    %1900 = vmatpush1.xpose.msra.mxu0 0.0
    %1901 = vmatprep.subr.mxu0 0.0
    %1902 = vmatpush1.xpose.msra.mxu0 0.0
    %1903 = vmatprep.subr.mxu0 0.0
    %1904 = vmatpush1.xpose.msra.mxu0 0.0
    %1905 = vmatprep.subr.mxu0 0.0
    %1906 = vmatpush1.xpose.msra.mxu0 0.0
    %1907 = vmatprep.subr.mxu0 0.0
    %1908 = vmatpush1.xpose.msra.mxu0 0.0
    %1909 = vmatprep.subr.mxu0 0.0
    %1910 = vmatpush1.xpose.msra.mxu0 0.0
    %1911 = vmatprep.subr.mxu0 0.0
    %1912 = vmatpush1.xpose.msra.mxu0 0.0
    %1913 = vmatprep.subr.mxu0 0.0
    %1914 = vmatpush1.xpose.msra.mxu0 0.0
    %1915 = vmatprep.subr.mxu0 0.0
    %1916 = vmatpush1.xpose.msra.mxu0 0.0
    %1917 = vmatprep.subr.mxu0 0.0
    %1918 = vmatpush1.xpose.msra.mxu0 0.0
    %1919 = vmatprep.subr.mxu0 0.0
    %1920 = vmatpush1.xpose.msra.mxu0 0.0
    %1921 = vmatprep.mubr.f32.mxu0 0.0
    %1922 = vmatmul.mubr.f32.gmra.mrb[0].mxu0 %v1853
    %v1923 = vpop.f32.mrb[0].mxu0
    %v1924 = vadd.f32 0.0, %v1923
    %v1925 = vpop.f32.mrb[0].mxu0
    %1926 = vdwg.mxu0
    %v1928 = vsel %vm103, %v1849, 0
    %v1930 = vsel %vm103, %v1674, 0
    %1932 = vmatprep.subr.mxu0 0.0
    %1933 = vmatpush1.xpose.msra.mxu0 %v1930
    %1934 = vmatprep.subr.mxu0 0.0
    %1935 = vmatpush1.xpose.msra.mxu0 0.0
    %1936 = vmatprep.subr.mxu0 0.0
    %1937 = vmatpush1.xpose.msra.mxu0 0.0
    %1938 = vmatprep.subr.mxu0 0.0
    %1939 = vmatpush1.xpose.msra.mxu0 0.0
    %1940 = vmatprep.subr.mxu0 0.0
    %1941 = vmatpush1.xpose.msra.mxu0 0.0
    %1942 = vmatprep.subr.mxu0 0.0
    %1943 = vmatpush1.xpose.msra.mxu0 0.0
    %1944 = vmatprep.subr.mxu0 0.0
    %1945 = vmatpush1.xpose.msra.mxu0 0.0
    %1946 = vmatprep.subr.mxu0 0.0
    %1947 = vmatpush1.xpose.msra.mxu0 0.0
    %1948 = vmatprep.subr.mxu0 0.0
    %1949 = vmatpush1.xpose.msra.mxu0 0.0
    %1950 = vmatprep.subr.mxu0 0.0
    %1951 = vmatpush1.xpose.msra.mxu0 0.0
    %1952 = vmatprep.subr.mxu0 0.0
    %1953 = vmatpush1.xpose.msra.mxu0 0.0
    %1954 = vmatprep.subr.mxu0 0.0
    %1955 = vmatpush1.xpose.msra.mxu0 0.0
    %1956 = vmatprep.subr.mxu0 0.0
    %1957 = vmatpush1.xpose.msra.mxu0 0.0
    %1958 = vmatprep.subr.mxu0 0.0
    %1959 = vmatpush1.xpose.msra.mxu0 0.0
    %1960 = vmatprep.subr.mxu0 0.0
    %1961 = vmatpush1.xpose.msra.mxu0 0.0
    %1962 = vmatprep.subr.mxu0 0.0
    %1963 = vmatpush1.xpose.msra.mxu0 0.0
    %1964 = vmatprep.subr.mxu0 0.0
    %1965 = vmatpush1.xpose.msra.mxu0 0.0
    %1966 = vmatprep.subr.mxu0 0.0
    %1967 = vmatpush1.xpose.msra.mxu0 0.0
    %1968 = vmatprep.subr.mxu0 0.0
    %1969 = vmatpush1.xpose.msra.mxu0 0.0
    %1970 = vmatprep.subr.mxu0 0.0
    %1971 = vmatpush1.xpose.msra.mxu0 0.0
    %1972 = vmatprep.subr.mxu0 0.0
    %1973 = vmatpush1.xpose.msra.mxu0 0.0
    %1974 = vmatprep.subr.mxu0 0.0
    %1975 = vmatpush1.xpose.msra.mxu0 0.0
    %1976 = vmatprep.subr.mxu0 0.0
    %1977 = vmatpush1.xpose.msra.mxu0 0.0
    %1978 = vmatprep.subr.mxu0 0.0
    %1979 = vmatpush1.xpose.msra.mxu0 0.0
    %1980 = vmatprep.subr.mxu0 0.0
    %1981 = vmatpush1.xpose.msra.mxu0 0.0
    %1982 = vmatprep.subr.mxu0 0.0
    %1983 = vmatpush1.xpose.msra.mxu0 0.0
    %1984 = vmatprep.subr.mxu0 0.0
    %1985 = vmatpush1.xpose.msra.mxu0 0.0
    %1986 = vmatprep.subr.mxu0 0.0
    %1987 = vmatpush1.xpose.msra.mxu0 0.0
    %1988 = vmatprep.subr.mxu0 0.0
    %1989 = vmatpush1.xpose.msra.mxu0 0.0
    %1990 = vmatprep.subr.mxu0 0.0
    %1991 = vmatpush1.xpose.msra.mxu0 0.0
    %1992 = vmatprep.subr.mxu0 0.0
    %1993 = vmatpush1.xpose.msra.mxu0 0.0
    %1994 = vmatprep.subr.mxu0 0.0
    %1995 = vmatpush1.xpose.msra.mxu0 0.0
    %1996 = vmatprep.mubr.f32.mxu0 0.0
    %1997 = vmatmul.mubr.f32.gmra.mrb[0].mxu0 %v1928
    %v1998 = vpop.f32.mrb[0].mxu0
    %v1999 = vadd.f32 0.0, %v1998
    %v2000 = vpop.f32.mrb[0].mxu0
    %2001 = vdwg.mxu0
    %v2004 = vrot.slane %v1999, 7
    %v2005 = vsel %vm1221, %v2004, %v1924
    %v2007 = vsel %vm1593, 0.0, %v2005
    %v2008 = vsel %vm1224, %v2007, -inf
    %2009 = vmax.xlane.f32.xlu0 %v2008
    %v2010 = vpop.xlane.xlu0 %2009
    %v2011 = vsub.f32 %v2007, %v2010
    %v2012 = vmul.f32 %v2011, 1.442695
    %v2013 = vpow.pop %v2012
    %v2014 = vsel %vm1224, %v2013, 0.0
    %2015 = vadd.xlane.f32.xlu0 %v2014
    %v2016 = vpop.xlane.xlu0 %2015
    %v2017 = vrcp.pop %v2016
    %v2018 = vmul.f32 %v2013, %v2017
    %v2021 = vunpack.c.l.s4 1966171168
    %v2022 = vunpack.c.0.s8 %v2021
    %v2023 = vlaneseq
    %v2024 = vshrl.u32 %v2023, 7
    %v2025 = vsub.s32 %v2022, %v2024
    %v2026 = vrot.slane %v2018, %v2025
    %v2027 = vcombine.high %v2026, %v2026
    %v2029 = vunpack.c.l.s4 1966171168
    %v2030 = vunpack.c.0.s8 %v2029
    %v2031 = vlaneseq
    %v2032 = vshrl.u32 %v2031, 7
    %v2033 = vsub.s32 %v2030, %v2032
    %v2034 = vrot.slane %v2026, %v2033
    %v2036 = vunpack.c.l.s4 1966171168
    %v2037 = vunpack.c.0.s8 %v2036
    %v2038 = vlaneseq
    %v2039 = vshrl.u32 %v2038, 7
    %v2040 = vsub.s32 %v2037, %v2039
    %v2041 = vrot.slane %v2027, %v2040
    %v2042 = vsel %vm1289, %v2034, 0
    %2044 = vmatprep.subr.mxu0 0.0
    %2045 = vmatpush1.msra.mxu0 %v1538
    %2046 = vmatprep.subr.mxu0 0.0
    %2047 = vmatpush1.msra.mxu0 0.0
    %2048 = vmatprep.subr.mxu0 0.0
    %2049 = vmatpush1.msra.mxu0 0.0
    %2050 = vmatprep.subr.mxu0 0.0
    %2051 = vmatpush1.msra.mxu0 0.0
    %2052 = vmatprep.subr.mxu0 0.0
    %2053 = vmatpush1.msra.mxu0 0.0
    %2054 = vmatprep.subr.mxu0 0.0
    %2055 = vmatpush1.msra.mxu0 0.0
    %2056 = vmatprep.subr.mxu0 0.0
    %2057 = vmatpush1.msra.mxu0 0.0
    %2058 = vmatprep.subr.mxu0 0.0
    %2059 = vmatpush1.msra.mxu0 0.0
    %2060 = vmatprep.subr.mxu0 0.0
    %2061 = vmatpush1.msra.mxu0 0.0
    %2062 = vmatprep.subr.mxu0 0.0
    %2063 = vmatpush1.msra.mxu0 0.0
    %2064 = vmatprep.subr.mxu0 0.0
    %2065 = vmatpush1.msra.mxu0 0.0
    %2066 = vmatprep.subr.mxu0 0.0
    %2067 = vmatpush1.msra.mxu0 0.0
    %2068 = vmatprep.subr.mxu0 0.0
    %2069 = vmatpush1.msra.mxu0 0.0
    %2070 = vmatprep.subr.mxu0 0.0
    %2071 = vmatpush1.msra.mxu0 0.0
    %2072 = vmatprep.subr.mxu0 0.0
    %2073 = vmatpush1.msra.mxu0 0.0
    %2074 = vmatprep.subr.mxu0 0.0
    %2075 = vmatpush1.msra.mxu0 0.0
    %2076 = vmatprep.subr.mxu0 0.0
    %2077 = vmatpush1.msra.mxu0 0.0
    %2078 = vmatprep.subr.mxu0 0.0
    %2079 = vmatpush1.msra.mxu0 0.0
    %2080 = vmatprep.subr.mxu0 0.0
    %2081 = vmatpush1.msra.mxu0 0.0
    %2082 = vmatprep.subr.mxu0 0.0
    %2083 = vmatpush1.msra.mxu0 0.0
    %2084 = vmatprep.subr.mxu0 0.0
    %2085 = vmatpush1.msra.mxu0 0.0
    %2086 = vmatprep.subr.mxu0 0.0
    %2087 = vmatpush1.msra.mxu0 0.0
    %2088 = vmatprep.subr.mxu0 0.0
    %2089 = vmatpush1.msra.mxu0 0.0
    %2090 = vmatprep.subr.mxu0 0.0
    %2091 = vmatpush1.msra.mxu0 0.0
    %2092 = vmatprep.subr.mxu0 0.0
    %2093 = vmatpush1.msra.mxu0 0.0
    %2094 = vmatprep.subr.mxu0 0.0
    %2095 = vmatpush1.msra.mxu0 0.0
    %2096 = vmatprep.subr.mxu0 0.0
    %2097 = vmatpush1.msra.mxu0 0.0
    %2098 = vmatprep.subr.mxu0 0.0
    %2099 = vmatpush1.msra.mxu0 0.0
    %2100 = vmatprep.subr.mxu0 0.0
    %2101 = vmatpush1.msra.mxu0 0.0
    %2102 = vmatprep.subr.mxu0 0.0
    %2103 = vmatpush1.msra.mxu0 0.0
    %2104 = vmatprep.subr.mxu0 0.0
    %2105 = vmatpush1.msra.mxu0 0.0
    %2106 = vmatprep.subr.mxu0 0.0
    %2107 = vmatpush1.msra.mxu0 0.0
    %2108 = vmatprep.mubr.f32.mxu0 0.0
    %2109 = vmatmul.mubr.f32.gmra.mrb[0].mxu0 %v2042
    %v2110 = vpop.f32.mrb[0].mxu0
    %v2111 = vadd.f32 0.0, %v2110
    %v2112 = vpop.f32.mrb[0].mxu0
    %2113 = vdwg.mxu0
    %v2114 = vsel %vm1289, %v2041, 0
    %2116 = vmatprep.subr.mxu0 0.0
    %2117 = vmatpush1.msra.mxu0 %v1539
    %2118 = vmatprep.subr.mxu0 0.0
    %2119 = vmatpush1.msra.mxu0 0.0
    %2120 = vmatprep.subr.mxu0 0.0
    %2121 = vmatpush1.msra.mxu0 0.0
    %2122 = vmatprep.subr.mxu0 0.0
    %2123 = vmatpush1.msra.mxu0 0.0
    %2124 = vmatprep.subr.mxu0 0.0
    %2125 = vmatpush1.msra.mxu0 0.0
    %2126 = vmatprep.subr.mxu0 0.0
    %2127 = vmatpush1.msra.mxu0 0.0
    %2128 = vmatprep.subr.mxu0 0.0
    %2129 = vmatpush1.msra.mxu0 0.0
    %2130 = vmatprep.subr.mxu0 0.0
    %2131 = vmatpush1.msra.mxu0 0.0
    %2132 = vmatprep.subr.mxu0 0.0
    %2133 = vmatpush1.msra.mxu0 0.0
    %2134 = vmatprep.subr.mxu0 0.0
    %2135 = vmatpush1.msra.mxu0 0.0
    %2136 = vmatprep.subr.mxu0 0.0
    %2137 = vmatpush1.msra.mxu0 0.0
    %2138 = vmatprep.subr.mxu0 0.0
    %2139 = vmatpush1.msra.mxu0 0.0
    %2140 = vmatprep.subr.mxu0 0.0
    %2141 = vmatpush1.msra.mxu0 0.0
    %2142 = vmatprep.subr.mxu0 0.0
    %2143 = vmatpush1.msra.mxu0 0.0
    %2144 = vmatprep.subr.mxu0 0.0
    %2145 = vmatpush1.msra.mxu0 0.0
    %2146 = vmatprep.subr.mxu0 0.0
    %2147 = vmatpush1.msra.mxu0 0.0
    %2148 = vmatprep.subr.mxu0 0.0
    %2149 = vmatpush1.msra.mxu0 0.0
    %2150 = vmatprep.subr.mxu0 0.0
    %2151 = vmatpush1.msra.mxu0 0.0
    %2152 = vmatprep.subr.mxu0 0.0
    %2153 = vmatpush1.msra.mxu0 0.0
    %2154 = vmatprep.subr.mxu0 0.0
    %2155 = vmatpush1.msra.mxu0 0.0
    %2156 = vmatprep.subr.mxu0 0.0
    %2157 = vmatpush1.msra.mxu0 0.0
    %2158 = vmatprep.subr.mxu0 0.0
    %2159 = vmatpush1.msra.mxu0 0.0
    %2160 = vmatprep.subr.mxu0 0.0
    %2161 = vmatpush1.msra.mxu0 0.0
    %2162 = vmatprep.subr.mxu0 0.0
    %2163 = vmatpush1.msra.mxu0 0.0
    %2164 = vmatprep.subr.mxu0 0.0
    %2165 = vmatpush1.msra.mxu0 0.0
    %2166 = vmatprep.subr.mxu0 0.0
    %2167 = vmatpush1.msra.mxu0 0.0
    %2168 = vmatprep.subr.mxu0 0.0
    %2169 = vmatpush1.msra.mxu0 0.0
    %2170 = vmatprep.subr.mxu0 0.0
    %2171 = vmatpush1.msra.mxu0 0.0
    %2172 = vmatprep.subr.mxu0 0.0
    %2173 = vmatpush1.msra.mxu0 0.0
    %2174 = vmatprep.subr.mxu0 0.0
    %2175 = vmatpush1.msra.mxu0 0.0
    %2176 = vmatprep.subr.mxu0 0.0
    %2177 = vmatpush1.msra.mxu0 0.0
    %2178 = vmatprep.subr.mxu0 0.0
    %2179 = vmatpush1.msra.mxu0 0.0
    %2180 = vmatprep.mubr.f32.mxu0 0.0
    %2181 = vmatmul.mubr.f32.gmra.mrb[0].mxu0 %v2114
    %v2182 = vpop.f32.mrb[0].mxu0
    %v2183 = vadd.f32 0.0, %v2182
    %v2184 = vpop.f32.mrb[0].mxu0
    %2185 = vdwg.mxu0
    %v2188 = vrot.slane %v1439, 7
    %v2189 = vsel %vm1221, %v2188, %v1359
    %2192 = vrot.lane.b32.xlu0 %v27, 96
    %v2193 = vpop.permute.xlu0 %2192
    %v2195 = vsel %vm103, %v2189, %v2193
    %vm2196 = vcmask 785408
    %v2198 = vsel %vm2196, %v2195, 0
    %2200 = vmatprep.subr.mxu0 0.0
    %2201 = vmatpush1.msra.mxu0 %v80
    %2202 = vmatprep.subr.mxu0 0.0
    %2203 = vmatpush1.msra.mxu0 %v81
    %2204 = vmatprep.subr.mxu0 0.0
    %2205 = vmatpush1.msra.mxu0 %v82
    %2206 = vmatprep.subr.mxu0 0.0
    %2207 = vmatpush1.msra.mxu0 %v83
    %2208 = vmatprep.subr.mxu0 0.0
    %2209 = vmatpush1.msra.mxu0 %v84
    %2210 = vmatprep.subr.mxu0 0.0
    %2211 = vmatpush1.msra.mxu0 %v85
    %2212 = vmatprep.subr.mxu0 0.0
    %2213 = vmatpush1.msra.mxu0 %v86
    %2214 = vmatprep.subr.mxu0 0.0
    %2215 = vmatpush1.msra.mxu0 %v87
    %2216 = vmatprep.subr.mxu0 0.0
    %2217 = vmatpush1.msra.mxu0 %v88
    %2218 = vmatprep.subr.mxu0 0.0
    %2219 = vmatpush1.msra.mxu0 %v89
    %2220 = vmatprep.subr.mxu0 0.0
    %2221 = vmatpush1.msra.mxu0 %v90
    %2222 = vmatprep.subr.mxu0 0.0
    %2223 = vmatpush1.msra.mxu0 %v91
    %2224 = vmatprep.subr.mxu0 0.0
    %2225 = vmatpush1.msra.mxu0 0.0
    %2226 = vmatprep.subr.mxu0 0.0
    %2227 = vmatpush1.msra.mxu0 0.0
    %2228 = vmatprep.subr.mxu0 0.0
    %2229 = vmatpush1.msra.mxu0 0.0
    %2230 = vmatprep.subr.mxu0 0.0
    %2231 = vmatpush1.msra.mxu0 0.0
    %2232 = vmatprep.subr.mxu0 0.0
    %2233 = vmatpush1.msra.mxu0 0.0
    %2234 = vmatprep.subr.mxu0 0.0
    %2235 = vmatpush1.msra.mxu0 0.0
    %2236 = vmatprep.subr.mxu0 0.0
    %2237 = vmatpush1.msra.mxu0 0.0
    %2238 = vmatprep.subr.mxu0 0.0
    %2239 = vmatpush1.msra.mxu0 0.0
    %2240 = vmatprep.subr.mxu0 0.0
    %2241 = vmatpush1.msra.mxu0 0.0
    %2242 = vmatprep.subr.mxu0 0.0
    %2243 = vmatpush1.msra.mxu0 0.0
    %2244 = vmatprep.subr.mxu0 0.0
    %2245 = vmatpush1.msra.mxu0 0.0
    %2246 = vmatprep.subr.mxu0 0.0
    %2247 = vmatpush1.msra.mxu0 0.0
    %2248 = vmatprep.subr.mxu0 0.0
    %2249 = vmatpush1.msra.mxu0 0.0
    %2250 = vmatprep.subr.mxu0 0.0
    %2251 = vmatpush1.msra.mxu0 0.0
    %2252 = vmatprep.subr.mxu0 0.0
    %2253 = vmatpush1.msra.mxu0 0.0
    %2254 = vmatprep.subr.mxu0 0.0
    %2255 = vmatpush1.msra.mxu0 0.0
    %2256 = vmatprep.subr.mxu0 0.0
    %2257 = vmatpush1.msra.mxu0 0.0
    %2258 = vmatprep.subr.mxu0 0.0
    %2259 = vmatpush1.msra.mxu0 0.0
    %2260 = vmatprep.subr.mxu0 0.0
    %2261 = vmatpush1.msra.mxu0 0.0
    %2262 = vmatprep.subr.mxu0 0.0
    %2263 = vmatpush1.msra.mxu0 0.0
    %2264 = vmatprep.mubr.f32.mxu0 0.0
    %2265 = vmatmul.mubr.f32.gmra.mrb[0].mxu0 %v2198
    %v2266 = vpop.f32.mrb[0].mxu0
    %v2267 = vadd.f32 0.0, %v2266
    %v2268 = vpop.f32.mrb[0].mxu0
    %2269 = vdwg.mxu0
    %v2270 = vtanh.pop %v2267
    %2283 = vrot.lane.b32.xlu0 %v80, 32
    %v2284 = vpop.permute.xlu0 %2283
    %2285 = vrot.lane.b32.xlu0 %v81, 32
    %v2286 = vpop.permute.xlu0 %2285
    %2287 = vrot.lane.b32.xlu0 %v82, 32
    %v2288 = vpop.permute.xlu0 %2287
    %2289 = vrot.lane.b32.xlu0 %v83, 32
    %v2290 = vpop.permute.xlu0 %2289
    %2291 = vrot.lane.b32.xlu0 %v84, 32
    %v2292 = vpop.permute.xlu0 %2291
    %2293 = vrot.lane.b32.xlu0 %v85, 32
    %v2294 = vpop.permute.xlu0 %2293
    %2295 = vrot.lane.b32.xlu0 %v86, 32
    %v2296 = vpop.permute.xlu0 %2295
    %2297 = vrot.lane.b32.xlu0 %v87, 32
    %v2298 = vpop.permute.xlu0 %2297
    %2299 = vrot.lane.b32.xlu0 %v88, 32
    %v2300 = vpop.permute.xlu0 %2299
    %2301 = vrot.lane.b32.xlu0 %v89, 32
    %v2302 = vpop.permute.xlu0 %2301
    %2303 = vrot.lane.b32.xlu0 %v90, 32
    %v2304 = vpop.permute.xlu0 %2303
    %2305 = vrot.lane.b32.xlu0 %v91, 32
    %v2306 = vpop.permute.xlu0 %2305
    %v2320 = vsel %vm2196, %v2270, 0
    %2322 = vmatprep.subr.mxu0 0.0
    %2323 = vmatpush1.msra.mxu0 %v2284
    %2324 = vmatprep.subr.mxu0 0.0
    %2325 = vmatpush1.msra.mxu0 %v2286
    %2326 = vmatprep.subr.mxu0 0.0
    %2327 = vmatpush1.msra.mxu0 %v2288
    %2328 = vmatprep.subr.mxu0 0.0
    %2329 = vmatpush1.msra.mxu0 %v2290
    %2330 = vmatprep.subr.mxu0 0.0
    %2331 = vmatpush1.msra.mxu0 %v2292
    %2332 = vmatprep.subr.mxu0 0.0
    %2333 = vmatpush1.msra.mxu0 %v2294
    %2334 = vmatprep.subr.mxu0 0.0
    %2335 = vmatpush1.msra.mxu0 %v2296
    %2336 = vmatprep.subr.mxu0 0.0
    %2337 = vmatpush1.msra.mxu0 %v2298
    %2338 = vmatprep.subr.mxu0 0.0
    %2339 = vmatpush1.msra.mxu0 %v2300
    %2340 = vmatprep.subr.mxu0 0.0
    %2341 = vmatpush1.msra.mxu0 %v2302
    %2342 = vmatprep.subr.mxu0 0.0
    %2343 = vmatpush1.msra.mxu0 %v2304
    %2344 = vmatprep.subr.mxu0 0.0
    %2345 = vmatpush1.msra.mxu0 %v2306
    %2346 = vmatprep.subr.mxu0 0.0
    %2347 = vmatpush1.msra.mxu0 0.0
    %2348 = vmatprep.subr.mxu0 0.0
    %2349 = vmatpush1.msra.mxu0 0.0
    %2350 = vmatprep.subr.mxu0 0.0
    %2351 = vmatpush1.msra.mxu0 0.0
    %2352 = vmatprep.subr.mxu0 0.0
    %2353 = vmatpush1.msra.mxu0 0.0
    %2354 = vmatprep.subr.mxu0 0.0
    %2355 = vmatpush1.msra.mxu0 0.0
    %2356 = vmatprep.subr.mxu0 0.0
    %2357 = vmatpush1.msra.mxu0 0.0
    %2358 = vmatprep.subr.mxu0 0.0
    %2359 = vmatpush1.msra.mxu0 0.0
    %2360 = vmatprep.subr.mxu0 0.0
    %2361 = vmatpush1.msra.mxu0 0.0
    %2362 = vmatprep.subr.mxu0 0.0
    %2363 = vmatpush1.msra.mxu0 0.0
    %2364 = vmatprep.subr.mxu0 0.0
    %2365 = vmatpush1.msra.mxu0 0.0
    %2366 = vmatprep.subr.mxu0 0.0
    %2367 = vmatpush1.msra.mxu0 0.0
    %2368 = vmatprep.subr.mxu0 0.0
    %2369 = vmatpush1.msra.mxu0 0.0
    %2370 = vmatprep.subr.mxu0 0.0
    %2371 = vmatpush1.msra.mxu0 0.0
    %2372 = vmatprep.subr.mxu0 0.0
    %2373 = vmatpush1.msra.mxu0 0.0
    %2374 = vmatprep.subr.mxu0 0.0
    %2375 = vmatpush1.msra.mxu0 0.0
    %2376 = vmatprep.subr.mxu0 0.0
    %2377 = vmatpush1.msra.mxu0 0.0
    %2378 = vmatprep.subr.mxu0 0.0
    %2379 = vmatpush1.msra.mxu0 0.0
    %2380 = vmatprep.subr.mxu0 0.0
    %2381 = vmatpush1.msra.mxu0 0.0
    %2382 = vmatprep.subr.mxu0 0.0
    %2383 = vmatpush1.msra.mxu0 0.0
    %2384 = vmatprep.subr.mxu0 0.0
    %2385 = vmatpush1.msra.mxu0 0.0
    %2386 = vmatprep.mubr.f32.mxu0 0.0
    %2387 = vmatmul.mubr.f32.gmra.mrb[0].mxu0 %v2320
    %v2388 = vpop.f32.mrb[0].mxu0
    %v2389 = vadd.f32 %v71, %v2388
    %v2390 = vpop.f32.mrb[0].mxu0
    %2391 = vdwg.mxu0
    %v2392 = vmul.f32 %v2389, 0.5
    %v2393 = vtanh.pop %v2392
    %v2394 = vadd.f32 %v2393, 1.0
    %v2395 = vmul.f32 %v2394, 0.5
    %v2398 = vrot.slane %v2183, 7
    %v2399 = vsel %vm1221, %v2398, %v2111
    %v2400 = vsel %vm103, %v2399, 0
    %2402 = vmatprep.subr.mxu0 0.0
    %2403 = vmatpush1.msra.mxu0 %v72
    %2404 = vmatprep.subr.mxu0 0.0
    %2405 = vmatpush1.msra.mxu0 %v73
    %2406 = vmatprep.subr.mxu0 0.0
    %2407 = vmatpush1.msra.mxu0 %v74
    %2408 = vmatprep.subr.mxu0 0.0
    %2409 = vmatpush1.msra.mxu0 %v75
    %2410 = vmatprep.subr.mxu0 0.0
    %2411 = vmatpush1.msra.mxu0 %v76
    %2412 = vmatprep.subr.mxu0 0.0
    %2413 = vmatpush1.msra.mxu0 %v77
    %2414 = vmatprep.subr.mxu0 0.0
    %2415 = vmatpush1.msra.mxu0 %v78
    %2416 = vmatprep.subr.mxu0 0.0
    %2417 = vmatpush1.msra.mxu0 %v79
    %2418 = vmatprep.subr.mxu0 0.0
    %2419 = vmatpush1.msra.mxu0 0.0
    %2420 = vmatprep.subr.mxu0 0.0
    %2421 = vmatpush1.msra.mxu0 0.0
    %2422 = vmatprep.subr.mxu0 0.0
    %2423 = vmatpush1.msra.mxu0 0.0
    %2424 = vmatprep.subr.mxu0 0.0
    %2425 = vmatpush1.msra.mxu0 0.0
    %2426 = vmatprep.subr.mxu0 0.0
    %2427 = vmatpush1.msra.mxu0 0.0
    %2428 = vmatprep.subr.mxu0 0.0
    %2429 = vmatpush1.msra.mxu0 0.0
    %2430 = vmatprep.subr.mxu0 0.0
    %2431 = vmatpush1.msra.mxu0 0.0
    %2432 = vmatprep.subr.mxu0 0.0
    %2433 = vmatpush1.msra.mxu0 0.0
    %2434 = vmatprep.subr.mxu0 0.0
    %2435 = vmatpush1.msra.mxu0 0.0
    %2436 = vmatprep.subr.mxu0 0.0
    %2437 = vmatpush1.msra.mxu0 0.0
    %2438 = vmatprep.subr.mxu0 0.0
    %2439 = vmatpush1.msra.mxu0 0.0
    %2440 = vmatprep.subr.mxu0 0.0
    %2441 = vmatpush1.msra.mxu0 0.0
    %2442 = vmatprep.subr.mxu0 0.0
    %2443 = vmatpush1.msra.mxu0 0.0
    %2444 = vmatprep.subr.mxu0 0.0
    %2445 = vmatpush1.msra.mxu0 0.0
    %2446 = vmatprep.subr.mxu0 0.0
    %2447 = vmatpush1.msra.mxu0 0.0
    %2448 = vmatprep.subr.mxu0 0.0
    %2449 = vmatpush1.msra.mxu0 0.0
    %2450 = vmatprep.subr.mxu0 0.0
    %2451 = vmatpush1.msra.mxu0 0.0
    %2452 = vmatprep.subr.mxu0 0.0
    %2453 = vmatpush1.msra.mxu0 0.0
    %2454 = vmatprep.subr.mxu0 0.0
    %2455 = vmatpush1.msra.mxu0 0.0
    %2456 = vmatprep.subr.mxu0 0.0
    %2457 = vmatpush1.msra.mxu0 0.0
    %2458 = vmatprep.subr.mxu0 0.0
    %2459 = vmatpush1.msra.mxu0 0.0
    %2460 = vmatprep.subr.mxu0 0.0
    %2461 = vmatpush1.msra.mxu0 0.0
    %2462 = vmatprep.subr.mxu0 0.0
    %2463 = vmatpush1.msra.mxu0 0.0
    %2464 = vmatprep.subr.mxu0 0.0
    %2465 = vmatpush1.msra.mxu0 0.0
    %2466 = vmatprep.mubr.f32.mxu0 0.0
    %2467 = vmatmul.mubr.f32.gmra.mrb[0].mxu0 %v2400
    %v2468 = vpop.f32.mrb[0].mxu0
    %v2469 = vadd.f32 0.0, %v2468
    %v2470 = vpop.f32.mrb[0].mxu0
    %2471 = vdwg.mxu0
    %v2472 = vtanh.pop %v2469
    %2481 = vrot.lane.b32.xlu0 %v72, 64
    %v2482 = vpop.permute.xlu0 %2481
    %2483 = vrot.lane.b32.xlu0 %v73, 64
    %v2484 = vpop.permute.xlu0 %2483
    %2485 = vrot.lane.b32.xlu0 %v74, 64
    %v2486 = vpop.permute.xlu0 %2485
    %2487 = vrot.lane.b32.xlu0 %v75, 64
    %v2488 = vpop.permute.xlu0 %2487
    %2489 = vrot.lane.b32.xlu0 %v76, 64
    %v2490 = vpop.permute.xlu0 %2489
    %2491 = vrot.lane.b32.xlu0 %v77, 64
    %v2492 = vpop.permute.xlu0 %2491
    %2493 = vrot.lane.b32.xlu0 %v78, 64
    %v2494 = vpop.permute.xlu0 %2493
    %2495 = vrot.lane.b32.xlu0 %v79, 64
    %v2496 = vpop.permute.xlu0 %2495
    %2506 = vrot.lane.b32.xlu0 %v71, 120
    %v2507 = vpop.permute.xlu0 %2506
    %v2510 = vsel %vm103, %v2472, 0
    %2512 = vmatprep.subr.mxu0 0.0
    %2513 = vmatpush1.msra.mxu0 %v2482
    %2514 = vmatprep.subr.mxu0 0.0
    %2515 = vmatpush1.msra.mxu0 %v2484
    %2516 = vmatprep.subr.mxu0 0.0
    %2517 = vmatpush1.msra.mxu0 %v2486
    %2518 = vmatprep.subr.mxu0 0.0
    %2519 = vmatpush1.msra.mxu0 %v2488
    %2520 = vmatprep.subr.mxu0 0.0
    %2521 = vmatpush1.msra.mxu0 %v2490
    %2522 = vmatprep.subr.mxu0 0.0
    %2523 = vmatpush1.msra.mxu0 %v2492
    %2524 = vmatprep.subr.mxu0 0.0
    %2525 = vmatpush1.msra.mxu0 %v2494
    %2526 = vmatprep.subr.mxu0 0.0
    %2527 = vmatpush1.msra.mxu0 %v2496
    %2528 = vmatprep.subr.mxu0 0.0
    %2529 = vmatpush1.msra.mxu0 0.0
    %2530 = vmatprep.subr.mxu0 0.0
    %2531 = vmatpush1.msra.mxu0 0.0
    %2532 = vmatprep.subr.mxu0 0.0
    %2533 = vmatpush1.msra.mxu0 0.0
    %2534 = vmatprep.subr.mxu0 0.0
    %2535 = vmatpush1.msra.mxu0 0.0
    %2536 = vmatprep.subr.mxu0 0.0
    %2537 = vmatpush1.msra.mxu0 0.0
    %2538 = vmatprep.subr.mxu0 0.0
    %2539 = vmatpush1.msra.mxu0 0.0
    %2540 = vmatprep.subr.mxu0 0.0
    %2541 = vmatpush1.msra.mxu0 0.0
    %2542 = vmatprep.subr.mxu0 0.0
    %2543 = vmatpush1.msra.mxu0 0.0
    %2544 = vmatprep.subr.mxu0 0.0
    %2545 = vmatpush1.msra.mxu0 0.0
    %2546 = vmatprep.subr.mxu0 0.0
    %2547 = vmatpush1.msra.mxu0 0.0
    %2548 = vmatprep.subr.mxu0 0.0
    %2549 = vmatpush1.msra.mxu0 0.0
    %2550 = vmatprep.subr.mxu0 0.0
    %2551 = vmatpush1.msra.mxu0 0.0
    %2552 = vmatprep.subr.mxu0 0.0
    %2553 = vmatpush1.msra.mxu0 0.0
    %2554 = vmatprep.subr.mxu0 0.0
    %2555 = vmatpush1.msra.mxu0 0.0
    %2556 = vmatprep.subr.mxu0 0.0
    %2557 = vmatpush1.msra.mxu0 0.0
    %2558 = vmatprep.subr.mxu0 0.0
    %2559 = vmatpush1.msra.mxu0 0.0
    %2560 = vmatprep.subr.mxu0 0.0
    %2561 = vmatpush1.msra.mxu0 0.0
    %2562 = vmatprep.subr.mxu0 0.0
    %2563 = vmatpush1.msra.mxu0 0.0
    %2564 = vmatprep.subr.mxu0 0.0
    %2565 = vmatpush1.msra.mxu0 0.0
    %2566 = vmatprep.subr.mxu0 0.0
    %2567 = vmatpush1.msra.mxu0 0.0
    %2568 = vmatprep.subr.mxu0 0.0
    %2569 = vmatpush1.msra.mxu0 0.0
    %2570 = vmatprep.subr.mxu0 0.0
    %2571 = vmatpush1.msra.mxu0 0.0
    %2572 = vmatprep.subr.mxu0 0.0
    %2573 = vmatpush1.msra.mxu0 0.0
    %2574 = vmatprep.subr.mxu0 0.0
    %2575 = vmatpush1.msra.mxu0 0.0
    %2576 = vmatprep.mubr.f32.mxu0 0.0
    %2577 = vmatmul.mubr.f32.gmra.mrb[0].mxu0 %v2510
    %v2578 = vpop.f32.mrb[0].mxu0
    %v2579 = vadd.f32 %v2507, %v2578
    %v2580 = vpop.f32.mrb[0].mxu0
    %2581 = vdwg.mxu0
    %vm2582 = vcmask 41984
    %v2583 = vsel %vm2582, %v2579, -inf
    %2584 = vmax.xlane.f32.xlu0 %v2583
    %v2585 = vpop.xlane.xlu0 %2584
    %v2586 = vsub.f32 %v2579, %v2585
    %v2587 = vmul.f32 %v2586, 1.442695
    %v2588 = vpow.pop %v2587
    %v2589 = vsel %vm2582, %v2588, 0.0
    %2590 = vadd.xlane.f32.xlu0 %v2589
    %v2591 = vpop.xlane.xlu0 %2590
    %v2592 = vlog2.pop %v2591
    %v2593 = vmul.f32 %v2592, 0.6931472
    %v2594 = vsub.f32 %v2586, %v2593
    %2596 = vrot.lane.b32.xlu0 %v2594, 8
    %v2597 = vpop.permute.xlu0 %2596
    %v2599 = vadd.s32 %v188, 4294967280
    %v2600 = vlaneseq
    %v2601 = vshrl.u32 %v2600, 7
    %v2602 = vsub.s32 %v2599, %v2601
    %v2603 = vrot.slane %v1284, %v2602
    %v2604 = vlaneseq
    %v2605 = vshrl.u32 %v2604, 7
    %v2606 = vsub.s32 %v2599, %v2605
    %v2607 = vrot.slane %v1365, %v2606
    %v2608 = vsel %vm1221, %v2607, %v2603
    %2610 = vrot.lane.b32.xlu0 %v2018, 24
    %v2611 = vpop.permute.xlu0 %2610
    %vm2613 = vcmask 23552
    %v2614 = vsel %vm2613, %v2395, 0.0
    %v2615 = vsel %vm1289, %v2614, %v2597
    %vm2616 = vcmask 113664
    %v2617 = vsel %vm2616, %v2615, 0.0
    %v2618 = vsel %vm1458, %v2617, %v2608
    %vm2619 = vcmask 195584
    %v2620 = vsel %vm2619, %v2618, %v2611
    %v2621 = vsel %vm315, %v2620, 0.0
    %2622 = vst [vmem:[%s2] sm:$0x3] %v2621
    // Predicated region
    $region14: #{atlsgcn_forward.1} parent=1 // pred_check
      _
    $region15: #{atlsgcn_forward.1} parent=1 // pred_check_branch
      %2624 = sbr.rel (0) target = $region17
    $region16: #{atlsgcn_forward.1} parent=1 // pred_region
      _
    $region17: #{atlsgcn_forward.1} parent=1 // pred_fallthru
      _
    // Predicated region
    $region18: #{atlsgcn_forward.1} parent=1 // pred_check
      _
    $region19: #{atlsgcn_forward.1} parent=1 // pred_check_branch
      %2626 = sbr.rel (0) target = $region21
    $region20: #{atlsgcn_forward.1} parent=1 // pred_region
      _
    $region21: #{atlsgcn_forward.1} parent=1 // pred_fallthru
      _
    %2627 = vsyncpa [#allocation4], 1

</llo_original>
